<compile_context>
chip_gen: v5e
topology: v5e:2x2
jax: 0.10.0
libtpu: 0.0.40
codegen_flags: <defaults>
</compile_context>

<pallas_src>
import functools

import jax
import jax.numpy as jnp
from jax.experimental import pallas as pl
from jax.experimental.pallas import tpu as pltpu


# -----------------------------------------------------------------------------
# Fused kernel: whole stm forward pass for one batch element.
# -----------------------------------------------------------------------------
def _stm_fused_kernel(x_ref,
                      stem_w_ref, stem_s_ref, stem_b_ref,
                      r_w1_ref, r_s1_ref, r_b1_ref,
                      r_w2_ref, r_s2_ref, r_b2_ref,
                      r_w3_ref, r_b3_ref,
                      pol_w_ref, pol_s_ref, pol_b_ref,
                      pol_fc_w_ref, pol_fc_b_ref,
                      val_w_ref, val_s_ref, val_b_ref,
                      vfc1_w_ref, vfc1_b_ref, vfc2_w_ref, vfc2_b_ref,
                      policy_ref, value_ref,
                      *, H, W, block_num, p_out):
    HW = H * W
    PAD = W + 1  # covers the largest flat shift (|dh*W + dw| <= W+1)

    # Column-validity masks for horizontal taps, computed once and reused by
    # every conv layer (JAX does not CSE broadcast_in_dim).
    w_col = jax.lax.broadcasted_iota(jnp.int32, (1, HW), 1) % W
    m_left = (w_col >= 1).astype(jnp.float32)        # tap reads (h+dh, w-1)
    m_right = (w_col <= W - 2).astype(jnp.float32)   # tap reads (h+dh, w+1)

    def conv3x3(a, w9):
        """a: (Cin, HW) channels-first flat; w9: (9, Cout, Cin) -> (Cout, HW) f32.

        Shifted-slab formulation: out = sum_tap W[tap] @ shift_{dh,dw}(a),
        with the 1-pixel halo realized by a zero-padded flat slab + static
        lane slices; row-wrap at the W boundary is zeroed with a lane mask.
        """
        cin = a.shape[0]
        cout = w9.shape[1]
        zp = jnp.zeros((cin, PAD), jnp.float32)
        a_pad = jnp.concatenate([zp, a, zp], axis=1)   # (Cin, HW + 2*PAD)
        acc = jnp.zeros((cout, HW), jnp.float32)
        for tap in range(9):
            dh, dw = tap // 3 - 1, tap % 3 - 1
            off = PAD + dh * W + dw
            s = a_pad[:, off:off + HW]                 # (Cin, HW)
            if dw == 1:
                s = s * m_right
            elif dw == -1:
                s = s * m_left
            acc = acc + jnp.dot(w9[tap], s, preferred_element_type=jnp.float32)
        return acc

    x = x_ref[...].astype(jnp.float32)                 # (Cin, HW)

    # ---- stem convblock: conv3x3 + folded BN + ReLU --------------------------
    out = conv3x3(x, stem_w_ref[...])
    out = jnp.maximum(out * stem_s_ref[...] + stem_b_ref[...], 0.0)

    # ---- residual tower ------------------------------------------------------
    for blk in range(block_num):
        h1 = conv3x3(out, r_w1_ref[blk])
        h1 = jnp.maximum(h1 * r_s1_ref[blk] + r_b1_ref[blk], 0.0)
        h2 = conv3x3(h1, r_w2_ref[blk])
        h2 = h2 * r_s2_ref[blk] + r_b2_ref[blk]
        h3 = jnp.dot(r_w3_ref[blk], h2,
                     preferred_element_type=jnp.float32) + r_b3_ref[blk]
        out = jnp.maximum(out + h3, 0.0)

    # ---- policy head: conv1x1+BN+ReLU -> Flatten(C,H,W) -> Linear ------------
    p1 = jnp.dot(pol_w_ref[...], out, preferred_element_type=jnp.float32)
    p1 = jnp.maximum(p1 * pol_s_ref[...] + pol_b_ref[...], 0.0)   # (p_out, HW)
    pol = pol_fc_b_ref[...]                                       # (1, Fout)
    for c in range(p_out):
        # pol_fc_w[c] holds FC-weight rows c*HW:(c+1)*HW -> NCHW flatten order.
        pol = pol + jnp.dot(p1[c:c + 1, :], pol_fc_w_ref[c],
                            preferred_element_type=jnp.float32)
    policy_ref[...] = pol

    # ---- value head: conv1x1+BN+ReLU -> Flatten -> Linear -> Linear -> Tanh --
    v1 = jnp.dot(val_w_ref[...], out, preferred_element_type=jnp.float32)
    v1 = jnp.maximum(v1 * val_s_ref[...] + val_b_ref[...], 0.0)   # (1, HW)
    vh = jnp.dot(v1, vfc1_w_ref[...],
                 preferred_element_type=jnp.float32) + vfc1_b_ref[...]
    vv = jnp.dot(vh, vfc2_w_ref[...],
                 preferred_element_type=jnp.float32) + vfc2_b_ref[...]
    value_ref[...] = jnp.tanh(vv)


# -----------------------------------------------------------------------------
# Wrapper: one pallas_call for the whole network.
# -----------------------------------------------------------------------------
def stm_forward(params, x_nchw):
    B, Cin, H, W = x_nchw.shape
    HW = H * W
    x = x_nchw.reshape(B, Cin, HW).astype(jnp.float32)   # pure reshape, no pad

    weights = [
        params["stem_w"], params["stem_s"], params["stem_b"],
        params["res_w1"], params["res_s1"], params["res_b1"],
        params["res_w2"], params["res_s2"], params["res_b2"],
        params["res_w3"], params["res_b3"],
        params["pol_w"], params["pol_s"], params["pol_b"],
        params["pol_fc_w"], params["pol_fc_b"],
        params["val_w"], params["val_s"], params["val_b"],
        params["vfc1_w"], params["vfc1_b"], params["vfc2_w"], params["vfc2_b"],
    ]
    block_num = params["res_w1"].shape[0]
    p_out = params["pol_w"].shape[0]
    p_fc_out = params["pol_fc_w"].shape[-1]

    kernel = functools.partial(_stm_fused_kernel, H=H, W=W,
                               block_num=block_num, p_out=p_out)

    def _w_spec(a):
        nd = a.ndim
        return pl.BlockSpec(a.shape, lambda b, _nd=nd: (0,) * _nd)

    in_specs = ([pl.BlockSpec((None, Cin, HW), lambda b: (b, 0, 0))]
                + [_w_spec(a) for a in weights])
    out_specs = (pl.BlockSpec((None, 1, p_fc_out), lambda b: (b, 0, 0)),
                 pl.BlockSpec((None, 1, 1), lambda b: (b, 0, 0)))
    out_shape = (jax.ShapeDtypeStruct((B, 1, p_fc_out), jnp.float32),
                 jax.ShapeDtypeStruct((B, 1, 1), jnp.float32))

    policy, value = pl.pallas_call(
        kernel,
        grid=(B,),
        in_specs=in_specs,
        out_specs=out_specs,
        out_shape=out_shape,
        compiler_params=pltpu.CompilerParams(dimension_semantics=("parallel",)),
    )(x, *weights)
    return policy.reshape(B, p_fc_out), value.reshape(B, 1)


# -----------------------------------------------------------------------------
# Parameter construction (deterministic, synthetic; channels-first layouts)
# -----------------------------------------------------------------------------
def _fold_bn(gamma, beta, mean, var, conv_bias, eps=1e-5):
    scale = gamma / jnp.sqrt(var + eps)
    bias = beta + (conv_bias - mean) * scale
    # (Cout, 1) so it broadcasts over the lane (H*W) axis in-kernel.
    return scale.reshape(-1, 1).astype(jnp.float32), bias.reshape(-1, 1).astype(jnp.float32)


def _conv_bn(key, cin, cout, taps):
    """Conv (taps, Cout, Cin) with BN folded into per-channel scale/bias.

    For real PyTorch weights: w[tap] == conv.weight[:, :, tap//3, tap%3]."""
    ks = jax.random.split(key, 6)
    w = 0.1 * jax.random.normal(ks[0], (taps, cout, cin), jnp.float32)
    cb = 0.1 * jax.random.normal(ks[1], (cout,), jnp.float32)
    gamma = 1.0 + 0.1 * jax.random.normal(ks[2], (cout,), jnp.float32)
    beta = 0.1 * jax.random.normal(ks[3], (cout,), jnp.float32)
    mean = 0.1 * jax.random.normal(ks[4], (cout,), jnp.float32)
    var = 1.0 + 0.1 * jnp.abs(jax.random.normal(ks[5], (cout,), jnp.float32))
    s, b = _fold_bn(gamma, beta, mean, var, cb)
    return w, s, b


def init_stm_params(key, input_channel, p_out, filters, block_num, value_dim, H, W):
    HW = H * W
    p_fc_out = p_out * H * H
    keys = iter(jax.random.split(key, 6 + 3 * block_num))

    stem_w, stem_s, stem_b = _conv_bn(next(keys), input_channel, filters, 9)

    w1s, s1s, b1s, w2s, s2s, b2s, w3s, b3s = ([] for _ in range(8))
    for _ in range(block_num):
        w1, s1, b1 = _conv_bn(next(keys), filters, filters, 9)
        w2, s2, b2 = _conv_bn(next(keys), filters, filters, 9)
        k3a, k3b = jax.random.split(next(keys))
        w3 = 0.1 * jax.random.normal(k3a, (filters, filters), jnp.float32)
        b3 = 0.1 * jax.random.normal(k3b, (filters, 1), jnp.float32)
        w1s.append(w1); s1s.append(s1); b1s.append(b1)
        w2s.append(w2); s2s.append(s2); b2s.append(b2)
        w3s.append(w3); b3s.append(b3)

    pol_w9, pol_s, pol_b = _conv_bn(next(keys), filters, p_out, 1)
    kfa, kfb = jax.random.split(next(keys))
    # FC weight stored as (p_out, HW, Fout): row block c is the NCHW-flatten
    # rows c*HW:(c+1)*HW of the math-layout (in, out) weight (i.e. W_torch.T).
    pol_fc_w = 0.1 * jax.random.normal(kfa, (p_out, HW, p_fc_out), jnp.float32)
    pol_fc_b = 0.1 * jax.random.normal(kfb, (1, p_fc_out), jnp.float32)

    val_w9, val_s, val_b = _conv_bn(next(keys), filters, 1, 1)
    k1a, k1b = jax.random.split(next(keys))
    vfc1_w = 0.1 * jax.random.normal(k1a, (HW, value_dim), jnp.float32)
    vfc1_b = 0.1 * jax.random.normal(k1b, (1, value_dim), jnp.float32)
    k2a, k2b = jax.random.split(next(keys))
    vfc2_w = 0.1 * jax.random.normal(k2a, (value_dim, 1), jnp.float32)
    vfc2_b = 0.1 * jax.random.normal(k2b, (1, 1), jnp.float32)

    return dict(
        stem_w=stem_w, stem_s=stem_s, stem_b=stem_b,
        res_w1=jnp.stack(w1s), res_s1=jnp.stack(s1s), res_b1=jnp.stack(b1s),
        res_w2=jnp.stack(w2s), res_s2=jnp.stack(s2s), res_b2=jnp.stack(b2s),
        res_w3=jnp.stack(w3s), res_b3=jnp.stack(b3s),
        pol_w=pol_w9[0], pol_s=pol_s, pol_b=pol_b,
        pol_fc_w=pol_fc_w, pol_fc_b=pol_fc_b,
        val_w=val_w9[0], val_s=val_s, val_b=val_b,
        vfc1_w=vfc1_w, vfc1_b=vfc1_b, vfc2_w=vfc2_w, vfc2_b=vfc2_b,
    )


# -----------------------------------------------------------------------------
# Pure-JAX reference (same folded params) for a sanity check.
# -----------------------------------------------------------------------------
def _reference_forward(params, x_nchw):
    B, Cin, H, W = x_nchw.shape
    HW = H * W
    hp = jax.lax.Precision.HIGHEST

    def conv3x3_ref(a, w9):
        a_pad = jnp.pad(a, ((0, 0), (0, 0), (1, 1), (1, 1)))
        out = 0.0
        for tap in range(9):
            kh, kw = tap // 3, tap % 3
            patch = a_pad[:, :, kh:kh + H, kw:kw + W]
            out = out + jnp.einsum('oc,bchw->bohw', w9[tap], patch, precision=hp)
        return out

    def aff(c, s, b):
        return c * s.reshape(1, -1, 1, 1) + b.reshape(1, -1, 1, 1)

    out = jnp.maximum(aff(conv3x3_ref(x_nchw, params["stem_w"]),
                          params["stem_s"], params["stem_b"]), 0.0)
    for blk in range(params["res_w1"].shape[0]):
        h1 = jnp.maximum(aff(conv3x3_ref(out, params["res_w1"][blk]),
                             params["res_s1"][blk], params["res_b1"][blk]), 0.0)
        h2 = aff(conv3x3_ref(h1, params["res_w2"][blk]),
                 params["res_s2"][blk], params["res_b2"][blk])
        h3 = jnp.einsum('oc,bchw->bohw', params["res_w3"][blk], h2,
                        precision=hp) + params["res_b3"][blk].reshape(1, -1, 1, 1)
        out = jnp.maximum(out + h3, 0.0)

    p1 = jnp.maximum(aff(jnp.einsum('oc,bchw->bohw', params["pol_w"], out,
                                    precision=hp),
                         params["pol_s"], params["pol_b"]), 0.0)
    wfc = params["pol_fc_w"].reshape(-1, params["pol_fc_w"].shape[-1])
    policy = jnp.dot(p1.reshape(B, -1), wfc, precision=hp) + params["pol_fc_b"]

    v1 = jnp.maximum(aff(jnp.einsum('oc,bchw->bohw', params["val_w"], out,
                                    precision=hp),
                         params["val_s"], params["val_b"]), 0.0)
    vh = jnp.dot(v1.reshape(B, HW), params["vfc1_w"], precision=hp) + params["vfc1_b"]
    value = jnp.tanh(jnp.dot(vh, params["vfc2_w"], precision=hp) + params["vfc2_b"])
    return policy, value


# -----------------------------------------------------------------------------
if __name__ == "__main__":
    input_shape = (4, 8, 8)          # (C, H, W) — stm uses input_shape[1], [2]
    input_channel = 4
    p_output_channel = 2
    filters = 8
    block_num = 2
    value_dim = 16
    B = 2
    H, W = input_shape[1], input_shape[2]

    key = jax.random.PRNGKey(0)
    kx, kp = jax.random.split(key)
    x = jax.random.normal(kx, (B, input_channel, H, W), jnp.float32)   # NCHW

    params = init_stm_params(kp, input_channel, p_output_channel, filters,
                             block_num, value_dim, H, W)

    fwd = jax.jit(stm_forward)
    policy, value = fwd(params, x)
    jax.block_until_ready((policy, value))

    assert policy.shape == (B, p_output_channel * H * H), policy.shape
    assert value.shape == (B, 1), value.shape

    ref_policy, ref_value = _reference_forward(params, x)
    assert jnp.allclose(policy, ref_policy, atol=5e-2, rtol=5e-2), "policy mismatch"
    assert jnp.allclose(value, ref_value, atol=5e-2, rtol=5e-2), "value mismatch"

    print("KERNEL_OK")
</pallas_src>

<mosaic_0001>
module attributes {stable_mosaic.version = 11 : i64} {
  func.func @_stm_fused_kernel(%arg0: i32, %arg1: memref<1x4x64xf32, #tpu.memory_space<vmem>>, %arg2: memref<9x8x4xf32, #tpu.memory_space<vmem>>, %arg3: memref<8x1xf32, #tpu.memory_space<vmem>>, %arg4: memref<8x1xf32, #tpu.memory_space<vmem>>, %arg5: memref<2x9x8x8xf32, #tpu.memory_space<vmem>>, %arg6: memref<2x8x1xf32, #tpu.memory_space<vmem>>, %arg7: memref<2x8x1xf32, #tpu.memory_space<vmem>>, %arg8: memref<2x9x8x8xf32, #tpu.memory_space<vmem>>, %arg9: memref<2x8x1xf32, #tpu.memory_space<vmem>>, %arg10: memref<2x8x1xf32, #tpu.memory_space<vmem>>, %arg11: memref<2x8x8xf32, #tpu.memory_space<vmem>>, %arg12: memref<2x8x1xf32, #tpu.memory_space<vmem>>, %arg13: memref<2x8xf32, #tpu.memory_space<vmem>>, %arg14: memref<2x1xf32, #tpu.memory_space<vmem>>, %arg15: memref<2x1xf32, #tpu.memory_space<vmem>>, %arg16: memref<2x64x128xf32, #tpu.memory_space<vmem>>, %arg17: memref<1x128xf32, #tpu.memory_space<vmem>>, %arg18: memref<1x8xf32, #tpu.memory_space<vmem>>, %arg19: memref<1x1xf32, #tpu.memory_space<vmem>>, %arg20: memref<1x1xf32, #tpu.memory_space<vmem>>, %arg21: memref<64x16xf32, #tpu.memory_space<vmem>>, %arg22: memref<1x16xf32, #tpu.memory_space<vmem>>, %arg23: memref<16x1xf32, #tpu.memory_space<vmem>>, %arg24: memref<1x1xf32, #tpu.memory_space<vmem>>, %arg25: memref<1x1x128xf32, #tpu.memory_space<vmem>>, %arg26: memref<1x1x1xf32, #tpu.memory_space<vmem>>) attributes {dimension_semantics = [#tpu.dimension_semantics<parallel>], iteration_bounds = array<i64: 2>, scalar_prefetch = 0 : i64, scratch_operands = 0 : i64, tpu.core_type = #tpu.core_type<tc>, window_params = [{transform_indices = @transform_0, window_bounds = array<i64: 1, 4, 64>}, {pipeline_mode = #tpu.pipeline_mode<synchronous>, transform_indices = @transform_1, window_bounds = array<i64: 9, 8, 4>}, {pipeline_mode = #tpu.pipeline_mode<synchronous>, transform_indices = @transform_2, window_bounds = array<i64: 8, 1>}, {pipeline_mode = #tpu.pipeline_mode<synchronous>, transform_indices = @transform_3, window_bounds = array<i64: 8, 1>}, {pipeline_mode = #tpu.pipeline_mode<synchronous>, transform_indices = @transform_4, window_bounds = array<i64: 2, 9, 8, 8>}, {pipeline_mode = #tpu.pipeline_mode<synchronous>, transform_indices = @transform_5, window_bounds = array<i64: 2, 8, 1>}, {pipeline_mode = #tpu.pipeline_mode<synchronous>, transform_indices = @transform_6, window_bounds = array<i64: 2, 8, 1>}, {pipeline_mode = #tpu.pipeline_mode<synchronous>, transform_indices = @transform_7, window_bounds = array<i64: 2, 9, 8, 8>}, {pipeline_mode = #tpu.pipeline_mode<synchronous>, transform_indices = @transform_8, window_bounds = array<i64: 2, 8, 1>}, {pipeline_mode = #tpu.pipeline_mode<synchronous>, transform_indices = @transform_9, window_bounds = array<i64: 2, 8, 1>}, {pipeline_mode = #tpu.pipeline_mode<synchronous>, transform_indices = @transform_10, window_bounds = array<i64: 2, 8, 8>}, {pipeline_mode = #tpu.pipeline_mode<synchronous>, transform_indices = @transform_11, window_bounds = array<i64: 2, 8, 1>}, {pipeline_mode = #tpu.pipeline_mode<synchronous>, transform_indices = @transform_12, window_bounds = array<i64: 2, 8>}, {pipeline_mode = #tpu.pipeline_mode<synchronous>, transform_indices = @transform_13, window_bounds = array<i64: 2, 1>}, {pipeline_mode = #tpu.pipeline_mode<synchronous>, transform_indices = @transform_14, window_bounds = array<i64: 2, 1>}, {pipeline_mode = #tpu.pipeline_mode<synchronous>, transform_indices = @transform_15, window_bounds = array<i64: 2, 64, 128>}, {pipeline_mode = #tpu.pipeline_mode<synchronous>, transform_indices = @transform_16, window_bounds = array<i64: 1, 128>}, {pipeline_mode = #tpu.pipeline_mode<synchronous>, transform_indices = @transform_17, window_bounds = array<i64: 1, 8>}, {pipeline_mode = #tpu.pipeline_mode<synchronous>, transform_indices = @transform_18, window_bounds = array<i64: 1, 1>}, {pipeline_mode = #tpu.pipeline_mode<synchronous>, transform_indices = @transform_19, window_bounds = array<i64: 1, 1>}, {pipeline_mode = #tpu.pipeline_mode<synchronous>, transform_indices = @transform_20, window_bounds = array<i64: 64, 16>}, {pipeline_mode = #tpu.pipeline_mode<synchronous>, transform_indices = @transform_21, window_bounds = array<i64: 1, 16>}, {pipeline_mode = #tpu.pipeline_mode<synchronous>, transform_indices = @transform_22, window_bounds = array<i64: 16, 1>}, {pipeline_mode = #tpu.pipeline_mode<synchronous>, transform_indices = @transform_23, window_bounds = array<i64: 1, 1>}, {transform_indices = @transform_24, window_bounds = array<i64: 1, 1, 128>}, {transform_indices = @transform_25, window_bounds = array<i64: 1, 1, 1>}]} {
    %0 = tpu.iota {dimensions = array<i32: 1>} : vector<1x64xi32>
    %c8_i32 = arith.constant 8 : i32
    %c0_i32 = arith.constant 0 : i32
    %1 = arith.cmpi eq, %c8_i32, %c0_i32 : i32
    %c1_i32 = arith.constant 1 : i32
    %2 = arith.select %1, %c1_i32, %c8_i32 : i32
    %3 = vector.broadcast %2 : i32 to vector<1x64xi32>
    %4 = arith.remsi %0, %3 : vector<1x64xi32>
    %c0_i32_0 = arith.constant 0 : i32
    %5 = vector.broadcast %c0_i32_0 : i32 to vector<1x64xi32>
    %6 = arith.cmpi ne, %4, %5 : vector<1x64xi32>
    %c0_i32_1 = arith.constant 0 : i32
    %7 = vector.broadcast %c0_i32_1 : i32 to vector<1x64xi32>
    %8 = arith.cmpi slt, %4, %7 : vector<1x64xi32>
    %c0_i32_2 = arith.constant 0 : i32
    %9 = arith.cmpi slt, %2, %c0_i32_2 : i32
    %10 = vector.broadcast %9 : i1 to vector<1x64xi1>
    %11 = vector.broadcast %10 : vector<1x64xi1> to vector<1x64xi1>
    %12 = arith.xori %8, %11 : vector<1x64xi1>
    %13 = arith.andi %12, %6 : vector<1x64xi1>
    %14 = vector.broadcast %2 : i32 to vector<1x64xi32>
    %15 = arith.addi %4, %14 : vector<1x64xi32>
    %16 = arith.select %13, %15, %4 : vector<1x64xi1>, vector<1x64xi32>
    %c1_i32_3 = arith.constant 1 : i32
    %17 = vector.broadcast %c1_i32_3 : i32 to vector<1x64xi32>
    %18 = arith.cmpi sge, %16, %17 : vector<1x64xi32>
    %19 = arith.extui %18 : vector<1x64xi1> to vector<1x64xi32>
    %20 = arith.sitofp %19 : vector<1x64xi32> to vector<1x64xf32>
    %c6_i32 = arith.constant 6 : i32
    %21 = vector.broadcast %c6_i32 : i32 to vector<1x64xi32>
    %22 = arith.cmpi sle, %16, %21 : vector<1x64xi32>
    %23 = arith.extui %22 : vector<1x64xi1> to vector<1x64xi32>
    %24 = arith.sitofp %23 : vector<1x64xi32> to vector<1x64xf32>
    %c0 = arith.constant 0 : index
    %c0_4 = arith.constant 0 : index
    %c0_5 = arith.constant 0 : index
    %25 = vector.load %arg1[%c0, %c0_4, %c0_5] : memref<1x4x64xf32, #tpu.memory_space<vmem>>, vector<1x4x64xf32>
    %26 = vector.shape_cast %25 : vector<1x4x64xf32> to vector<4x64xf32>
    %c0_6 = arith.constant 0 : index
    %c0_7 = arith.constant 0 : index
    %c0_8 = arith.constant 0 : index
    %27 = vector.load %arg2[%c0_6, %c0_7, %c0_8] : memref<9x8x4xf32, #tpu.memory_space<vmem>>, vector<9x8x4xf32>
    %cst = arith.constant 0.000000e+00 : f32
    %28 = vector.broadcast %cst : f32 to vector<4x9xf32>
    %29 = tpu.concatenate %28, %26, %28 in 1 : vector<4x9xf32>, vector<4x64xf32>, vector<4x9xf32> -> vector<4x82xf32>
    %cst_9 = arith.constant 0.000000e+00 : f32
    %30 = vector.broadcast %cst_9 : f32 to vector<8x64xf32>
    %31 = vector.extract_strided_slice %29 {offsets = [0, 0], sizes = [4, 64], strides = [1, 1]} : vector<4x82xf32> to vector<4x64xf32>
    %32 = vector.broadcast %20 : vector<1x64xf32> to vector<4x64xf32>
    %33 = arith.mulf %31, %32 : vector<4x64xf32>
    %34 = vector.extract_strided_slice %27 {offsets = [0, 0, 0], sizes = [1, 8, 4], strides = [1, 1, 1]} : vector<9x8x4xf32> to vector<1x8x4xf32>
    %35 = vector.shape_cast %34 : vector<1x8x4xf32> to vector<8x4xf32>
    %cst_10 = arith.constant dense<0.000000e+00> : vector<8x64xf32>
    %36 = tpu.matmul %35, %33, %cst_10 {dimension_numbers = #tpu.dot_dimension_numbers<[1], [0], [0], [1], [0, 0, 1, 1], [], []>} : vector<8x4xf32>, vector<4x64xf32>, vector<8x64xf32> -> vector<8x64xf32>
    %37 = arith.addf %30, %36 : vector<8x64xf32>
    %38 = vector.extract_strided_slice %29 {offsets = [0, 1], sizes = [4, 64], strides = [1, 1]} : vector<4x82xf32> to vector<4x64xf32>
    %39 = vector.extract_strided_slice %27 {offsets = [1, 0, 0], sizes = [1, 8, 4], strides = [1, 1, 1]} : vector<9x8x4xf32> to vector<1x8x4xf32>
    %40 = vector.shape_cast %39 : vector<1x8x4xf32> to vector<8x4xf32>
    %cst_11 = arith.constant dense<0.000000e+00> : vector<8x64xf32>
    %41 = tpu.matmul %40, %38, %cst_11 {dimension_numbers = #tpu.dot_dimension_numbers<[1], [0], [0], [1], [0, 0, 1, 1], [], []>} : vector<8x4xf32>, vector<4x64xf32>, vector<8x64xf32> -> vector<8x64xf32>
    %42 = arith.addf %37, %41 : vector<8x64xf32>
    %43 = vector.extract_strided_slice %29 {offsets = [0, 2], sizes = [4, 64], strides = [1, 1]} : vector<4x82xf32> to vector<4x64xf32>
    %44 = vector.broadcast %24 : vector<1x64xf32> to vector<4x64xf32>
    %45 = arith.mulf %43, %44 : vector<4x64xf32>
    %46 = vector.extract_strided_slice %27 {offsets = [2, 0, 0], sizes = [1, 8, 4], strides = [1, 1, 1]} : vector<9x8x4xf32> to vector<1x8x4xf32>
    %47 = vector.shape_cast %46 : vector<1x8x4xf32> to vector<8x4xf32>
    %cst_12 = arith.constant dense<0.000000e+00> : vector<8x64xf32>
    %48 = tpu.matmul %47, %45, %cst_12 {dimension_numbers = #tpu.dot_dimension_numbers<[1], [0], [0], [1], [0, 0, 1, 1], [], []>} : vector<8x4xf32>, vector<4x64xf32>, vector<8x64xf32> -> vector<8x64xf32>
    %49 = arith.addf %42, %48 : vector<8x64xf32>
    %50 = vector.extract_strided_slice %29 {offsets = [0, 8], sizes = [4, 64], strides = [1, 1]} : vector<4x82xf32> to vector<4x64xf32>
    %51 = vector.broadcast %20 : vector<1x64xf32> to vector<4x64xf32>
    %52 = arith.mulf %50, %51 : vector<4x64xf32>
    %53 = vector.extract_strided_slice %27 {offsets = [3, 0, 0], sizes = [1, 8, 4], strides = [1, 1, 1]} : vector<9x8x4xf32> to vector<1x8x4xf32>
    %54 = vector.shape_cast %53 : vector<1x8x4xf32> to vector<8x4xf32>
    %cst_13 = arith.constant dense<0.000000e+00> : vector<8x64xf32>
    %55 = tpu.matmul %54, %52, %cst_13 {dimension_numbers = #tpu.dot_dimension_numbers<[1], [0], [0], [1], [0, 0, 1, 1], [], []>} : vector<8x4xf32>, vector<4x64xf32>, vector<8x64xf32> -> vector<8x64xf32>
    %56 = arith.addf %49, %55 : vector<8x64xf32>
    %57 = vector.extract_strided_slice %29 {offsets = [0, 9], sizes = [4, 64], strides = [1, 1]} : vector<4x82xf32> to vector<4x64xf32>
    %58 = vector.extract_strided_slice %27 {offsets = [4, 0, 0], sizes = [1, 8, 4], strides = [1, 1, 1]} : vector<9x8x4xf32> to vector<1x8x4xf32>
    %59 = vector.shape_cast %58 : vector<1x8x4xf32> to vector<8x4xf32>
    %cst_14 = arith.constant dense<0.000000e+00> : vector<8x64xf32>
    %60 = tpu.matmul %59, %57, %cst_14 {dimension_numbers = #tpu.dot_dimension_numbers<[1], [0], [0], [1], [0, 0, 1, 1], [], []>} : vector<8x4xf32>, vector<4x64xf32>, vector<8x64xf32> -> vector<8x64xf32>
    %61 = arith.addf %56, %60 : vector<8x64xf32>
    %62 = vector.extract_strided_slice %29 {offsets = [0, 10], sizes = [4, 64], strides = [1, 1]} : vector<4x82xf32> to vector<4x64xf32>
    %63 = vector.broadcast %24 : vector<1x64xf32> to vector<4x64xf32>
    %64 = arith.mulf %62, %63 : vector<4x64xf32>
    %65 = vector.extract_strided_slice %27 {offsets = [5, 0, 0], sizes = [1, 8, 4], strides = [1, 1, 1]} : vector<9x8x4xf32> to vector<1x8x4xf32>
    %66 = vector.shape_cast %65 : vector<1x8x4xf32> to vector<8x4xf32>
    %cst_15 = arith.constant dense<0.000000e+00> : vector<8x64xf32>
    %67 = tpu.matmul %66, %64, %cst_15 {dimension_numbers = #tpu.dot_dimension_numbers<[1], [0], [0], [1], [0, 0, 1, 1], [], []>} : vector<8x4xf32>, vector<4x64xf32>, vector<8x64xf32> -> vector<8x64xf32>
    %68 = arith.addf %61, %67 : vector<8x64xf32>
    %69 = vector.extract_strided_slice %29 {offsets = [0, 16], sizes = [4, 64], strides = [1, 1]} : vector<4x82xf32> to vector<4x64xf32>
    %70 = vector.broadcast %20 : vector<1x64xf32> to vector<4x64xf32>
    %71 = arith.mulf %69, %70 : vector<4x64xf32>
    %72 = vector.extract_strided_slice %27 {offsets = [6, 0, 0], sizes = [1, 8, 4], strides = [1, 1, 1]} : vector<9x8x4xf32> to vector<1x8x4xf32>
    %73 = vector.shape_cast %72 : vector<1x8x4xf32> to vector<8x4xf32>
    %cst_16 = arith.constant dense<0.000000e+00> : vector<8x64xf32>
    %74 = tpu.matmul %73, %71, %cst_16 {dimension_numbers = #tpu.dot_dimension_numbers<[1], [0], [0], [1], [0, 0, 1, 1], [], []>} : vector<8x4xf32>, vector<4x64xf32>, vector<8x64xf32> -> vector<8x64xf32>
    %75 = arith.addf %68, %74 : vector<8x64xf32>
    %76 = vector.extract_strided_slice %29 {offsets = [0, 17], sizes = [4, 64], strides = [1, 1]} : vector<4x82xf32> to vector<4x64xf32>
    %77 = vector.extract_strided_slice %27 {offsets = [7, 0, 0], sizes = [1, 8, 4], strides = [1, 1, 1]} : vector<9x8x4xf32> to vector<1x8x4xf32>
    %78 = vector.shape_cast %77 : vector<1x8x4xf32> to vector<8x4xf32>
    %cst_17 = arith.constant dense<0.000000e+00> : vector<8x64xf32>
    %79 = tpu.matmul %78, %76, %cst_17 {dimension_numbers = #tpu.dot_dimension_numbers<[1], [0], [0], [1], [0, 0, 1, 1], [], []>} : vector<8x4xf32>, vector<4x64xf32>, vector<8x64xf32> -> vector<8x64xf32>
    %80 = arith.addf %75, %79 : vector<8x64xf32>
    %81 = vector.extract_strided_slice %29 {offsets = [0, 18], sizes = [4, 64], strides = [1, 1]} : vector<4x82xf32> to vector<4x64xf32>
    %82 = vector.broadcast %24 : vector<1x64xf32> to vector<4x64xf32>
    %83 = arith.mulf %81, %82 : vector<4x64xf32>
    %84 = vector.extract_strided_slice %27 {offsets = [8, 0, 0], sizes = [1, 8, 4], strides = [1, 1, 1]} : vector<9x8x4xf32> to vector<1x8x4xf32>
    %85 = vector.shape_cast %84 : vector<1x8x4xf32> to vector<8x4xf32>
    %cst_18 = arith.constant dense<0.000000e+00> : vector<8x64xf32>
    %86 = tpu.matmul %85, %83, %cst_18 {dimension_numbers = #tpu.dot_dimension_numbers<[1], [0], [0], [1], [0, 0, 1, 1], [], []>} : vector<8x4xf32>, vector<4x64xf32>, vector<8x64xf32> -> vector<8x64xf32>
    %87 = arith.addf %80, %86 : vector<8x64xf32>
    %c0_19 = arith.constant 0 : index
    %c0_20 = arith.constant 0 : index
    %88 = vector.load %arg3[%c0_19, %c0_20] : memref<8x1xf32, #tpu.memory_space<vmem>>, vector<8x1xf32>
    %89 = vector.broadcast %88 : vector<8x1xf32> to vector<8x64xf32>
    %90 = arith.mulf %87, %89 : vector<8x64xf32>
    %c0_21 = arith.constant 0 : index
    %c0_22 = arith.constant 0 : index
    %91 = vector.load %arg4[%c0_21, %c0_22] : memref<8x1xf32, #tpu.memory_space<vmem>>, vector<8x1xf32>
    %92 = vector.broadcast %91 : vector<8x1xf32> to vector<8x64xf32>
    %93 = arith.addf %90, %92 : vector<8x64xf32>
    %cst_23 = arith.constant 0.000000e+00 : f32
    %94 = vector.broadcast %cst_23 : f32 to vector<8x64xf32>
    %95 = arith.maximumf %93, %94 : vector<8x64xf32>
    %c0_24 = arith.constant 0 : index
    %c0_25 = arith.constant 0 : index
    %c0_26 = arith.constant 0 : index
    %c0_27 = arith.constant 0 : index
    %96 = vector.load %arg5[%c0_24, %c0_25, %c0_26, %c0_27] : memref<2x9x8x8xf32, #tpu.memory_space<vmem>>, vector<1x9x8x8xf32>
    %97 = vector.shape_cast %96 : vector<1x9x8x8xf32> to vector<9x8x8xf32>
    %cst_28 = arith.constant 0.000000e+00 : f32
    %98 = vector.broadcast %cst_28 : f32 to vector<8x9xf32>
    %99 = tpu.concatenate %98, %95, %98 in 1 : vector<8x9xf32>, vector<8x64xf32>, vector<8x9xf32> -> vector<8x82xf32>
    %cst_29 = arith.constant 0.000000e+00 : f32
    %100 = vector.broadcast %cst_29 : f32 to vector<8x64xf32>
    %101 = vector.extract_strided_slice %99 {offsets = [0, 0], sizes = [8, 64], strides = [1, 1]} : vector<8x82xf32> to vector<8x64xf32>
    %102 = vector.broadcast %20 : vector<1x64xf32> to vector<8x64xf32>
    %103 = arith.mulf %101, %102 : vector<8x64xf32>
    %104 = vector.extract_strided_slice %97 {offsets = [0, 0, 0], sizes = [1, 8, 8], strides = [1, 1, 1]} : vector<9x8x8xf32> to vector<1x8x8xf32>
    %105 = vector.shape_cast %104 : vector<1x8x8xf32> to vector<8x8xf32>
    %cst_30 = arith.constant dense<0.000000e+00> : vector<8x64xf32>
    %106 = tpu.matmul %105, %103, %cst_30 {dimension_numbers = #tpu.dot_dimension_numbers<[1], [0], [0], [1], [0, 0, 1, 1], [], []>} : vector<8x8xf32>, vector<8x64xf32>, vector<8x64xf32> -> vector<8x64xf32>
    %107 = arith.addf %100, %106 : vector<8x64xf32>
    %108 = vector.extract_strided_slice %99 {offsets = [0, 1], sizes = [8, 64], strides = [1, 1]} : vector<8x82xf32> to vector<8x64xf32>
    %109 = vector.extract_strided_slice %97 {offsets = [1, 0, 0], sizes = [1, 8, 8], strides = [1, 1, 1]} : vector<9x8x8xf32> to vector<1x8x8xf32>
    %110 = vector.shape_cast %109 : vector<1x8x8xf32> to vector<8x8xf32>
    %cst_31 = arith.constant dense<0.000000e+00> : vector<8x64xf32>
    %111 = tpu.matmul %110, %108, %cst_31 {dimension_numbers = #tpu.dot_dimension_numbers<[1], [0], [0], [1], [0, 0, 1, 1], [], []>} : vector<8x8xf32>, vector<8x64xf32>, vector<8x64xf32> -> vector<8x64xf32>
    %112 = arith.addf %107, %111 : vector<8x64xf32>
    %113 = vector.extract_strided_slice %99 {offsets = [0, 2], sizes = [8, 64], strides = [1, 1]} : vector<8x82xf32> to vector<8x64xf32>
    %114 = vector.broadcast %24 : vector<1x64xf32> to vector<8x64xf32>
    %115 = arith.mulf %113, %114 : vector<8x64xf32>
    %116 = vector.extract_strided_slice %97 {offsets = [2, 0, 0], sizes = [1, 8, 8], strides = [1, 1, 1]} : vector<9x8x8xf32> to vector<1x8x8xf32>
    %117 = vector.shape_cast %116 : vector<1x8x8xf32> to vector<8x8xf32>
    %cst_32 = arith.constant dense<0.000000e+00> : vector<8x64xf32>
    %118 = tpu.matmul %117, %115, %cst_32 {dimension_numbers = #tpu.dot_dimension_numbers<[1], [0], [0], [1], [0, 0, 1, 1], [], []>} : vector<8x8xf32>, vector<8x64xf32>, vector<8x64xf32> -> vector<8x64xf32>
    %119 = arith.addf %112, %118 : vector<8x64xf32>
    %120 = vector.extract_strided_slice %99 {offsets = [0, 8], sizes = [8, 64], strides = [1, 1]} : vector<8x82xf32> to vector<8x64xf32>
    %121 = vector.broadcast %20 : vector<1x64xf32> to vector<8x64xf32>
    %122 = arith.mulf %120, %121 : vector<8x64xf32>
    %123 = vector.extract_strided_slice %97 {offsets = [3, 0, 0], sizes = [1, 8, 8], strides = [1, 1, 1]} : vector<9x8x8xf32> to vector<1x8x8xf32>
    %124 = vector.shape_cast %123 : vector<1x8x8xf32> to vector<8x8xf32>
    %cst_33 = arith.constant dense<0.000000e+00> : vector<8x64xf32>
    %125 = tpu.matmul %124, %122, %cst_33 {dimension_numbers = #tpu.dot_dimension_numbers<[1], [0], [0], [1], [0, 0, 1, 1], [], []>} : vector<8x8xf32>, vector<8x64xf32>, vector<8x64xf32> -> vector<8x64xf32>
    %126 = arith.addf %119, %125 : vector<8x64xf32>
    %127 = vector.extract_strided_slice %99 {offsets = [0, 9], sizes = [8, 64], strides = [1, 1]} : vector<8x82xf32> to vector<8x64xf32>
    %128 = vector.extract_strided_slice %97 {offsets = [4, 0, 0], sizes = [1, 8, 8], strides = [1, 1, 1]} : vector<9x8x8xf32> to vector<1x8x8xf32>
    %129 = vector.shape_cast %128 : vector<1x8x8xf32> to vector<8x8xf32>
    %cst_34 = arith.constant dense<0.000000e+00> : vector<8x64xf32>
    %130 = tpu.matmul %129, %127, %cst_34 {dimension_numbers = #tpu.dot_dimension_numbers<[1], [0], [0], [1], [0, 0, 1, 1], [], []>} : vector<8x8xf32>, vector<8x64xf32>, vector<8x64xf32> -> vector<8x64xf32>
    %131 = arith.addf %126, %130 : vector<8x64xf32>
    %132 = vector.extract_strided_slice %99 {offsets = [0, 10], sizes = [8, 64], strides = [1, 1]} : vector<8x82xf32> to vector<8x64xf32>
    %133 = vector.broadcast %24 : vector<1x64xf32> to vector<8x64xf32>
    %134 = arith.mulf %132, %133 : vector<8x64xf32>
    %135 = vector.extract_strided_slice %97 {offsets = [5, 0, 0], sizes = [1, 8, 8], strides = [1, 1, 1]} : vector<9x8x8xf32> to vector<1x8x8xf32>
    %136 = vector.shape_cast %135 : vector<1x8x8xf32> to vector<8x8xf32>
    %cst_35 = arith.constant dense<0.000000e+00> : vector<8x64xf32>
    %137 = tpu.matmul %136, %134, %cst_35 {dimension_numbers = #tpu.dot_dimension_numbers<[1], [0], [0], [1], [0, 0, 1, 1], [], []>} : vector<8x8xf32>, vector<8x64xf32>, vector<8x64xf32> -> vector<8x64xf32>
    %138 = arith.addf %131, %137 : vector<8x64xf32>
    %139 = vector.extract_strided_slice %99 {offsets = [0, 16], sizes = [8, 64], strides = [1, 1]} : vector<8x82xf32> to vector<8x64xf32>
    %140 = vector.broadcast %20 : vector<1x64xf32> to vector<8x64xf32>
    %141 = arith.mulf %139, %140 : vector<8x64xf32>
    %142 = vector.extract_strided_slice %97 {offsets = [6, 0, 0], sizes = [1, 8, 8], strides = [1, 1, 1]} : vector<9x8x8xf32> to vector<1x8x8xf32>
    %143 = vector.shape_cast %142 : vector<1x8x8xf32> to vector<8x8xf32>
    %cst_36 = arith.constant dense<0.000000e+00> : vector<8x64xf32>
    %144 = tpu.matmul %143, %141, %cst_36 {dimension_numbers = #tpu.dot_dimension_numbers<[1], [0], [0], [1], [0, 0, 1, 1], [], []>} : vector<8x8xf32>, vector<8x64xf32>, vector<8x64xf32> -> vector<8x64xf32>
    %145 = arith.addf %138, %144 : vector<8x64xf32>
    %146 = vector.extract_strided_slice %99 {offsets = [0, 17], sizes = [8, 64], strides = [1, 1]} : vector<8x82xf32> to vector<8x64xf32>
    %147 = vector.extract_strided_slice %97 {offsets = [7, 0, 0], sizes = [1, 8, 8], strides = [1, 1, 1]} : vector<9x8x8xf32> to vector<1x8x8xf32>
    %148 = vector.shape_cast %147 : vector<1x8x8xf32> to vector<8x8xf32>
    %cst_37 = arith.constant dense<0.000000e+00> : vector<8x64xf32>
    %149 = tpu.matmul %148, %146, %cst_37 {dimension_numbers = #tpu.dot_dimension_numbers<[1], [0], [0], [1], [0, 0, 1, 1], [], []>} : vector<8x8xf32>, vector<8x64xf32>, vector<8x64xf32> -> vector<8x64xf32>
    %150 = arith.addf %145, %149 : vector<8x64xf32>
    %151 = vector.extract_strided_slice %99 {offsets = [0, 18], sizes = [8, 64], strides = [1, 1]} : vector<8x82xf32> to vector<8x64xf32>
    %152 = vector.broadcast %24 : vector<1x64xf32> to vector<8x64xf32>
    %153 = arith.mulf %151, %152 : vector<8x64xf32>
    %154 = vector.extract_strided_slice %97 {offsets = [8, 0, 0], sizes = [1, 8, 8], strides = [1, 1, 1]} : vector<9x8x8xf32> to vector<1x8x8xf32>
    %155 = vector.shape_cast %154 : vector<1x8x8xf32> to vector<8x8xf32>
    %cst_38 = arith.constant dense<0.000000e+00> : vector<8x64xf32>
    %156 = tpu.matmul %155, %153, %cst_38 {dimension_numbers = #tpu.dot_dimension_numbers<[1], [0], [0], [1], [0, 0, 1, 1], [], []>} : vector<8x8xf32>, vector<8x64xf32>, vector<8x64xf32> -> vector<8x64xf32>
    %157 = arith.addf %150, %156 : vector<8x64xf32>
    %c0_39 = arith.constant 0 : index
    %c0_40 = arith.constant 0 : index
    %c0_41 = arith.constant 0 : index
    %158 = vector.load %arg6[%c0_39, %c0_40, %c0_41] : memref<2x8x1xf32, #tpu.memory_space<vmem>>, vector<1x8x1xf32>
    %159 = vector.shape_cast %158 : vector<1x8x1xf32> to vector<8x1xf32>
    %160 = vector.broadcast %159 : vector<8x1xf32> to vector<8x64xf32>
    %161 = arith.mulf %157, %160 : vector<8x64xf32>
    %c0_42 = arith.constant 0 : index
    %c0_43 = arith.constant 0 : index
    %c0_44 = arith.constant 0 : index
    %162 = vector.load %arg7[%c0_42, %c0_43, %c0_44] : memref<2x8x1xf32, #tpu.memory_space<vmem>>, vector<1x8x1xf32>
    %163 = vector.shape_cast %162 : vector<1x8x1xf32> to vector<8x1xf32>
    %164 = vector.broadcast %163 : vector<8x1xf32> to vector<8x64xf32>
    %165 = arith.addf %161, %164 : vector<8x64xf32>
    %cst_45 = arith.constant 0.000000e+00 : f32
    %166 = vector.broadcast %cst_45 : f32 to vector<8x64xf32>
    %167 = arith.maximumf %165, %166 : vector<8x64xf32>
    %c0_46 = arith.constant 0 : index
    %c0_47 = arith.constant 0 : index
    %c0_48 = arith.constant 0 : index
    %c0_49 = arith.constant 0 : index
    %168 = vector.load %arg8[%c0_46, %c0_47, %c0_48, %c0_49] : memref<2x9x8x8xf32, #tpu.memory_space<vmem>>, vector<1x9x8x8xf32>
    %169 = vector.shape_cast %168 : vector<1x9x8x8xf32> to vector<9x8x8xf32>
    %cst_50 = arith.constant 0.000000e+00 : f32
    %170 = vector.broadcast %cst_50 : f32 to vector<8x9xf32>
    %171 = tpu.concatenate %170, %167, %170 in 1 : vector<8x9xf32>, vector<8x64xf32>, vector<8x9xf32> -> vector<8x82xf32>
    %cst_51 = arith.constant 0.000000e+00 : f32
    %172 = vector.broadcast %cst_51 : f32 to vector<8x64xf32>
    %173 = vector.extract_strided_slice %171 {offsets = [0, 0], sizes = [8, 64], strides = [1, 1]} : vector<8x82xf32> to vector<8x64xf32>
    %174 = vector.broadcast %20 : vector<1x64xf32> to vector<8x64xf32>
    %175 = arith.mulf %173, %174 : vector<8x64xf32>
    %176 = vector.extract_strided_slice %169 {offsets = [0, 0, 0], sizes = [1, 8, 8], strides = [1, 1, 1]} : vector<9x8x8xf32> to vector<1x8x8xf32>
    %177 = vector.shape_cast %176 : vector<1x8x8xf32> to vector<8x8xf32>
    %cst_52 = arith.constant dense<0.000000e+00> : vector<8x64xf32>
    %178 = tpu.matmul %177, %175, %cst_52 {dimension_numbers = #tpu.dot_dimension_numbers<[1], [0], [0], [1], [0, 0, 1, 1], [], []>} : vector<8x8xf32>, vector<8x64xf32>, vector<8x64xf32> -> vector<8x64xf32>
    %179 = arith.addf %172, %178 : vector<8x64xf32>
    %180 = vector.extract_strided_slice %171 {offsets = [0, 1], sizes = [8, 64], strides = [1, 1]} : vector<8x82xf32> to vector<8x64xf32>
    %181 = vector.extract_strided_slice %169 {offsets = [1, 0, 0], sizes = [1, 8, 8], strides = [1, 1, 1]} : vector<9x8x8xf32> to vector<1x8x8xf32>
    %182 = vector.shape_cast %181 : vector<1x8x8xf32> to vector<8x8xf32>
    %cst_53 = arith.constant dense<0.000000e+00> : vector<8x64xf32>
    %183 = tpu.matmul %182, %180, %cst_53 {dimension_numbers = #tpu.dot_dimension_numbers<[1], [0], [0], [1], [0, 0, 1, 1], [], []>} : vector<8x8xf32>, vector<8x64xf32>, vector<8x64xf32> -> vector<8x64xf32>
    %184 = arith.addf %179, %183 : vector<8x64xf32>
    %185 = vector.extract_strided_slice %171 {offsets = [0, 2], sizes = [8, 64], strides = [1, 1]} : vector<8x82xf32> to vector<8x64xf32>
    %186 = vector.broadcast %24 : vector<1x64xf32> to vector<8x64xf32>
    %187 = arith.mulf %185, %186 : vector<8x64xf32>
    %188 = vector.extract_strided_slice %169 {offsets = [2, 0, 0], sizes = [1, 8, 8], strides = [1, 1, 1]} : vector<9x8x8xf32> to vector<1x8x8xf32>
    %189 = vector.shape_cast %188 : vector<1x8x8xf32> to vector<8x8xf32>
    %cst_54 = arith.constant dense<0.000000e+00> : vector<8x64xf32>
    %190 = tpu.matmul %189, %187, %cst_54 {dimension_numbers = #tpu.dot_dimension_numbers<[1], [0], [0], [1], [0, 0, 1, 1], [], []>} : vector<8x8xf32>, vector<8x64xf32>, vector<8x64xf32> -> vector<8x64xf32>
    %191 = arith.addf %184, %190 : vector<8x64xf32>
    %192 = vector.extract_strided_slice %171 {offsets = [0, 8], sizes = [8, 64], strides = [1, 1]} : vector<8x82xf32> to vector<8x64xf32>
    %193 = vector.broadcast %20 : vector<1x64xf32> to vector<8x64xf32>
    %194 = arith.mulf %192, %193 : vector<8x64xf32>
    %195 = vector.extract_strided_slice %169 {offsets = [3, 0, 0], sizes = [1, 8, 8], strides = [1, 1, 1]} : vector<9x8x8xf32> to vector<1x8x8xf32>
    %196 = vector.shape_cast %195 : vector<1x8x8xf32> to vector<8x8xf32>
    %cst_55 = arith.constant dense<0.000000e+00> : vector<8x64xf32>
    %197 = tpu.matmul %196, %194, %cst_55 {dimension_numbers = #tpu.dot_dimension_numbers<[1], [0], [0], [1], [0, 0, 1, 1], [], []>} : vector<8x8xf32>, vector<8x64xf32>, vector<8x64xf32> -> vector<8x64xf32>
    %198 = arith.addf %191, %197 : vector<8x64xf32>
    %199 = vector.extract_strided_slice %171 {offsets = [0, 9], sizes = [8, 64], strides = [1, 1]} : vector<8x82xf32> to vector<8x64xf32>
    %200 = vector.extract_strided_slice %169 {offsets = [4, 0, 0], sizes = [1, 8, 8], strides = [1, 1, 1]} : vector<9x8x8xf32> to vector<1x8x8xf32>
    %201 = vector.shape_cast %200 : vector<1x8x8xf32> to vector<8x8xf32>
    %cst_56 = arith.constant dense<0.000000e+00> : vector<8x64xf32>
    %202 = tpu.matmul %201, %199, %cst_56 {dimension_numbers = #tpu.dot_dimension_numbers<[1], [0], [0], [1], [0, 0, 1, 1], [], []>} : vector<8x8xf32>, vector<8x64xf32>, vector<8x64xf32> -> vector<8x64xf32>
    %203 = arith.addf %198, %202 : vector<8x64xf32>
    %204 = vector.extract_strided_slice %171 {offsets = [0, 10], sizes = [8, 64], strides = [1, 1]} : vector<8x82xf32> to vector<8x64xf32>
    %205 = vector.broadcast %24 : vector<1x64xf32> to vector<8x64xf32>
    %206 = arith.mulf %204, %205 : vector<8x64xf32>
    %207 = vector.extract_strided_slice %169 {offsets = [5, 0, 0], sizes = [1, 8, 8], strides = [1, 1, 1]} : vector<9x8x8xf32> to vector<1x8x8xf32>
    %208 = vector.shape_cast %207 : vector<1x8x8xf32> to vector<8x8xf32>
    %cst_57 = arith.constant dense<0.000000e+00> : vector<8x64xf32>
    %209 = tpu.matmul %208, %206, %cst_57 {dimension_numbers = #tpu.dot_dimension_numbers<[1], [0], [0], [1], [0, 0, 1, 1], [], []>} : vector<8x8xf32>, vector<8x64xf32>, vector<8x64xf32> -> vector<8x64xf32>
    %210 = arith.addf %203, %209 : vector<8x64xf32>
    %211 = vector.extract_strided_slice %171 {offsets = [0, 16], sizes = [8, 64], strides = [1, 1]} : vector<8x82xf32> to vector<8x64xf32>
    %212 = vector.broadcast %20 : vector<1x64xf32> to vector<8x64xf32>
    %213 = arith.mulf %211, %212 : vector<8x64xf32>
    %214 = vector.extract_strided_slice %169 {offsets = [6, 0, 0], sizes = [1, 8, 8], strides = [1, 1, 1]} : vector<9x8x8xf32> to vector<1x8x8xf32>
    %215 = vector.shape_cast %214 : vector<1x8x8xf32> to vector<8x8xf32>
    %cst_58 = arith.constant dense<0.000000e+00> : vector<8x64xf32>
    %216 = tpu.matmul %215, %213, %cst_58 {dimension_numbers = #tpu.dot_dimension_numbers<[1], [0], [0], [1], [0, 0, 1, 1], [], []>} : vector<8x8xf32>, vector<8x64xf32>, vector<8x64xf32> -> vector<8x64xf32>
    %217 = arith.addf %210, %216 : vector<8x64xf32>
    %218 = vector.extract_strided_slice %171 {offsets = [0, 17], sizes = [8, 64], strides = [1, 1]} : vector<8x82xf32> to vector<8x64xf32>
    %219 = vector.extract_strided_slice %169 {offsets = [7, 0, 0], sizes = [1, 8, 8], strides = [1, 1, 1]} : vector<9x8x8xf32> to vector<1x8x8xf32>
    %220 = vector.shape_cast %219 : vector<1x8x8xf32> to vector<8x8xf32>
    %cst_59 = arith.constant dense<0.000000e+00> : vector<8x64xf32>
    %221 = tpu.matmul %220, %218, %cst_59 {dimension_numbers = #tpu.dot_dimension_numbers<[1], [0], [0], [1], [0, 0, 1, 1], [], []>} : vector<8x8xf32>, vector<8x64xf32>, vector<8x64xf32> -> vector<8x64xf32>
    %222 = arith.addf %217, %221 : vector<8x64xf32>
    %223 = vector.extract_strided_slice %171 {offsets = [0, 18], sizes = [8, 64], strides = [1, 1]} : vector<8x82xf32> to vector<8x64xf32>
    %224 = vector.broadcast %24 : vector<1x64xf32> to vector<8x64xf32>
    %225 = arith.mulf %223, %224 : vector<8x64xf32>
    %226 = vector.extract_strided_slice %169 {offsets = [8, 0, 0], sizes = [1, 8, 8], strides = [1, 1, 1]} : vector<9x8x8xf32> to vector<1x8x8xf32>
    %227 = vector.shape_cast %226 : vector<1x8x8xf32> to vector<8x8xf32>
    %cst_60 = arith.constant dense<0.000000e+00> : vector<8x64xf32>
    %228 = tpu.matmul %227, %225, %cst_60 {dimension_numbers = #tpu.dot_dimension_numbers<[1], [0], [0], [1], [0, 0, 1, 1], [], []>} : vector<8x8xf32>, vector<8x64xf32>, vector<8x64xf32> -> vector<8x64xf32>
    %229 = arith.addf %222, %228 : vector<8x64xf32>
    %c0_61 = arith.constant 0 : index
    %c0_62 = arith.constant 0 : index
    %c0_63 = arith.constant 0 : index
    %230 = vector.load %arg9[%c0_61, %c0_62, %c0_63] : memref<2x8x1xf32, #tpu.memory_space<vmem>>, vector<1x8x1xf32>
    %231 = vector.shape_cast %230 : vector<1x8x1xf32> to vector<8x1xf32>
    %232 = vector.broadcast %231 : vector<8x1xf32> to vector<8x64xf32>
    %233 = arith.mulf %229, %232 : vector<8x64xf32>
    %c0_64 = arith.constant 0 : index
    %c0_65 = arith.constant 0 : index
    %c0_66 = arith.constant 0 : index
    %234 = vector.load %arg10[%c0_64, %c0_65, %c0_66] : memref<2x8x1xf32, #tpu.memory_space<vmem>>, vector<1x8x1xf32>
    %235 = vector.shape_cast %234 : vector<1x8x1xf32> to vector<8x1xf32>
    %236 = vector.broadcast %235 : vector<8x1xf32> to vector<8x64xf32>
    %237 = arith.addf %233, %236 : vector<8x64xf32>
    %c0_67 = arith.constant 0 : index
    %c0_68 = arith.constant 0 : index
    %c0_69 = arith.constant 0 : index
    %238 = vector.load %arg11[%c0_67, %c0_68, %c0_69] : memref<2x8x8xf32, #tpu.memory_space<vmem>>, vector<1x8x8xf32>
    %239 = vector.shape_cast %238 : vector<1x8x8xf32> to vector<8x8xf32>
    %cst_70 = arith.constant dense<0.000000e+00> : vector<8x64xf32>
    %240 = tpu.matmul %239, %237, %cst_70 {dimension_numbers = #tpu.dot_dimension_numbers<[1], [0], [0], [1], [0, 0, 1, 1], [], []>} : vector<8x8xf32>, vector<8x64xf32>, vector<8x64xf32> -> vector<8x64xf32>
    %c0_71 = arith.constant 0 : index
    %c0_72 = arith.constant 0 : index
    %c0_73 = arith.constant 0 : index
    %241 = vector.load %arg12[%c0_71, %c0_72, %c0_73] : memref<2x8x1xf32, #tpu.memory_space<vmem>>, vector<1x8x1xf32>
    %242 = vector.shape_cast %241 : vector<1x8x1xf32> to vector<8x1xf32>
    %243 = vector.broadcast %242 : vector<8x1xf32> to vector<8x64xf32>
    %244 = arith.addf %240, %243 : vector<8x64xf32>
    %245 = arith.addf %95, %244 : vector<8x64xf32>
    %cst_74 = arith.constant 0.000000e+00 : f32
    %246 = vector.broadcast %cst_74 : f32 to vector<8x64xf32>
    %247 = arith.maximumf %245, %246 : vector<8x64xf32>
    %c1 = arith.constant 1 : index
    %c0_75 = arith.constant 0 : index
    %c0_76 = arith.constant 0 : index
    %c0_77 = arith.constant 0 : index
    %248 = vector.load %arg5[%c1, %c0_75, %c0_76, %c0_77] : memref<2x9x8x8xf32, #tpu.memory_space<vmem>>, vector<1x9x8x8xf32>
    %249 = vector.shape_cast %248 : vector<1x9x8x8xf32> to vector<9x8x8xf32>
    %cst_78 = arith.constant 0.000000e+00 : f32
    %250 = vector.broadcast %cst_78 : f32 to vector<8x9xf32>
    %251 = tpu.concatenate %250, %247, %250 in 1 : vector<8x9xf32>, vector<8x64xf32>, vector<8x9xf32> -> vector<8x82xf32>
    %cst_79 = arith.constant 0.000000e+00 : f32
    %252 = vector.broadcast %cst_79 : f32 to vector<8x64xf32>
    %253 = vector.extract_strided_slice %251 {offsets = [0, 0], sizes = [8, 64], strides = [1, 1]} : vector<8x82xf32> to vector<8x64xf32>
    %254 = vector.broadcast %20 : vector<1x64xf32> to vector<8x64xf32>
    %255 = arith.mulf %253, %254 : vector<8x64xf32>
    %256 = vector.extract_strided_slice %249 {offsets = [0, 0, 0], sizes = [1, 8, 8], strides = [1, 1, 1]} : vector<9x8x8xf32> to vector<1x8x8xf32>
    %257 = vector.shape_cast %256 : vector<1x8x8xf32> to vector<8x8xf32>
    %cst_80 = arith.constant dense<0.000000e+00> : vector<8x64xf32>
    %258 = tpu.matmul %257, %255, %cst_80 {dimension_numbers = #tpu.dot_dimension_numbers<[1], [0], [0], [1], [0, 0, 1, 1], [], []>} : vector<8x8xf32>, vector<8x64xf32>, vector<8x64xf32> -> vector<8x64xf32>
    %259 = arith.addf %252, %258 : vector<8x64xf32>
    %260 = vector.extract_strided_slice %251 {offsets = [0, 1], sizes = [8, 64], strides = [1, 1]} : vector<8x82xf32> to vector<8x64xf32>
    %261 = vector.extract_strided_slice %249 {offsets = [1, 0, 0], sizes = [1, 8, 8], strides = [1, 1, 1]} : vector<9x8x8xf32> to vector<1x8x8xf32>
    %262 = vector.shape_cast %261 : vector<1x8x8xf32> to vector<8x8xf32>
    %cst_81 = arith.constant dense<0.000000e+00> : vector<8x64xf32>
    %263 = tpu.matmul %262, %260, %cst_81 {dimension_numbers = #tpu.dot_dimension_numbers<[1], [0], [0], [1], [0, 0, 1, 1], [], []>} : vector<8x8xf32>, vector<8x64xf32>, vector<8x64xf32> -> vector<8x64xf32>
    %264 = arith.addf %259, %263 : vector<8x64xf32>
    %265 = vector.extract_strided_slice %251 {offsets = [0, 2], sizes = [8, 64], strides = [1, 1]} : vector<8x82xf32> to vector<8x64xf32>
    %266 = vector.broadcast %24 : vector<1x64xf32> to vector<8x64xf32>
    %267 = arith.mulf %265, %266 : vector<8x64xf32>
    %268 = vector.extract_strided_slice %249 {offsets = [2, 0, 0], sizes = [1, 8, 8], strides = [1, 1, 1]} : vector<9x8x8xf32> to vector<1x8x8xf32>
    %269 = vector.shape_cast %268 : vector<1x8x8xf32> to vector<8x8xf32>
    %cst_82 = arith.constant dense<0.000000e+00> : vector<8x64xf32>
    %270 = tpu.matmul %269, %267, %cst_82 {dimension_numbers = #tpu.dot_dimension_numbers<[1], [0], [0], [1], [0, 0, 1, 1], [], []>} : vector<8x8xf32>, vector<8x64xf32>, vector<8x64xf32> -> vector<8x64xf32>
    %271 = arith.addf %264, %270 : vector<8x64xf32>
    %272 = vector.extract_strided_slice %251 {offsets = [0, 8], sizes = [8, 64], strides = [1, 1]} : vector<8x82xf32> to vector<8x64xf32>
    %273 = vector.broadcast %20 : vector<1x64xf32> to vector<8x64xf32>
    %274 = arith.mulf %272, %273 : vector<8x64xf32>
    %275 = vector.extract_strided_slice %249 {offsets = [3, 0, 0], sizes = [1, 8, 8], strides = [1, 1, 1]} : vector<9x8x8xf32> to vector<1x8x8xf32>
    %276 = vector.shape_cast %275 : vector<1x8x8xf32> to vector<8x8xf32>
    %cst_83 = arith.constant dense<0.000000e+00> : vector<8x64xf32>
    %277 = tpu.matmul %276, %274, %cst_83 {dimension_numbers = #tpu.dot_dimension_numbers<[1], [0], [0], [1], [0, 0, 1, 1], [], []>} : vector<8x8xf32>, vector<8x64xf32>, vector<8x64xf32> -> vector<8x64xf32>
    %278 = arith.addf %271, %277 : vector<8x64xf32>
    %279 = vector.extract_strided_slice %251 {offsets = [0, 9], sizes = [8, 64], strides = [1, 1]} : vector<8x82xf32> to vector<8x64xf32>
    %280 = vector.extract_strided_slice %249 {offsets = [4, 0, 0], sizes = [1, 8, 8], strides = [1, 1, 1]} : vector<9x8x8xf32> to vector<1x8x8xf32>
    %281 = vector.shape_cast %280 : vector<1x8x8xf32> to vector<8x8xf32>
    %cst_84 = arith.constant dense<0.000000e+00> : vector<8x64xf32>
    %282 = tpu.matmul %281, %279, %cst_84 {dimension_numbers = #tpu.dot_dimension_numbers<[1], [0], [0], [1], [0, 0, 1, 1], [], []>} : vector<8x8xf32>, vector<8x64xf32>, vector<8x64xf32> -> vector<8x64xf32>
    %283 = arith.addf %278, %282 : vector<8x64xf32>
    %284 = vector.extract_strided_slice %251 {offsets = [0, 10], sizes = [8, 64], strides = [1, 1]} : vector<8x82xf32> to vector<8x64xf32>
    %285 = vector.broadcast %24 : vector<1x64xf32> to vector<8x64xf32>
    %286 = arith.mulf %284, %285 : vector<8x64xf32>
    %287 = vector.extract_strided_slice %249 {offsets = [5, 0, 0], sizes = [1, 8, 8], strides = [1, 1, 1]} : vector<9x8x8xf32> to vector<1x8x8xf32>
    %288 = vector.shape_cast %287 : vector<1x8x8xf32> to vector<8x8xf32>
    %cst_85 = arith.constant dense<0.000000e+00> : vector<8x64xf32>
    %289 = tpu.matmul %288, %286, %cst_85 {dimension_numbers = #tpu.dot_dimension_numbers<[1], [0], [0], [1], [0, 0, 1, 1], [], []>} : vector<8x8xf32>, vector<8x64xf32>, vector<8x64xf32> -> vector<8x64xf32>
    %290 = arith.addf %283, %289 : vector<8x64xf32>
    %291 = vector.extract_strided_slice %251 {offsets = [0, 16], sizes = [8, 64], strides = [1, 1]} : vector<8x82xf32> to vector<8x64xf32>
    %292 = vector.broadcast %20 : vector<1x64xf32> to vector<8x64xf32>
    %293 = arith.mulf %291, %292 : vector<8x64xf32>
    %294 = vector.extract_strided_slice %249 {offsets = [6, 0, 0], sizes = [1, 8, 8], strides = [1, 1, 1]} : vector<9x8x8xf32> to vector<1x8x8xf32>
    %295 = vector.shape_cast %294 : vector<1x8x8xf32> to vector<8x8xf32>
    %cst_86 = arith.constant dense<0.000000e+00> : vector<8x64xf32>
    %296 = tpu.matmul %295, %293, %cst_86 {dimension_numbers = #tpu.dot_dimension_numbers<[1], [0], [0], [1], [0, 0, 1, 1], [], []>} : vector<8x8xf32>, vector<8x64xf32>, vector<8x64xf32> -> vector<8x64xf32>
    %297 = arith.addf %290, %296 : vector<8x64xf32>
    %298 = vector.extract_strided_slice %251 {offsets = [0, 17], sizes = [8, 64], strides = [1, 1]} : vector<8x82xf32> to vector<8x64xf32>
    %299 = vector.extract_strided_slice %249 {offsets = [7, 0, 0], sizes = [1, 8, 8], strides = [1, 1, 1]} : vector<9x8x8xf32> to vector<1x8x8xf32>
    %300 = vector.shape_cast %299 : vector<1x8x8xf32> to vector<8x8xf32>
    %cst_87 = arith.constant dense<0.000000e+00> : vector<8x64xf32>
    %301 = tpu.matmul %300, %298, %cst_87 {dimension_numbers = #tpu.dot_dimension_numbers<[1], [0], [0], [1], [0, 0, 1, 1], [], []>} : vector<8x8xf32>, vector<8x64xf32>, vector<8x64xf32> -> vector<8x64xf32>
    %302 = arith.addf %297, %301 : vector<8x64xf32>
    %303 = vector.extract_strided_slice %251 {offsets = [0, 18], sizes = [8, 64], strides = [1, 1]} : vector<8x82xf32> to vector<8x64xf32>
    %304 = vector.broadcast %24 : vector<1x64xf32> to vector<8x64xf32>
    %305 = arith.mulf %303, %304 : vector<8x64xf32>
    %306 = vector.extract_strided_slice %249 {offsets = [8, 0, 0], sizes = [1, 8, 8], strides = [1, 1, 1]} : vector<9x8x8xf32> to vector<1x8x8xf32>
    %307 = vector.shape_cast %306 : vector<1x8x8xf32> to vector<8x8xf32>
    %cst_88 = arith.constant dense<0.000000e+00> : vector<8x64xf32>
    %308 = tpu.matmul %307, %305, %cst_88 {dimension_numbers = #tpu.dot_dimension_numbers<[1], [0], [0], [1], [0, 0, 1, 1], [], []>} : vector<8x8xf32>, vector<8x64xf32>, vector<8x64xf32> -> vector<8x64xf32>
    %309 = arith.addf %302, %308 : vector<8x64xf32>
    %c1_89 = arith.constant 1 : index
    %c0_90 = arith.constant 0 : index
    %c0_91 = arith.constant 0 : index
    %310 = vector.load %arg6[%c1_89, %c0_90, %c0_91] : memref<2x8x1xf32, #tpu.memory_space<vmem>>, vector<1x8x1xf32>
    %311 = vector.shape_cast %310 : vector<1x8x1xf32> to vector<8x1xf32>
    %312 = vector.broadcast %311 : vector<8x1xf32> to vector<8x64xf32>
    %313 = arith.mulf %309, %312 : vector<8x64xf32>
    %c1_92 = arith.constant 1 : index
    %c0_93 = arith.constant 0 : index
    %c0_94 = arith.constant 0 : index
    %314 = vector.load %arg7[%c1_92, %c0_93, %c0_94] : memref<2x8x1xf32, #tpu.memory_space<vmem>>, vector<1x8x1xf32>
    %315 = vector.shape_cast %314 : vector<1x8x1xf32> to vector<8x1xf32>
    %316 = vector.broadcast %315 : vector<8x1xf32> to vector<8x64xf32>
    %317 = arith.addf %313, %316 : vector<8x64xf32>
    %cst_95 = arith.constant 0.000000e+00 : f32
    %318 = vector.broadcast %cst_95 : f32 to vector<8x64xf32>
    %319 = arith.maximumf %317, %318 : vector<8x64xf32>
    %c1_96 = arith.constant 1 : index
    %c0_97 = arith.constant 0 : index
    %c0_98 = arith.constant 0 : index
    %c0_99 = arith.constant 0 : index
    %320 = vector.load %arg8[%c1_96, %c0_97, %c0_98, %c0_99] : memref<2x9x8x8xf32, #tpu.memory_space<vmem>>, vector<1x9x8x8xf32>
    %321 = vector.shape_cast %320 : vector<1x9x8x8xf32> to vector<9x8x8xf32>
    %cst_100 = arith.constant 0.000000e+00 : f32
    %322 = vector.broadcast %cst_100 : f32 to vector<8x9xf32>
    %323 = tpu.concatenate %322, %319, %322 in 1 : vector<8x9xf32>, vector<8x64xf32>, vector<8x9xf32> -> vector<8x82xf32>
    %cst_101 = arith.constant 0.000000e+00 : f32
    %324 = vector.broadcast %cst_101 : f32 to vector<8x64xf32>
    %325 = vector.extract_strided_slice %323 {offsets = [0, 0], sizes = [8, 64], strides = [1, 1]} : vector<8x82xf32> to vector<8x64xf32>
    %326 = vector.broadcast %20 : vector<1x64xf32> to vector<8x64xf32>
    %327 = arith.mulf %325, %326 : vector<8x64xf32>
    %328 = vector.extract_strided_slice %321 {offsets = [0, 0, 0], sizes = [1, 8, 8], strides = [1, 1, 1]} : vector<9x8x8xf32> to vector<1x8x8xf32>
    %329 = vector.shape_cast %328 : vector<1x8x8xf32> to vector<8x8xf32>
    %cst_102 = arith.constant dense<0.000000e+00> : vector<8x64xf32>
    %330 = tpu.matmul %329, %327, %cst_102 {dimension_numbers = #tpu.dot_dimension_numbers<[1], [0], [0], [1], [0, 0, 1, 1], [], []>} : vector<8x8xf32>, vector<8x64xf32>, vector<8x64xf32> -> vector<8x64xf32>
    %331 = arith.addf %324, %330 : vector<8x64xf32>
    %332 = vector.extract_strided_slice %323 {offsets = [0, 1], sizes = [8, 64], strides = [1, 1]} : vector<8x82xf32> to vector<8x64xf32>
    %333 = vector.extract_strided_slice %321 {offsets = [1, 0, 0], sizes = [1, 8, 8], strides = [1, 1, 1]} : vector<9x8x8xf32> to vector<1x8x8xf32>
    %334 = vector.shape_cast %333 : vector<1x8x8xf32> to vector<8x8xf32>
    %cst_103 = arith.constant dense<0.000000e+00> : vector<8x64xf32>
    %335 = tpu.matmul %334, %332, %cst_103 {dimension_numbers = #tpu.dot_dimension_numbers<[1], [0], [0], [1], [0, 0, 1, 1], [], []>} : vector<8x8xf32>, vector<8x64xf32>, vector<8x64xf32> -> vector<8x64xf32>
    %336 = arith.addf %331, %335 : vector<8x64xf32>
    %337 = vector.extract_strided_slice %323 {offsets = [0, 2], sizes = [8, 64], strides = [1, 1]} : vector<8x82xf32> to vector<8x64xf32>
    %338 = vector.broadcast %24 : vector<1x64xf32> to vector<8x64xf32>
    %339 = arith.mulf %337, %338 : vector<8x64xf32>
    %340 = vector.extract_strided_slice %321 {offsets = [2, 0, 0], sizes = [1, 8, 8], strides = [1, 1, 1]} : vector<9x8x8xf32> to vector<1x8x8xf32>
    %341 = vector.shape_cast %340 : vector<1x8x8xf32> to vector<8x8xf32>
    %cst_104 = arith.constant dense<0.000000e+00> : vector<8x64xf32>
    %342 = tpu.matmul %341, %339, %cst_104 {dimension_numbers = #tpu.dot_dimension_numbers<[1], [0], [0], [1], [0, 0, 1, 1], [], []>} : vector<8x8xf32>, vector<8x64xf32>, vector<8x64xf32> -> vector<8x64xf32>
    %343 = arith.addf %336, %342 : vector<8x64xf32>
    %344 = vector.extract_strided_slice %323 {offsets = [0, 8], sizes = [8, 64], strides = [1, 1]} : vector<8x82xf32> to vector<8x64xf32>
    %345 = vector.broadcast %20 : vector<1x64xf32> to vector<8x64xf32>
    %346 = arith.mulf %344, %345 : vector<8x64xf32>
    %347 = vector.extract_strided_slice %321 {offsets = [3, 0, 0], sizes = [1, 8, 8], strides = [1, 1, 1]} : vector<9x8x8xf32> to vector<1x8x8xf32>
    %348 = vector.shape_cast %347 : vector<1x8x8xf32> to vector<8x8xf32>
    %cst_105 = arith.constant dense<0.000000e+00> : vector<8x64xf32>
    %349 = tpu.matmul %348, %346, %cst_105 {dimension_numbers = #tpu.dot_dimension_numbers<[1], [0], [0], [1], [0, 0, 1, 1], [], []>} : vector<8x8xf32>, vector<8x64xf32>, vector<8x64xf32> -> vector<8x64xf32>
    %350 = arith.addf %343, %349 : vector<8x64xf32>
    %351 = vector.extract_strided_slice %323 {offsets = [0, 9], sizes = [8, 64], strides = [1, 1]} : vector<8x82xf32> to vector<8x64xf32>
    %352 = vector.extract_strided_slice %321 {offsets = [4, 0, 0], sizes = [1, 8, 8], strides = [1, 1, 1]} : vector<9x8x8xf32> to vector<1x8x8xf32>
    %353 = vector.shape_cast %352 : vector<1x8x8xf32> to vector<8x8xf32>
    %cst_106 = arith.constant dense<0.000000e+00> : vector<8x64xf32>
    %354 = tpu.matmul %353, %351, %cst_106 {dimension_numbers = #tpu.dot_dimension_numbers<[1], [0], [0], [1], [0, 0, 1, 1], [], []>} : vector<8x8xf32>, vector<8x64xf32>, vector<8x64xf32> -> vector<8x64xf32>
    %355 = arith.addf %350, %354 : vector<8x64xf32>
    %356 = vector.extract_strided_slice %323 {offsets = [0, 10], sizes = [8, 64], strides = [1, 1]} : vector<8x82xf32> to vector<8x64xf32>
    %357 = vector.broadcast %24 : vector<1x64xf32> to vector<8x64xf32>
    %358 = arith.mulf %356, %357 : vector<8x64xf32>
    %359 = vector.extract_strided_slice %321 {offsets = [5, 0, 0], sizes = [1, 8, 8], strides = [1, 1, 1]} : vector<9x8x8xf32> to vector<1x8x8xf32>
    %360 = vector.shape_cast %359 : vector<1x8x8xf32> to vector<8x8xf32>
    %cst_107 = arith.constant dense<0.000000e+00> : vector<8x64xf32>
    %361 = tpu.matmul %360, %358, %cst_107 {dimension_numbers = #tpu.dot_dimension_numbers<[1], [0], [0], [1], [0, 0, 1, 1], [], []>} : vector<8x8xf32>, vector<8x64xf32>, vector<8x64xf32> -> vector<8x64xf32>
    %362 = arith.addf %355, %361 : vector<8x64xf32>
    %363 = vector.extract_strided_slice %323 {offsets = [0, 16], sizes = [8, 64], strides = [1, 1]} : vector<8x82xf32> to vector<8x64xf32>
    %364 = vector.broadcast %20 : vector<1x64xf32> to vector<8x64xf32>
    %365 = arith.mulf %363, %364 : vector<8x64xf32>
    %366 = vector.extract_strided_slice %321 {offsets = [6, 0, 0], sizes = [1, 8, 8], strides = [1, 1, 1]} : vector<9x8x8xf32> to vector<1x8x8xf32>
    %367 = vector.shape_cast %366 : vector<1x8x8xf32> to vector<8x8xf32>
    %cst_108 = arith.constant dense<0.000000e+00> : vector<8x64xf32>
    %368 = tpu.matmul %367, %365, %cst_108 {dimension_numbers = #tpu.dot_dimension_numbers<[1], [0], [0], [1], [0, 0, 1, 1], [], []>} : vector<8x8xf32>, vector<8x64xf32>, vector<8x64xf32> -> vector<8x64xf32>
    %369 = arith.addf %362, %368 : vector<8x64xf32>
    %370 = vector.extract_strided_slice %323 {offsets = [0, 17], sizes = [8, 64], strides = [1, 1]} : vector<8x82xf32> to vector<8x64xf32>
    %371 = vector.extract_strided_slice %321 {offsets = [7, 0, 0], sizes = [1, 8, 8], strides = [1, 1, 1]} : vector<9x8x8xf32> to vector<1x8x8xf32>
    %372 = vector.shape_cast %371 : vector<1x8x8xf32> to vector<8x8xf32>
    %cst_109 = arith.constant dense<0.000000e+00> : vector<8x64xf32>
    %373 = tpu.matmul %372, %370, %cst_109 {dimension_numbers = #tpu.dot_dimension_numbers<[1], [0], [0], [1], [0, 0, 1, 1], [], []>} : vector<8x8xf32>, vector<8x64xf32>, vector<8x64xf32> -> vector<8x64xf32>
    %374 = arith.addf %369, %373 : vector<8x64xf32>
    %375 = vector.extract_strided_slice %323 {offsets = [0, 18], sizes = [8, 64], strides = [1, 1]} : vector<8x82xf32> to vector<8x64xf32>
    %376 = vector.broadcast %24 : vector<1x64xf32> to vector<8x64xf32>
    %377 = arith.mulf %375, %376 : vector<8x64xf32>
    %378 = vector.extract_strided_slice %321 {offsets = [8, 0, 0], sizes = [1, 8, 8], strides = [1, 1, 1]} : vector<9x8x8xf32> to vector<1x8x8xf32>
    %379 = vector.shape_cast %378 : vector<1x8x8xf32> to vector<8x8xf32>
    %cst_110 = arith.constant dense<0.000000e+00> : vector<8x64xf32>
    %380 = tpu.matmul %379, %377, %cst_110 {dimension_numbers = #tpu.dot_dimension_numbers<[1], [0], [0], [1], [0, 0, 1, 1], [], []>} : vector<8x8xf32>, vector<8x64xf32>, vector<8x64xf32> -> vector<8x64xf32>
    %381 = arith.addf %374, %380 : vector<8x64xf32>
    %c1_111 = arith.constant 1 : index
    %c0_112 = arith.constant 0 : index
    %c0_113 = arith.constant 0 : index
    %382 = vector.load %arg9[%c1_111, %c0_112, %c0_113] : memref<2x8x1xf32, #tpu.memory_space<vmem>>, vector<1x8x1xf32>
    %383 = vector.shape_cast %382 : vector<1x8x1xf32> to vector<8x1xf32>
    %384 = vector.broadcast %383 : vector<8x1xf32> to vector<8x64xf32>
    %385 = arith.mulf %381, %384 : vector<8x64xf32>
    %c1_114 = arith.constant 1 : index
    %c0_115 = arith.constant 0 : index
    %c0_116 = arith.constant 0 : index
    %386 = vector.load %arg10[%c1_114, %c0_115, %c0_116] : memref<2x8x1xf32, #tpu.memory_space<vmem>>, vector<1x8x1xf32>
    %387 = vector.shape_cast %386 : vector<1x8x1xf32> to vector<8x1xf32>
    %388 = vector.broadcast %387 : vector<8x1xf32> to vector<8x64xf32>
    %389 = arith.addf %385, %388 : vector<8x64xf32>
    %c1_117 = arith.constant 1 : index
    %c0_118 = arith.constant 0 : index
    %c0_119 = arith.constant 0 : index
    %390 = vector.load %arg11[%c1_117, %c0_118, %c0_119] : memref<2x8x8xf32, #tpu.memory_space<vmem>>, vector<1x8x8xf32>
    %391 = vector.shape_cast %390 : vector<1x8x8xf32> to vector<8x8xf32>
    %cst_120 = arith.constant dense<0.000000e+00> : vector<8x64xf32>
    %392 = tpu.matmul %391, %389, %cst_120 {dimension_numbers = #tpu.dot_dimension_numbers<[1], [0], [0], [1], [0, 0, 1, 1], [], []>} : vector<8x8xf32>, vector<8x64xf32>, vector<8x64xf32> -> vector<8x64xf32>
    %c1_121 = arith.constant 1 : index
    %c0_122 = arith.constant 0 : index
    %c0_123 = arith.constant 0 : index
    %393 = vector.load %arg12[%c1_121, %c0_122, %c0_123] : memref<2x8x1xf32, #tpu.memory_space<vmem>>, vector<1x8x1xf32>
    %394 = vector.shape_cast %393 : vector<1x8x1xf32> to vector<8x1xf32>
    %395 = vector.broadcast %394 : vector<8x1xf32> to vector<8x64xf32>
    %396 = arith.addf %392, %395 : vector<8x64xf32>
    %397 = arith.addf %247, %396 : vector<8x64xf32>
    %cst_124 = arith.constant 0.000000e+00 : f32
    %398 = vector.broadcast %cst_124 : f32 to vector<8x64xf32>
    %399 = arith.maximumf %397, %398 : vector<8x64xf32>
    %c0_125 = arith.constant 0 : index
    %c0_126 = arith.constant 0 : index
    %400 = vector.load %arg13[%c0_125, %c0_126] : memref<2x8xf32, #tpu.memory_space<vmem>>, vector<2x8xf32>
    %cst_127 = arith.constant dense<0.000000e+00> : vector<2x64xf32>
    %401 = tpu.matmul %400, %399, %cst_127 {dimension_numbers = #tpu.dot_dimension_numbers<[1], [0], [0], [1], [0, 0, 1, 1], [], []>} : vector<2x8xf32>, vector<8x64xf32>, vector<2x64xf32> -> vector<2x64xf32>
    %c0_128 = arith.constant 0 : index
    %c0_129 = arith.constant 0 : index
    %402 = vector.load %arg14[%c0_128, %c0_129] : memref<2x1xf32, #tpu.memory_space<vmem>>, vector<2x1xf32>
    %403 = vector.broadcast %402 : vector<2x1xf32> to vector<2x64xf32>
    %404 = arith.mulf %401, %403 : vector<2x64xf32>
    %c0_130 = arith.constant 0 : index
    %c0_131 = arith.constant 0 : index
    %405 = vector.load %arg15[%c0_130, %c0_131] : memref<2x1xf32, #tpu.memory_space<vmem>>, vector<2x1xf32>
    %406 = vector.broadcast %405 : vector<2x1xf32> to vector<2x64xf32>
    %407 = arith.addf %404, %406 : vector<2x64xf32>
    %cst_132 = arith.constant 0.000000e+00 : f32
    %408 = vector.broadcast %cst_132 : f32 to vector<2x64xf32>
    %409 = arith.maximumf %407, %408 : vector<2x64xf32>
    %c0_133 = arith.constant 0 : index
    %c0_134 = arith.constant 0 : index
    %410 = vector.load %arg17[%c0_133, %c0_134] : memref<1x128xf32, #tpu.memory_space<vmem>>, vector<1x128xf32>
    %411 = vector.extract_strided_slice %409 {offsets = [0, 0], sizes = [1, 64], strides = [1, 1]} : vector<2x64xf32> to vector<1x64xf32>
    %c0_135 = arith.constant 0 : index
    %c0_136 = arith.constant 0 : index
    %c0_137 = arith.constant 0 : index
    %412 = vector.load %arg16[%c0_135, %c0_136, %c0_137] : memref<2x64x128xf32, #tpu.memory_space<vmem>>, vector<1x64x128xf32>
    %413 = vector.shape_cast %412 : vector<1x64x128xf32> to vector<64x128xf32>
    %cst_138 = arith.constant dense<0.000000e+00> : vector<1x128xf32>
    %414 = tpu.matmul %411, %413, %cst_138 {dimension_numbers = #tpu.dot_dimension_numbers<[1], [0], [0], [1], [0, 0, 1, 1], [], []>} : vector<1x64xf32>, vector<64x128xf32>, vector<1x128xf32> -> vector<1x128xf32>
    %415 = arith.addf %410, %414 : vector<1x128xf32>
    %416 = vector.extract_strided_slice %409 {offsets = [1, 0], sizes = [1, 64], strides = [1, 1]} : vector<2x64xf32> to vector<1x64xf32>
    %c1_139 = arith.constant 1 : index
    %c0_140 = arith.constant 0 : index
    %c0_141 = arith.constant 0 : index
    %417 = vector.load %arg16[%c1_139, %c0_140, %c0_141] : memref<2x64x128xf32, #tpu.memory_space<vmem>>, vector<1x64x128xf32>
    %418 = vector.shape_cast %417 : vector<1x64x128xf32> to vector<64x128xf32>
    %cst_142 = arith.constant dense<0.000000e+00> : vector<1x128xf32>
    %419 = tpu.matmul %416, %418, %cst_142 {dimension_numbers = #tpu.dot_dimension_numbers<[1], [0], [0], [1], [0, 0, 1, 1], [], []>} : vector<1x64xf32>, vector<64x128xf32>, vector<1x128xf32> -> vector<1x128xf32>
    %420 = arith.addf %415, %419 : vector<1x128xf32>
    %c0_143 = arith.constant 0 : index
    %c0_144 = arith.constant 0 : index
    %c0_145 = arith.constant 0 : index
    %421 = vector.load %arg25[%c0_143, %c0_144, %c0_145] : memref<1x1x128xf32, #tpu.memory_space<vmem>>, vector<1x1x128xf32>
    %422 = vector.shape_cast %421 : vector<1x1x128xf32> to vector<1x128xf32>
    %423 = vector.shape_cast %420 : vector<1x128xf32> to vector<1x1x128xf32>
    tpu.vector_store %arg25[%c0_143, %c0_144, %c0_145], %423 {strides = array<i32>} : memref<1x1x128xf32, #tpu.memory_space<vmem>>, vector<1x1x128xf32>,
    %c0_146 = arith.constant 0 : index
    %c0_147 = arith.constant 0 : index
    %424 = vector.load %arg18[%c0_146, %c0_147] : memref<1x8xf32, #tpu.memory_space<vmem>>, vector<1x8xf32>
    %cst_148 = arith.constant dense<0.000000e+00> : vector<1x64xf32>
    %425 = tpu.matmul %424, %399, %cst_148 {dimension_numbers = #tpu.dot_dimension_numbers<[1], [0], [0], [1], [0, 0, 1, 1], [], []>} : vector<1x8xf32>, vector<8x64xf32>, vector<1x64xf32> -> vector<1x64xf32>
    %c0_149 = arith.constant 0 : index
    %c0_150 = arith.constant 0 : index
    %426 = vector.load %arg19[%c0_149, %c0_150] : memref<1x1xf32, #tpu.memory_space<vmem>>, vector<1x1xf32>
    %427 = vector.broadcast %426 : vector<1x1xf32> to vector<1x64xf32>
    %428 = arith.mulf %425, %427 : vector<1x64xf32>
    %c0_151 = arith.constant 0 : index
    %c0_152 = arith.constant 0 : index
    %429 = vector.load %arg20[%c0_151, %c0_152] : memref<1x1xf32, #tpu.memory_space<vmem>>, vector<1x1xf32>
    %430 = vector.broadcast %429 : vector<1x1xf32> to vector<1x64xf32>
    %431 = arith.addf %428, %430 : vector<1x64xf32>
    %cst_153 = arith.constant 0.000000e+00 : f32
    %432 = vector.broadcast %cst_153 : f32 to vector<1x64xf32>
    %433 = arith.maximumf %431, %432 : vector<1x64xf32>
    %c0_154 = arith.constant 0 : index
    %c0_155 = arith.constant 0 : index
    %434 = vector.load %arg21[%c0_154, %c0_155] : memref<64x16xf32, #tpu.memory_space<vmem>>, vector<64x16xf32>
    %cst_156 = arith.constant dense<0.000000e+00> : vector<1x16xf32>
    %435 = tpu.matmul %433, %434, %cst_156 {dimension_numbers = #tpu.dot_dimension_numbers<[1], [0], [0], [1], [0, 0, 1, 1], [], []>} : vector<1x64xf32>, vector<64x16xf32>, vector<1x16xf32> -> vector<1x16xf32>
    %c0_157 = arith.constant 0 : index
    %c0_158 = arith.constant 0 : index
    %436 = vector.load %arg22[%c0_157, %c0_158] : memref<1x16xf32, #tpu.memory_space<vmem>>, vector<1x16xf32>
    %437 = arith.addf %435, %436 : vector<1x16xf32>
    %c0_159 = arith.constant 0 : index
    %c0_160 = arith.constant 0 : index
    %438 = vector.load %arg23[%c0_159, %c0_160] : memref<16x1xf32, #tpu.memory_space<vmem>>, vector<16x1xf32>
    %cst_161 = arith.constant dense<0.000000e+00> : vector<1x1xf32>
    %439 = tpu.matmul %437, %438, %cst_161 {dimension_numbers = #tpu.dot_dimension_numbers<[1], [0], [0], [1], [0, 0, 1, 1], [], []>} : vector<1x16xf32>, vector<16x1xf32>, vector<1x1xf32> -> vector<1x1xf32>
    %c0_162 = arith.constant 0 : index
    %c0_163 = arith.constant 0 : index
    %440 = vector.load %arg24[%c0_162, %c0_163] : memref<1x1xf32, #tpu.memory_space<vmem>>, vector<1x1xf32>
    %441 = arith.addf %439, %440 : vector<1x1xf32>
    %442 = math.tanh %441 : vector<1x1xf32>
    %c0_164 = arith.constant 0 : index
    %c0_165 = arith.constant 0 : index
    %c0_166 = arith.constant 0 : index
    %443 = vector.load %arg26[%c0_164, %c0_165, %c0_166] : memref<1x1x1xf32, #tpu.memory_space<vmem>>, vector<1x1x1xf32>
    %444 = vector.shape_cast %443 : vector<1x1x1xf32> to vector<1x1xf32>
    %445 = vector.shape_cast %442 : vector<1x1xf32> to vector<1x1x1xf32>
    tpu.vector_store %arg26[%c0_164, %c0_165, %c0_166], %445 {strides = array<i32>} : memref<1x1x1xf32, #tpu.memory_space<vmem>>, vector<1x1x1xf32>,
    return
  }
  func.func @transform_0(%arg0: i32) -> (i32, i32, i32) {
    %c0_i32 = arith.constant 0 : i32
    %c0_i32_0 = arith.constant 0 : i32
    %c0_i32_1 = arith.constant 0 : i32
    return %arg0, %c0_i32, %c0_i32_0 : i32, i32, i32
  }
  func.func @transform_1(%arg0: i32) -> (i32, i32, i32) {
    %c0_i32 = arith.constant 0 : i32
    %c0_i32_0 = arith.constant 0 : i32
    %c0_i32_1 = arith.constant 0 : i32
    %c0_i32_2 = arith.constant 0 : i32
    return %c0_i32, %c0_i32_0, %c0_i32_1 : i32, i32, i32
  }
  func.func @transform_2(%arg0: i32) -> (i32, i32) {
    %c0_i32 = arith.constant 0 : i32
    %c0_i32_0 = arith.constant 0 : i32
    %c0_i32_1 = arith.constant 0 : i32
    return %c0_i32, %c0_i32_0 : i32, i32
  }
  func.func @transform_3(%arg0: i32) -> (i32, i32) {
    %c0_i32 = arith.constant 0 : i32
    %c0_i32_0 = arith.constant 0 : i32
    %c0_i32_1 = arith.constant 0 : i32
    return %c0_i32, %c0_i32_0 : i32, i32
  }
  func.func @transform_4(%arg0: i32) -> (i32, i32, i32, i32) {
    %c0_i32 = arith.constant 0 : i32
    %c0_i32_0 = arith.constant 0 : i32
    %c0_i32_1 = arith.constant 0 : i32
    %c0_i32_2 = arith.constant 0 : i32
    %c0_i32_3 = arith.constant 0 : i32
    return %c0_i32, %c0_i32_0, %c0_i32_1, %c0_i32_2 : i32, i32, i32, i32
  }
  func.func @transform_5(%arg0: i32) -> (i32, i32, i32) {
    %c0_i32 = arith.constant 0 : i32
    %c0_i32_0 = arith.constant 0 : i32
    %c0_i32_1 = arith.constant 0 : i32
    %c0_i32_2 = arith.constant 0 : i32
    return %c0_i32, %c0_i32_0, %c0_i32_1 : i32, i32, i32
  }
  func.func @transform_6(%arg0: i32) -> (i32, i32, i32) {
    %c0_i32 = arith.constant 0 : i32
    %c0_i32_0 = arith.constant 0 : i32
    %c0_i32_1 = arith.constant 0 : i32
    %c0_i32_2 = arith.constant 0 : i32
    return %c0_i32, %c0_i32_0, %c0_i32_1 : i32, i32, i32
  }
  func.func @transform_7(%arg0: i32) -> (i32, i32, i32, i32) {
    %c0_i32 = arith.constant 0 : i32
    %c0_i32_0 = arith.constant 0 : i32
    %c0_i32_1 = arith.constant 0 : i32
    %c0_i32_2 = arith.constant 0 : i32
    %c0_i32_3 = arith.constant 0 : i32
    return %c0_i32, %c0_i32_0, %c0_i32_1, %c0_i32_2 : i32, i32, i32, i32
  }
  func.func @transform_8(%arg0: i32) -> (i32, i32, i32) {
    %c0_i32 = arith.constant 0 : i32
    %c0_i32_0 = arith.constant 0 : i32
    %c0_i32_1 = arith.constant 0 : i32
    %c0_i32_2 = arith.constant 0 : i32
    return %c0_i32, %c0_i32_0, %c0_i32_1 : i32, i32, i32
  }
  func.func @transform_9(%arg0: i32) -> (i32, i32, i32) {
    %c0_i32 = arith.constant 0 : i32
    %c0_i32_0 = arith.constant 0 : i32
    %c0_i32_1 = arith.constant 0 : i32
    %c0_i32_2 = arith.constant 0 : i32
    return %c0_i32, %c0_i32_0, %c0_i32_1 : i32, i32, i32
  }
  func.func @transform_10(%arg0: i32) -> (i32, i32, i32) {
    %c0_i32 = arith.constant 0 : i32
    %c0_i32_0 = arith.constant 0 : i32
    %c0_i32_1 = arith.constant 0 : i32
    %c0_i32_2 = arith.constant 0 : i32
    return %c0_i32, %c0_i32_0, %c0_i32_1 : i32, i32, i32
  }
  func.func @transform_11(%arg0: i32) -> (i32, i32, i32) {
    %c0_i32 = arith.constant 0 : i32
    %c0_i32_0 = arith.constant 0 : i32
    %c0_i32_1 = arith.constant 0 : i32
    %c0_i32_2 = arith.constant 0 : i32
    return %c0_i32, %c0_i32_0, %c0_i32_1 : i32, i32, i32
  }
  func.func @transform_12(%arg0: i32) -> (i32, i32) {
    %c0_i32 = arith.constant 0 : i32
    %c0_i32_0 = arith.constant 0 : i32
    %c0_i32_1 = arith.constant 0 : i32
    return %c0_i32, %c0_i32_0 : i32, i32
  }
  func.func @transform_13(%arg0: i32) -> (i32, i32) {
    %c0_i32 = arith.constant 0 : i32
    %c0_i32_0 = arith.constant 0 : i32
    %c0_i32_1 = arith.constant 0 : i32
    return %c0_i32, %c0_i32_0 : i32, i32
  }
  func.func @transform_14(%arg0: i32) -> (i32, i32) {
    %c0_i32 = arith.constant 0 : i32
    %c0_i32_0 = arith.constant 0 : i32
    %c0_i32_1 = arith.constant 0 : i32
    return %c0_i32, %c0_i32_0 : i32, i32
  }
  func.func @transform_15(%arg0: i32) -> (i32, i32, i32) {
    %c0_i32 = arith.constant 0 : i32
    %c0_i32_0 = arith.constant 0 : i32
    %c0_i32_1 = arith.constant 0 : i32
    %c0_i32_2 = arith.constant 0 : i32
    return %c0_i32, %c0_i32_0, %c0_i32_1 : i32, i32, i32
  }
  func.func @transform_16(%arg0: i32) -> (i32, i32) {
    %c0_i32 = arith.constant 0 : i32
    %c0_i32_0 = arith.constant 0 : i32
    %c0_i32_1 = arith.constant 0 : i32
    return %c0_i32, %c0_i32_0 : i32, i32
  }
  func.func @transform_17(%arg0: i32) -> (i32, i32) {
    %c0_i32 = arith.constant 0 : i32
    %c0_i32_0 = arith.constant 0 : i32
    %c0_i32_1 = arith.constant 0 : i32
    return %c0_i32, %c0_i32_0 : i32, i32
  }
  func.func @transform_18(%arg0: i32) -> (i32, i32) {
    %c0_i32 = arith.constant 0 : i32
    %c0_i32_0 = arith.constant 0 : i32
    %c0_i32_1 = arith.constant 0 : i32
    return %c0_i32, %c0_i32_0 : i32, i32
  }
  func.func @transform_19(%arg0: i32) -> (i32, i32) {
    %c0_i32 = arith.constant 0 : i32
    %c0_i32_0 = arith.constant 0 : i32
    %c0_i32_1 = arith.constant 0 : i32
    return %c0_i32, %c0_i32_0 : i32, i32
  }
  func.func @transform_20(%arg0: i32) -> (i32, i32) {
    %c0_i32 = arith.constant 0 : i32
    %c0_i32_0 = arith.constant 0 : i32
    %c0_i32_1 = arith.constant 0 : i32
    return %c0_i32, %c0_i32_0 : i32, i32
  }
  func.func @transform_21(%arg0: i32) -> (i32, i32) {
    %c0_i32 = arith.constant 0 : i32
    %c0_i32_0 = arith.constant 0 : i32
    %c0_i32_1 = arith.constant 0 : i32
    return %c0_i32, %c0_i32_0 : i32, i32
  }
  func.func @transform_22(%arg0: i32) -> (i32, i32) {
    %c0_i32 = arith.constant 0 : i32
    %c0_i32_0 = arith.constant 0 : i32
    %c0_i32_1 = arith.constant 0 : i32
    return %c0_i32, %c0_i32_0 : i32, i32
  }
  func.func @transform_23(%arg0: i32) -> (i32, i32) {
    %c0_i32 = arith.constant 0 : i32
    %c0_i32_0 = arith.constant 0 : i32
    %c0_i32_1 = arith.constant 0 : i32
    return %c0_i32, %c0_i32_0 : i32, i32
  }
  func.func @transform_24(%arg0: i32) -> (i32, i32, i32) {
    %c0_i32 = arith.constant 0 : i32
    %c0_i32_0 = arith.constant 0 : i32
    %c0_i32_1 = arith.constant 0 : i32
    return %arg0, %c0_i32, %c0_i32_0 : i32, i32, i32
  }
  func.func @transform_25(%arg0: i32) -> (i32, i32, i32) {
    %c0_i32 = arith.constant 0 : i32
    %c0_i32_0 = arith.constant 0 : i32
    %c0_i32_1 = arith.constant 0 : i32
    return %arg0, %c0_i32, %c0_i32_0 : i32, i32, i32
  }
}

</mosaic_0001>

<llo_original>
// kernel: stm_forward.1
$region0: #{stm_forward.1}
  #allocation0 [shape = 'u32[]', space=smem, size = 0x4, offset = 0x4, fixed_abs, tag = 'smem constant byte address 0x4 - core index']
  #allocation1 [shape = 'u32[72,128]{1,0:T(1,128)}', space=vmem, size = 0x9000, scoped, tag = 'internal scratch']
  #allocation2 [shape = 'f32[1,1]{1,0:T(1,128)S(1)}', space=vmem, size = 0x200, scoped, tag = 'scoped memory for stm_forward.1']
  #allocation3 [shape = 'f32[1,1]{1,0:T(1,128)S(1)}', space=vmem, size = 0x200, scoped, tag = 'scoped memory for stm_forward.1']
  #allocation4 [shape = 'f32[1,1]{1,0:T(1,128)S(1)}', space=vmem, size = 0x200, scoped, tag = 'scoped memory for stm_forward.1']
  %s0 = inlined_call_operand.vmem [shape: f32[2,4,64], index: 0, kind: input, shape index: {}]
  %s1 = inlined_call_operand.vmem [shape: f32[9,8,4], index: 1, kind: input, shape index: {}]
  %s2 = inlined_call_operand.vmem [shape: f32[8,1], index: 2, kind: input, shape index: {}]
  %s3 = inlined_call_operand.vmem [shape: f32[8,1], index: 3, kind: input, shape index: {}]
  %s4 = inlined_call_operand.vmem [shape: f32[2,9,8,8], index: 4, kind: input, shape index: {}]
  %s5 = inlined_call_operand.vmem [shape: f32[2,8,1], index: 5, kind: input, shape index: {}]
  %s6 = inlined_call_operand.vmem [shape: f32[2,8,1], index: 6, kind: input, shape index: {}]
  %s7 = inlined_call_operand.vmem [shape: f32[2,9,8,8], index: 7, kind: input, shape index: {}]
  %s8 = inlined_call_operand.vmem [shape: f32[2,8,1], index: 8, kind: input, shape index: {}]
  %s9 = inlined_call_operand.vmem [shape: f32[2,8,1], index: 9, kind: input, shape index: {}]
  %s10 = inlined_call_operand.vmem [shape: f32[2,8,8], index: 10, kind: input, shape index: {}]
  %s11 = inlined_call_operand.vmem [shape: f32[2,8,1], index: 11, kind: input, shape index: {}]
  %s12 = inlined_call_operand.vmem [shape: f32[2,8], index: 12, kind: input, shape index: {}]
  %s13 = inlined_call_operand.vmem [shape: f32[2,1], index: 13, kind: input, shape index: {}]
  %s14 = inlined_call_operand.vmem [shape: f32[2,1], index: 14, kind: input, shape index: {}]
  %s15 = inlined_call_operand.vmem [shape: f32[2,64,128], index: 15, kind: input, shape index: {}]
  %s16 = inlined_call_operand.vmem [shape: f32[1,128], index: 16, kind: input, shape index: {}]
  %s17 = inlined_call_operand.vmem [shape: f32[1,8], index: 17, kind: input, shape index: {}]
  %s18 = inlined_call_operand.<no memory space> [shape: f32[1,1], index: 18, kind: input, shape index: {}]
  %s19 = inlined_call_operand.<no memory space> [shape: f32[1,1], index: 19, kind: input, shape index: {}]
  %s20 = inlined_call_operand.vmem [shape: f32[64,16], index: 20, kind: input, shape index: {}]
  %s21 = inlined_call_operand.vmem [shape: f32[1,16], index: 21, kind: input, shape index: {}]
  %s22 = inlined_call_operand.vmem [shape: f32[16,1], index: 22, kind: input, shape index: {}]
  %s23 = inlined_call_operand.<no memory space> [shape: f32[1,1], index: 23, kind: input, shape index: {}]
  %s24 = inlined_call_operand.hbm [shape: f32[2,1,128], index: 24, kind: output, shape index: {0}]
  %s25 = inlined_call_operand.vmem [shape: f32[2,1,1], index: 25, kind: output, shape index: {1}]
  %26 = xla_tuple %s24, %s25
  %s27 = sld [smem:[#allocation0]]
  $region137: #{stm_forward.1} parent=0
    _
  %s29 = ssub.s32 1, %s27
  %s30 = scalar_select 0, %s29, %s27
  %v31 = vstv %s18
  %32 = vst [vmem:[#allocation2] sm:$0x1] %v31
  %v33 = vstv %s19
  %34 = vst [vmem:[#allocation3] sm:$0x1] %v33
  %v35 = vstv %s23
  %36 = vst [vmem:[#allocation4] sm:$0x1] %v35
  $region1: #{stm_forward.1} parent=0
    #allocation5 [shape = 'u8[1024]{0}', space=vmem, size = 0x400, scoped, tag = 'output window, operand 0']
    #allocation6 [shape = 's32[2]{0}', space=sflag, size = 0x8, scoped, tag = 'scoped memory for stm_forward.1']
    %37 = vsyncpa [#allocation6], 0
    %s38 = scalar_lea.sflag [#allocation6], 1
    %39 = vsyncpa %s38, 0
    loop: start=0, step=1, limit=4
    $region2: #{stm_forward.1} parent=1 // loop_pre_header
      _
    $region3: #{stm_forward.1} parent=1 // loop_header
      %s41 = sphi 0, %s45
      %p42 = scmp.ge.s32.totalorder %s41, 4
      %s51 = sphi 0, %s53
      %s54 = sphi 0, %s51
      %s55 = sphi 0, %s54
      %s71 = sphi 0, %s55
      %s75 = sphi 0, %s75
      %s77 = sphi 0, %s75
      %s78 = sphi 0, %s77
      %s92 = sphi 0, %s78
      %s96 = sphi 0, %s96
      %s98 = sphi 0, %s96
      %s99 = sphi 0, %s98
      %s113 = sphi 0, %s99
      %s117 = sphi 0, %s117
      %s119 = sphi 0, %s117
      %s120 = sphi 0, %s119
      %s134 = sphi 0, %s120
      %s138 = sphi 0, %s138
      %s140 = sphi 0, %s138
      %s141 = sphi 0, %s140
      %s155 = sphi 0, %s141
      %s159 = sphi 0, %s159
      %s161 = sphi 0, %s159
      %s162 = sphi 0, %s161
      %s176 = sphi 0, %s162
      %s180 = sphi 0, %s180
      %s182 = sphi 0, %s180
      %s183 = sphi 0, %s182
      %s197 = sphi 0, %s183
      %s201 = sphi 0, %s201
      %s203 = sphi 0, %s201
      %s204 = sphi 0, %s203
      %s218 = sphi 0, %s204
      %s222 = sphi 0, %s222
      %s224 = sphi 0, %s222
      %s225 = sphi 0, %s224
      %s239 = sphi 0, %s225
      %s243 = sphi 0, %s243
      %s245 = sphi 0, %s243
      %s246 = sphi 0, %s245
      %s260 = sphi 0, %s246
      %s264 = sphi 0, %s264
      %s266 = sphi 0, %s264
      %s267 = sphi 0, %s266
      %s281 = sphi 0, %s267
      %s285 = sphi 0, %s285
      %s287 = sphi 0, %s285
      %s288 = sphi 0, %s287
      %s302 = sphi 0, %s288
      %s306 = sphi 0, %s306
      %s308 = sphi 0, %s306
      %s309 = sphi 0, %s308
      %s323 = sphi 0, %s309
      %s327 = sphi 0, %s327
      %s329 = sphi 0, %s327
      %s330 = sphi 0, %s329
      %s344 = sphi 0, %s330
      %s348 = sphi 0, %s348
      %s350 = sphi 0, %s348
      %s351 = sphi 0, %s350
      %s365 = sphi 0, %s351
      %s369 = sphi 0, %s369
      %s371 = sphi 0, %s369
      %s372 = sphi 0, %s371
      %s386 = sphi 0, %s372
      %s390 = sphi 0, %s390
      %s392 = sphi 0, %s390
      %s393 = sphi 0, %s392
      %s407 = sphi 0, %s393
      %s411 = sphi 0, %s411
      %s413 = sphi 0, %s411
      %s414 = sphi 0, %s413
      %s428 = sphi 0, %s414
      %s432 = sphi 0, %s432
      %s434 = sphi 0, %s432
      %s435 = sphi 0, %s434
      %s449 = sphi 0, %s435
      %s453 = sphi 0, %s453
      %s455 = sphi 0, %s453
      %s456 = sphi 0, %s455
      %s470 = sphi 0, %s456
      %s474 = sphi 0, %s474
      %s476 = sphi 0, %s474
      %s477 = sphi 0, %s476
      %s491 = sphi 0, %s477
      %s495 = sphi 0, %s495
      %s497 = sphi 0, %s495
      %s498 = sphi 0, %s497
      %s512 = sphi 0, %s498
      %s516 = sphi 0, %s516
      %s518 = sphi 0, %s516
      %s519 = sphi 0, %s518
      %s533 = sphi 0, %s519
      %s537 = sphi 0, %s537
      %s539 = sphi 0, %s537
      %s540 = sphi 0, %s539
      %s554 = sphi 0, %s540
      %s560 = sphi 0, %s562
      %s563 = sphi 0, %s560
      %s564 = sphi 0, %s563
      %s580 = sphi 0, %s564
      %s586 = sphi 0, %s588
      %s589 = sphi 0, %s586
      %s590 = sphi 0, %s589
      %s606 = sphi 0, %s590
    $region4: #{stm_forward.1} parent=1 // loop_header_branch
      %44 = sbr.rel (%p42) target = $region8
    $region5: #{stm_forward.1} parent=1 // loop_body
      %s46 = ssub.s32 %s41, 1
      %s47 = ssub.s32 %s41, 2
      %s48 = sadd.s32 %s41, 1
      %s49 = ssub.s32 %s41, %s48
      %p50 = scmp.eq.s32.totalorder %s49, 0
      %s52 = sadd.s32 %s51, 1
      %s53 = scalar_select %p50, %s51, %s52
      %p56 = pneg %p50
      %p57 = scmp.eq.s32.totalorder %s41, 1
      %p58 = por %p56, %p57
      %p59 = scmp.ne.s32.totalorder %s51, %s54
      %p60 = scmp.eq.s32.totalorder %s41, 0
      %p61 = por %p59, %p60
      %p62 = scmp.ne.s32.totalorder %s51, %s54
      %p63 = scmp.eq.s32.totalorder %s46, 1
      %p64 = por %p62, %p63
      %p65 = scmp.ne.s32.totalorder %s54, %s55
      %p66 = scmp.eq.s32.totalorder %s46, 0
      %p67 = por %p65, %p66
      %p68 = scmp.ne.s32.totalorder %s54, %s55
      %p69 = scmp.eq.s32.totalorder %s47, 1
      %p70 = por %p68, %p69
      %p72 = scmp.ne.s32.totalorder %s55, %s71
      %p73 = scmp.eq.s32.totalorder %s47, 0
      %p74 = por %p72, %p73
      %s76 = sadd.s32 %s75, 1
      %p79 = scmp.eq.s32.totalorder %s41, 1
      %p80 = scmp.ne.s32.totalorder %s75, %s77
      %p81 = scmp.eq.s32.totalorder %s41, 0
      %p82 = por %p80, %p81
      %p83 = scmp.ne.s32.totalorder %s75, %s77
      %p84 = scmp.eq.s32.totalorder %s46, 1
      %p85 = por %p83, %p84
      %p86 = scmp.ne.s32.totalorder %s77, %s78
      %p87 = scmp.eq.s32.totalorder %s46, 0
      %p88 = por %p86, %p87
      %p89 = scmp.ne.s32.totalorder %s77, %s78
      %p90 = scmp.eq.s32.totalorder %s47, 1
      %p91 = por %p89, %p90
      %p93 = scmp.ne.s32.totalorder %s78, %s92
      %p94 = scmp.eq.s32.totalorder %s47, 0
      %p95 = por %p93, %p94
      %s97 = sadd.s32 %s96, 1
      %p100 = scmp.eq.s32.totalorder %s41, 1
      %p101 = scmp.ne.s32.totalorder %s96, %s98
      %p102 = scmp.eq.s32.totalorder %s41, 0
      %p103 = por %p101, %p102
      %p104 = scmp.ne.s32.totalorder %s96, %s98
      %p105 = scmp.eq.s32.totalorder %s46, 1
      %p106 = por %p104, %p105
      %p107 = scmp.ne.s32.totalorder %s98, %s99
      %p108 = scmp.eq.s32.totalorder %s46, 0
      %p109 = por %p107, %p108
      %p110 = scmp.ne.s32.totalorder %s98, %s99
      %p111 = scmp.eq.s32.totalorder %s47, 1
      %p112 = por %p110, %p111
      %p114 = scmp.ne.s32.totalorder %s99, %s113
      %p115 = scmp.eq.s32.totalorder %s47, 0
      %p116 = por %p114, %p115
      %s118 = sadd.s32 %s117, 1
      %p121 = scmp.eq.s32.totalorder %s41, 1
      %p122 = scmp.ne.s32.totalorder %s117, %s119
      %p123 = scmp.eq.s32.totalorder %s41, 0
      %p124 = por %p122, %p123
      %p125 = scmp.ne.s32.totalorder %s117, %s119
      %p126 = scmp.eq.s32.totalorder %s46, 1
      %p127 = por %p125, %p126
      %p128 = scmp.ne.s32.totalorder %s119, %s120
      %p129 = scmp.eq.s32.totalorder %s46, 0
      %p130 = por %p128, %p129
      %p131 = scmp.ne.s32.totalorder %s119, %s120
      %p132 = scmp.eq.s32.totalorder %s47, 1
      %p133 = por %p131, %p132
      %p135 = scmp.ne.s32.totalorder %s120, %s134
      %p136 = scmp.eq.s32.totalorder %s47, 0
      %p137 = por %p135, %p136
      %s139 = sadd.s32 %s138, 1
      %p142 = scmp.eq.s32.totalorder %s41, 1
      %p143 = scmp.ne.s32.totalorder %s138, %s140
      %p144 = scmp.eq.s32.totalorder %s41, 0
      %p145 = por %p143, %p144
      %p146 = scmp.ne.s32.totalorder %s138, %s140
      %p147 = scmp.eq.s32.totalorder %s46, 1
      %p148 = por %p146, %p147
      %p149 = scmp.ne.s32.totalorder %s140, %s141
      %p150 = scmp.eq.s32.totalorder %s46, 0
      %p151 = por %p149, %p150
      %p152 = scmp.ne.s32.totalorder %s140, %s141
      %p153 = scmp.eq.s32.totalorder %s47, 1
      %p154 = por %p152, %p153
      %p156 = scmp.ne.s32.totalorder %s141, %s155
      %p157 = scmp.eq.s32.totalorder %s47, 0
      %p158 = por %p156, %p157
      %s160 = sadd.s32 %s159, 1
      %p163 = scmp.eq.s32.totalorder %s41, 1
      %p164 = scmp.ne.s32.totalorder %s159, %s161
      %p165 = scmp.eq.s32.totalorder %s41, 0
      %p166 = por %p164, %p165
      %p167 = scmp.ne.s32.totalorder %s159, %s161
      %p168 = scmp.eq.s32.totalorder %s46, 1
      %p169 = por %p167, %p168
      %p170 = scmp.ne.s32.totalorder %s161, %s162
      %p171 = scmp.eq.s32.totalorder %s46, 0
      %p172 = por %p170, %p171
      %p173 = scmp.ne.s32.totalorder %s161, %s162
      %p174 = scmp.eq.s32.totalorder %s47, 1
      %p175 = por %p173, %p174
      %p177 = scmp.ne.s32.totalorder %s162, %s176
      %p178 = scmp.eq.s32.totalorder %s47, 0
      %p179 = por %p177, %p178
      %s181 = sadd.s32 %s180, 1
      %p184 = scmp.eq.s32.totalorder %s41, 1
      %p185 = scmp.ne.s32.totalorder %s180, %s182
      %p186 = scmp.eq.s32.totalorder %s41, 0
      %p187 = por %p185, %p186
      %p188 = scmp.ne.s32.totalorder %s180, %s182
      %p189 = scmp.eq.s32.totalorder %s46, 1
      %p190 = por %p188, %p189
      %p191 = scmp.ne.s32.totalorder %s182, %s183
      %p192 = scmp.eq.s32.totalorder %s46, 0
      %p193 = por %p191, %p192
      %p194 = scmp.ne.s32.totalorder %s182, %s183
      %p195 = scmp.eq.s32.totalorder %s47, 1
      %p196 = por %p194, %p195
      %p198 = scmp.ne.s32.totalorder %s183, %s197
      %p199 = scmp.eq.s32.totalorder %s47, 0
      %p200 = por %p198, %p199
      %s202 = sadd.s32 %s201, 1
      %p205 = scmp.eq.s32.totalorder %s41, 1
      %p206 = scmp.ne.s32.totalorder %s201, %s203
      %p207 = scmp.eq.s32.totalorder %s41, 0
      %p208 = por %p206, %p207
      %p209 = scmp.ne.s32.totalorder %s201, %s203
      %p210 = scmp.eq.s32.totalorder %s46, 1
      %p211 = por %p209, %p210
      %p212 = scmp.ne.s32.totalorder %s203, %s204
      %p213 = scmp.eq.s32.totalorder %s46, 0
      %p214 = por %p212, %p213
      %p215 = scmp.ne.s32.totalorder %s203, %s204
      %p216 = scmp.eq.s32.totalorder %s47, 1
      %p217 = por %p215, %p216
      %p219 = scmp.ne.s32.totalorder %s204, %s218
      %p220 = scmp.eq.s32.totalorder %s47, 0
      %p221 = por %p219, %p220
      %s223 = sadd.s32 %s222, 1
      %p226 = scmp.eq.s32.totalorder %s41, 1
      %p227 = scmp.ne.s32.totalorder %s222, %s224
      %p228 = scmp.eq.s32.totalorder %s41, 0
      %p229 = por %p227, %p228
      %p230 = scmp.ne.s32.totalorder %s222, %s224
      %p231 = scmp.eq.s32.totalorder %s46, 1
      %p232 = por %p230, %p231
      %p233 = scmp.ne.s32.totalorder %s224, %s225
      %p234 = scmp.eq.s32.totalorder %s46, 0
      %p235 = por %p233, %p234
      %p236 = scmp.ne.s32.totalorder %s224, %s225
      %p237 = scmp.eq.s32.totalorder %s47, 1
      %p238 = por %p236, %p237
      %p240 = scmp.ne.s32.totalorder %s225, %s239
      %p241 = scmp.eq.s32.totalorder %s47, 0
      %p242 = por %p240, %p241
      %s244 = sadd.s32 %s243, 1
      %p247 = scmp.eq.s32.totalorder %s41, 1
      %p248 = scmp.ne.s32.totalorder %s243, %s245
      %p249 = scmp.eq.s32.totalorder %s41, 0
      %p250 = por %p248, %p249
      %p251 = scmp.ne.s32.totalorder %s243, %s245
      %p252 = scmp.eq.s32.totalorder %s46, 1
      %p253 = por %p251, %p252
      %p254 = scmp.ne.s32.totalorder %s245, %s246
      %p255 = scmp.eq.s32.totalorder %s46, 0
      %p256 = por %p254, %p255
      %p257 = scmp.ne.s32.totalorder %s245, %s246
      %p258 = scmp.eq.s32.totalorder %s47, 1
      %p259 = por %p257, %p258
      %p261 = scmp.ne.s32.totalorder %s246, %s260
      %p262 = scmp.eq.s32.totalorder %s47, 0
      %p263 = por %p261, %p262
      %s265 = sadd.s32 %s264, 1
      %p268 = scmp.eq.s32.totalorder %s41, 1
      %p269 = scmp.ne.s32.totalorder %s264, %s266
      %p270 = scmp.eq.s32.totalorder %s41, 0
      %p271 = por %p269, %p270
      %p272 = scmp.ne.s32.totalorder %s264, %s266
      %p273 = scmp.eq.s32.totalorder %s46, 1
      %p274 = por %p272, %p273
      %p275 = scmp.ne.s32.totalorder %s266, %s267
      %p276 = scmp.eq.s32.totalorder %s46, 0
      %p277 = por %p275, %p276
      %p278 = scmp.ne.s32.totalorder %s266, %s267
      %p279 = scmp.eq.s32.totalorder %s47, 1
      %p280 = por %p278, %p279
      %p282 = scmp.ne.s32.totalorder %s267, %s281
      %p283 = scmp.eq.s32.totalorder %s47, 0
      %p284 = por %p282, %p283
      %s286 = sadd.s32 %s285, 1
      %p289 = scmp.eq.s32.totalorder %s41, 1
      %p290 = scmp.ne.s32.totalorder %s285, %s287
      %p291 = scmp.eq.s32.totalorder %s41, 0
      %p292 = por %p290, %p291
      %p293 = scmp.ne.s32.totalorder %s285, %s287
      %p294 = scmp.eq.s32.totalorder %s46, 1
      %p295 = por %p293, %p294
      %p296 = scmp.ne.s32.totalorder %s287, %s288
      %p297 = scmp.eq.s32.totalorder %s46, 0
      %p298 = por %p296, %p297
      %p299 = scmp.ne.s32.totalorder %s287, %s288
      %p300 = scmp.eq.s32.totalorder %s47, 1
      %p301 = por %p299, %p300
      %p303 = scmp.ne.s32.totalorder %s288, %s302
      %p304 = scmp.eq.s32.totalorder %s47, 0
      %p305 = por %p303, %p304
      %s307 = sadd.s32 %s306, 1
      %p310 = scmp.eq.s32.totalorder %s41, 1
      %p311 = scmp.ne.s32.totalorder %s306, %s308
      %p312 = scmp.eq.s32.totalorder %s41, 0
      %p313 = por %p311, %p312
      %p314 = scmp.ne.s32.totalorder %s306, %s308
      %p315 = scmp.eq.s32.totalorder %s46, 1
      %p316 = por %p314, %p315
      %p317 = scmp.ne.s32.totalorder %s308, %s309
      %p318 = scmp.eq.s32.totalorder %s46, 0
      %p319 = por %p317, %p318
      %p320 = scmp.ne.s32.totalorder %s308, %s309
      %p321 = scmp.eq.s32.totalorder %s47, 1
      %p322 = por %p320, %p321
      %p324 = scmp.ne.s32.totalorder %s309, %s323
      %p325 = scmp.eq.s32.totalorder %s47, 0
      %p326 = por %p324, %p325
      %s328 = sadd.s32 %s327, 1
      %p331 = scmp.eq.s32.totalorder %s41, 1
      %p332 = scmp.ne.s32.totalorder %s327, %s329
      %p333 = scmp.eq.s32.totalorder %s41, 0
      %p334 = por %p332, %p333
      %p335 = scmp.ne.s32.totalorder %s327, %s329
      %p336 = scmp.eq.s32.totalorder %s46, 1
      %p337 = por %p335, %p336
      %p338 = scmp.ne.s32.totalorder %s329, %s330
      %p339 = scmp.eq.s32.totalorder %s46, 0
      %p340 = por %p338, %p339
      %p341 = scmp.ne.s32.totalorder %s329, %s330
      %p342 = scmp.eq.s32.totalorder %s47, 1
      %p343 = por %p341, %p342
      %p345 = scmp.ne.s32.totalorder %s330, %s344
      %p346 = scmp.eq.s32.totalorder %s47, 0
      %p347 = por %p345, %p346
      %s349 = sadd.s32 %s348, 1
      %p352 = scmp.eq.s32.totalorder %s41, 1
      %p353 = scmp.ne.s32.totalorder %s348, %s350
      %p354 = scmp.eq.s32.totalorder %s41, 0
      %p355 = por %p353, %p354
      %p356 = scmp.ne.s32.totalorder %s348, %s350
      %p357 = scmp.eq.s32.totalorder %s46, 1
      %p358 = por %p356, %p357
      %p359 = scmp.ne.s32.totalorder %s350, %s351
      %p360 = scmp.eq.s32.totalorder %s46, 0
      %p361 = por %p359, %p360
      %p362 = scmp.ne.s32.totalorder %s350, %s351
      %p363 = scmp.eq.s32.totalorder %s47, 1
      %p364 = por %p362, %p363
      %p366 = scmp.ne.s32.totalorder %s351, %s365
      %p367 = scmp.eq.s32.totalorder %s47, 0
      %p368 = por %p366, %p367
      %s370 = sadd.s32 %s369, 1
      %p373 = scmp.eq.s32.totalorder %s41, 1
      %p374 = scmp.ne.s32.totalorder %s369, %s371
      %p375 = scmp.eq.s32.totalorder %s41, 0
      %p376 = por %p374, %p375
      %p377 = scmp.ne.s32.totalorder %s369, %s371
      %p378 = scmp.eq.s32.totalorder %s46, 1
      %p379 = por %p377, %p378
      %p380 = scmp.ne.s32.totalorder %s371, %s372
      %p381 = scmp.eq.s32.totalorder %s46, 0
      %p382 = por %p380, %p381
      %p383 = scmp.ne.s32.totalorder %s371, %s372
      %p384 = scmp.eq.s32.totalorder %s47, 1
      %p385 = por %p383, %p384
      %p387 = scmp.ne.s32.totalorder %s372, %s386
      %p388 = scmp.eq.s32.totalorder %s47, 0
      %p389 = por %p387, %p388
      %s391 = sadd.s32 %s390, 1
      %p394 = scmp.eq.s32.totalorder %s41, 1
      %p395 = scmp.ne.s32.totalorder %s390, %s392
      %p396 = scmp.eq.s32.totalorder %s41, 0
      %p397 = por %p395, %p396
      %p398 = scmp.ne.s32.totalorder %s390, %s392
      %p399 = scmp.eq.s32.totalorder %s46, 1
      %p400 = por %p398, %p399
      %p401 = scmp.ne.s32.totalorder %s392, %s393
      %p402 = scmp.eq.s32.totalorder %s46, 0
      %p403 = por %p401, %p402
      %p404 = scmp.ne.s32.totalorder %s392, %s393
      %p405 = scmp.eq.s32.totalorder %s47, 1
      %p406 = por %p404, %p405
      %p408 = scmp.ne.s32.totalorder %s393, %s407
      %p409 = scmp.eq.s32.totalorder %s47, 0
      %p410 = por %p408, %p409
      %s412 = sadd.s32 %s411, 1
      %p415 = scmp.eq.s32.totalorder %s41, 1
      %p416 = scmp.ne.s32.totalorder %s411, %s413
      %p417 = scmp.eq.s32.totalorder %s41, 0
      %p418 = por %p416, %p417
      %p419 = scmp.ne.s32.totalorder %s411, %s413
      %p420 = scmp.eq.s32.totalorder %s46, 1
      %p421 = por %p419, %p420
      %p422 = scmp.ne.s32.totalorder %s413, %s414
      %p423 = scmp.eq.s32.totalorder %s46, 0
      %p424 = por %p422, %p423
      %p425 = scmp.ne.s32.totalorder %s413, %s414
      %p426 = scmp.eq.s32.totalorder %s47, 1
      %p427 = por %p425, %p426
      %p429 = scmp.ne.s32.totalorder %s414, %s428
      %p430 = scmp.eq.s32.totalorder %s47, 0
      %p431 = por %p429, %p430
      %s433 = sadd.s32 %s432, 1
      %p436 = scmp.eq.s32.totalorder %s41, 1
      %p437 = scmp.ne.s32.totalorder %s432, %s434
      %p438 = scmp.eq.s32.totalorder %s41, 0
      %p439 = por %p437, %p438
      %p440 = scmp.ne.s32.totalorder %s432, %s434
      %p441 = scmp.eq.s32.totalorder %s46, 1
      %p442 = por %p440, %p441
      %p443 = scmp.ne.s32.totalorder %s434, %s435
      %p444 = scmp.eq.s32.totalorder %s46, 0
      %p445 = por %p443, %p444
      %p446 = scmp.ne.s32.totalorder %s434, %s435
      %p447 = scmp.eq.s32.totalorder %s47, 1
      %p448 = por %p446, %p447
      %p450 = scmp.ne.s32.totalorder %s435, %s449
      %p451 = scmp.eq.s32.totalorder %s47, 0
      %p452 = por %p450, %p451
      %s454 = sadd.s32 %s453, 1
      %p457 = scmp.eq.s32.totalorder %s41, 1
      %p458 = scmp.ne.s32.totalorder %s453, %s455
      %p459 = scmp.eq.s32.totalorder %s41, 0
      %p460 = por %p458, %p459
      %p461 = scmp.ne.s32.totalorder %s453, %s455
      %p462 = scmp.eq.s32.totalorder %s46, 1
      %p463 = por %p461, %p462
      %p464 = scmp.ne.s32.totalorder %s455, %s456
      %p465 = scmp.eq.s32.totalorder %s46, 0
      %p466 = por %p464, %p465
      %p467 = scmp.ne.s32.totalorder %s455, %s456
      %p468 = scmp.eq.s32.totalorder %s47, 1
      %p469 = por %p467, %p468
      %p471 = scmp.ne.s32.totalorder %s456, %s470
      %p472 = scmp.eq.s32.totalorder %s47, 0
      %p473 = por %p471, %p472
      %s475 = sadd.s32 %s474, 1
      %p478 = scmp.eq.s32.totalorder %s41, 1
      %p479 = scmp.ne.s32.totalorder %s474, %s476
      %p480 = scmp.eq.s32.totalorder %s41, 0
      %p481 = por %p479, %p480
      %p482 = scmp.ne.s32.totalorder %s474, %s476
      %p483 = scmp.eq.s32.totalorder %s46, 1
      %p484 = por %p482, %p483
      %p485 = scmp.ne.s32.totalorder %s476, %s477
      %p486 = scmp.eq.s32.totalorder %s46, 0
      %p487 = por %p485, %p486
      %p488 = scmp.ne.s32.totalorder %s476, %s477
      %p489 = scmp.eq.s32.totalorder %s47, 1
      %p490 = por %p488, %p489
      %p492 = scmp.ne.s32.totalorder %s477, %s491
      %p493 = scmp.eq.s32.totalorder %s47, 0
      %p494 = por %p492, %p493
      %s496 = sadd.s32 %s495, 1
      %p499 = scmp.eq.s32.totalorder %s41, 1
      %p500 = scmp.ne.s32.totalorder %s495, %s497
      %p501 = scmp.eq.s32.totalorder %s41, 0
      %p502 = por %p500, %p501
      %p503 = scmp.ne.s32.totalorder %s495, %s497
      %p504 = scmp.eq.s32.totalorder %s46, 1
      %p505 = por %p503, %p504
      %p506 = scmp.ne.s32.totalorder %s497, %s498
      %p507 = scmp.eq.s32.totalorder %s46, 0
      %p508 = por %p506, %p507
      %p509 = scmp.ne.s32.totalorder %s497, %s498
      %p510 = scmp.eq.s32.totalorder %s47, 1
      %p511 = por %p509, %p510
      %p513 = scmp.ne.s32.totalorder %s498, %s512
      %p514 = scmp.eq.s32.totalorder %s47, 0
      %p515 = por %p513, %p514
      %s517 = sadd.s32 %s516, 1
      %p520 = scmp.eq.s32.totalorder %s41, 1
      %p521 = scmp.ne.s32.totalorder %s516, %s518
      %p522 = scmp.eq.s32.totalorder %s41, 0
      %p523 = por %p521, %p522
      %p524 = scmp.ne.s32.totalorder %s516, %s518
      %p525 = scmp.eq.s32.totalorder %s46, 1
      %p526 = por %p524, %p525
      %p527 = scmp.ne.s32.totalorder %s518, %s519
      %p528 = scmp.eq.s32.totalorder %s46, 0
      %p529 = por %p527, %p528
      %p530 = scmp.ne.s32.totalorder %s518, %s519
      %p531 = scmp.eq.s32.totalorder %s47, 1
      %p532 = por %p530, %p531
      %p534 = scmp.ne.s32.totalorder %s519, %s533
      %p535 = scmp.eq.s32.totalorder %s47, 0
      %p536 = por %p534, %p535
      %s538 = sadd.s32 %s537, 1
      %p541 = scmp.eq.s32.totalorder %s41, 1
      %p542 = scmp.ne.s32.totalorder %s537, %s539
      %p543 = scmp.eq.s32.totalorder %s41, 0
      %p544 = por %p542, %p543
      %p545 = scmp.ne.s32.totalorder %s537, %s539
      %p546 = scmp.eq.s32.totalorder %s46, 1
      %p547 = por %p545, %p546
      %p548 = scmp.ne.s32.totalorder %s539, %s540
      %p549 = scmp.eq.s32.totalorder %s46, 0
      %p550 = por %p548, %p549
      %p551 = scmp.ne.s32.totalorder %s539, %s540
      %p552 = scmp.eq.s32.totalorder %s47, 1
      %p553 = por %p551, %p552
      %p555 = scmp.ne.s32.totalorder %s540, %s554
      %p556 = scmp.eq.s32.totalorder %s47, 0
      %p557 = por %p555, %p556
      %s558 = ssub.s32 %s41, %s48
      %p559 = scmp.eq.s32.totalorder %s558, 0
      %s561 = sadd.s32 %s560, 1
      %s562 = scalar_select %p559, %s560, %s561
      %p565 = pneg %p559
      %p566 = scmp.eq.s32.totalorder %s41, 1
      %p567 = por %p565, %p566
      %p568 = scmp.ne.s32.totalorder %s560, %s563
      %p569 = scmp.eq.s32.totalorder %s41, 0
      %p570 = por %p568, %p569
      %p571 = scmp.ne.s32.totalorder %s560, %s563
      %p572 = scmp.eq.s32.totalorder %s46, 1
      %p573 = por %p571, %p572
      %p574 = scmp.ne.s32.totalorder %s563, %s564
      %p575 = scmp.eq.s32.totalorder %s46, 0
      %p576 = por %p574, %p575
      %p577 = scmp.ne.s32.totalorder %s563, %s564
      %p578 = scmp.eq.s32.totalorder %s47, 1
      %p579 = por %p577, %p578
      %p581 = scmp.ne.s32.totalorder %s564, %s580
      %p582 = scmp.eq.s32.totalorder %s47, 0
      %p583 = por %p581, %p582
      %s584 = ssub.s32 %s41, %s48
      %p585 = scmp.eq.s32.totalorder %s584, 0
      %s587 = sadd.s32 %s586, 1
      %s588 = scalar_select %p585, %s586, %s587
      %p591 = pneg %p585
      %p592 = scmp.eq.s32.totalorder %s41, 1
      %p593 = por %p591, %p592
      %p594 = scmp.ne.s32.totalorder %s586, %s589
      %p595 = scmp.eq.s32.totalorder %s41, 0
      %p596 = por %p594, %p595
      %p597 = scmp.ne.s32.totalorder %s586, %s589
      %p598 = scmp.eq.s32.totalorder %s46, 1
      %p599 = por %p597, %p598
      %p600 = scmp.ne.s32.totalorder %s589, %s590
      %p601 = scmp.eq.s32.totalorder %s46, 0
      %p602 = por %p600, %p601
      %p603 = scmp.ne.s32.totalorder %s589, %s590
      %p604 = scmp.eq.s32.totalorder %s47, 1
      %p605 = por %p603, %p604
      %p607 = scmp.ne.s32.totalorder %s590, %s606
      %p608 = scmp.eq.s32.totalorder %s47, 0
      %p609 = por %p607, %p608
      %p610 = scmp.le.s32.totalorder 1, %s41
      %p611 = scmp.lt.s32.totalorder %s41, 3
      %p612 = pnand %p610, %p611
      %p613 = pneg %p612
      // Predicated region
      $region9: #{stm_forward.1} parent=5 // pred_check
        _
      $region10: #{stm_forward.1} parent=5 // pred_check_branch
        %615 = sbr.rel (%p612) target = $region12
      $region11: #{stm_forward.1} parent=5 // pred_region
        %s616 = ssub.s32 %s41, 1
        // Predicated region
        $region13: #{stm_forward.1} parent=11 // pred_check
          %p617 = pneg %p88
        $region14: #{stm_forward.1} parent=11 // pred_check_branch
          %619 = sbr.rel (%p617) target = $region16
        $region15: #{stm_forward.1} parent=11 // pred_region
          _
        $region16: #{stm_forward.1} parent=11 // pred_fallthru
          _
        // Predicated region
        $region17: #{stm_forward.1} parent=11 // pred_check
          %p620 = pneg %p109
        $region18: #{stm_forward.1} parent=11 // pred_check_branch
          %622 = sbr.rel (%p620) target = $region20
        $region19: #{stm_forward.1} parent=11 // pred_region
          _
        $region20: #{stm_forward.1} parent=11 // pred_fallthru
          _
        // Predicated region
        $region21: #{stm_forward.1} parent=11 // pred_check
          %p623 = pneg %p130
        $region22: #{stm_forward.1} parent=11 // pred_check_branch
          %625 = sbr.rel (%p623) target = $region24
        $region23: #{stm_forward.1} parent=11 // pred_region
          _
        $region24: #{stm_forward.1} parent=11 // pred_fallthru
          _
        // Predicated region
        $region25: #{stm_forward.1} parent=11 // pred_check
          %p626 = pneg %p151
        $region26: #{stm_forward.1} parent=11 // pred_check_branch
          %628 = sbr.rel (%p626) target = $region28
        $region27: #{stm_forward.1} parent=11 // pred_region
          _
        $region28: #{stm_forward.1} parent=11 // pred_fallthru
          _
        // Predicated region
        $region29: #{stm_forward.1} parent=11 // pred_check
          %p629 = pneg %p172
        $region30: #{stm_forward.1} parent=11 // pred_check_branch
          %631 = sbr.rel (%p629) target = $region32
        $region31: #{stm_forward.1} parent=11 // pred_region
          _
        $region32: #{stm_forward.1} parent=11 // pred_fallthru
          _
        // Predicated region
        $region33: #{stm_forward.1} parent=11 // pred_check
          %p632 = pneg %p193
        $region34: #{stm_forward.1} parent=11 // pred_check_branch
          %634 = sbr.rel (%p632) target = $region36
        $region35: #{stm_forward.1} parent=11 // pred_region
          _
        $region36: #{stm_forward.1} parent=11 // pred_fallthru
          _
        // Predicated region
        $region37: #{stm_forward.1} parent=11 // pred_check
          %p635 = pneg %p214
        $region38: #{stm_forward.1} parent=11 // pred_check_branch
          %637 = sbr.rel (%p635) target = $region40
        $region39: #{stm_forward.1} parent=11 // pred_region
          _
        $region40: #{stm_forward.1} parent=11 // pred_fallthru
          _
        // Predicated region
        $region41: #{stm_forward.1} parent=11 // pred_check
          %p638 = pneg %p235
        $region42: #{stm_forward.1} parent=11 // pred_check_branch
          %640 = sbr.rel (%p638) target = $region44
        $region43: #{stm_forward.1} parent=11 // pred_region
          _
        $region44: #{stm_forward.1} parent=11 // pred_fallthru
          _
        // Predicated region
        $region45: #{stm_forward.1} parent=11 // pred_check
          %p641 = pneg %p256
        $region46: #{stm_forward.1} parent=11 // pred_check_branch
          %643 = sbr.rel (%p641) target = $region48
        $region47: #{stm_forward.1} parent=11 // pred_region
          _
        $region48: #{stm_forward.1} parent=11 // pred_fallthru
          _
        // Predicated region
        $region49: #{stm_forward.1} parent=11 // pred_check
          %p644 = pneg %p277
        $region50: #{stm_forward.1} parent=11 // pred_check_branch
          %646 = sbr.rel (%p644) target = $region52
        $region51: #{stm_forward.1} parent=11 // pred_region
          _
        $region52: #{stm_forward.1} parent=11 // pred_fallthru
          _
        // Predicated region
        $region53: #{stm_forward.1} parent=11 // pred_check
          %p647 = pneg %p298
        $region54: #{stm_forward.1} parent=11 // pred_check_branch
          %649 = sbr.rel (%p647) target = $region56
        $region55: #{stm_forward.1} parent=11 // pred_region
          _
        $region56: #{stm_forward.1} parent=11 // pred_fallthru
          _
        // Predicated region
        $region57: #{stm_forward.1} parent=11 // pred_check
          %p650 = pneg %p319
        $region58: #{stm_forward.1} parent=11 // pred_check_branch
          %652 = sbr.rel (%p650) target = $region60
        $region59: #{stm_forward.1} parent=11 // pred_region
          _
        $region60: #{stm_forward.1} parent=11 // pred_fallthru
          _
        // Predicated region
        $region61: #{stm_forward.1} parent=11 // pred_check
          %p653 = pneg %p340
        $region62: #{stm_forward.1} parent=11 // pred_check_branch
          %655 = sbr.rel (%p653) target = $region64
        $region63: #{stm_forward.1} parent=11 // pred_region
          _
        $region64: #{stm_forward.1} parent=11 // pred_fallthru
          _
        // Predicated region
        $region65: #{stm_forward.1} parent=11 // pred_check
          %p656 = pneg %p361
        $region66: #{stm_forward.1} parent=11 // pred_check_branch
          %658 = sbr.rel (%p656) target = $region68
        $region67: #{stm_forward.1} parent=11 // pred_region
          _
        $region68: #{stm_forward.1} parent=11 // pred_fallthru
          _
        // Predicated region
        $region69: #{stm_forward.1} parent=11 // pred_check
          %p659 = pneg %p382
        $region70: #{stm_forward.1} parent=11 // pred_check_branch
          %661 = sbr.rel (%p659) target = $region72
        $region71: #{stm_forward.1} parent=11 // pred_region
          _
        $region72: #{stm_forward.1} parent=11 // pred_fallthru
          _
        // Predicated region
        $region73: #{stm_forward.1} parent=11 // pred_check
          %p662 = pneg %p403
        $region74: #{stm_forward.1} parent=11 // pred_check_branch
          %664 = sbr.rel (%p662) target = $region76
        $region75: #{stm_forward.1} parent=11 // pred_region
          _
        $region76: #{stm_forward.1} parent=11 // pred_fallthru
          _
        // Predicated region
        $region77: #{stm_forward.1} parent=11 // pred_check
          %p665 = pneg %p424
        $region78: #{stm_forward.1} parent=11 // pred_check_branch
          %667 = sbr.rel (%p665) target = $region80
        $region79: #{stm_forward.1} parent=11 // pred_region
          _
        $region80: #{stm_forward.1} parent=11 // pred_fallthru
          _
        // Predicated region
        $region81: #{stm_forward.1} parent=11 // pred_check
          %p668 = pneg %p445
        $region82: #{stm_forward.1} parent=11 // pred_check_branch
          %670 = sbr.rel (%p668) target = $region84
        $region83: #{stm_forward.1} parent=11 // pred_region
          _
        $region84: #{stm_forward.1} parent=11 // pred_fallthru
          _
        // Predicated region
        $region85: #{stm_forward.1} parent=11 // pred_check
          %p671 = pneg %p466
        $region86: #{stm_forward.1} parent=11 // pred_check_branch
          %673 = sbr.rel (%p671) target = $region88
        $region87: #{stm_forward.1} parent=11 // pred_region
          _
        $region88: #{stm_forward.1} parent=11 // pred_fallthru
          _
        // Predicated region
        $region89: #{stm_forward.1} parent=11 // pred_check
          %p674 = pneg %p487
        $region90: #{stm_forward.1} parent=11 // pred_check_branch
          %676 = sbr.rel (%p674) target = $region92
        $region91: #{stm_forward.1} parent=11 // pred_region
          _
        $region92: #{stm_forward.1} parent=11 // pred_fallthru
          _
        // Predicated region
        $region93: #{stm_forward.1} parent=11 // pred_check
          %p677 = pneg %p508
        $region94: #{stm_forward.1} parent=11 // pred_check_branch
          %679 = sbr.rel (%p677) target = $region96
        $region95: #{stm_forward.1} parent=11 // pred_region
          _
        $region96: #{stm_forward.1} parent=11 // pred_fallthru
          _
        // Predicated region
        $region97: #{stm_forward.1} parent=11 // pred_check
          %p680 = pneg %p529
        $region98: #{stm_forward.1} parent=11 // pred_check_branch
          %682 = sbr.rel (%p680) target = $region100
        $region99: #{stm_forward.1} parent=11 // pred_region
          _
        $region100: #{stm_forward.1} parent=11 // pred_fallthru
          _
        // Predicated region
        $region101: #{stm_forward.1} parent=11 // pred_check
          %p683 = pneg %p550
        $region102: #{stm_forward.1} parent=11 // pred_check_branch
          %685 = sbr.rel (%p683) target = $region104
        $region103: #{stm_forward.1} parent=11 // pred_region
          _
        $region104: #{stm_forward.1} parent=11 // pred_fallthru
          _
      $region12: #{stm_forward.1} parent=5 // pred_fallthru
        _
      %p686 = scmp.lt.s32.totalorder %s41, 2
      // Predicated region
      $region105: #{stm_forward.1} parent=5 // pred_check
        %p687 = pneg %p686
      $region106: #{stm_forward.1} parent=5 // pred_check_branch
        %689 = sbr.rel (%p687) target = $region108
      $region107: #{stm_forward.1} parent=5 // pred_region
        // Predicated region
        $region109: #{stm_forward.1} parent=107 // pred_check
          %p690 = pneg %p61
        $region110: #{stm_forward.1} parent=107 // pred_check_branch
          %692 = sbr.rel (%p690) target = $region112
        $region111: #{stm_forward.1} parent=107 // pred_region
          %p693 = scmp.lt.s32.totalorder %s41, 1
          %s694 = scalar_select %p693, %s41, 1
          %s695 = smul.addr %s694, 4
          %s696 = scalar_lea.vmem %s0, %s695
        $region112: #{stm_forward.1} parent=107 // pred_fallthru
          _
      $region108: #{stm_forward.1} parent=5 // pred_fallthru
        _
      %p697 = scmp.le.s32.totalorder 1, %s41
      %p698 = scmp.lt.s32.totalorder %s41, 3
      %p699 = pnand %p697, %p698
      %p700 = pneg %p699
      // Predicated region
      $region113: #{stm_forward.1} parent=5 // pred_check
        _
      $region114: #{stm_forward.1} parent=5 // pred_check_branch
        %702 = sbr.rel (%p699) target = $region116
      $region115: #{stm_forward.1} parent=5 // pred_region
        %s703 = ssub.s32 %s41, 1
        %p704 = scmp.lt.s32.totalorder %s46, 1
        %s705 = scalar_select %p704, %s46, 1
        %s706 = smul.addr %s705, 4
        %s707 = scalar_lea.vmem %s0, %s706
        %p708 = pneg %p67
        %p709 = pneg %p64
        %p710 = pneg %p88
        %p711 = pneg %p85
        %p712 = pneg %p109
        %p713 = pneg %p106
        %p714 = pneg %p130
        %p715 = pneg %p127
        %p716 = pneg %p151
        %p717 = pneg %p148
        %p718 = pneg %p172
        %p719 = pneg %p169
        %p720 = pneg %p193
        %p721 = pneg %p190
        %p722 = pneg %p214
        %p723 = pneg %p211
        %p724 = pneg %p235
        %p725 = pneg %p232
        %p726 = pneg %p256
        %p727 = pneg %p253
        %p728 = pneg %p277
        %p729 = pneg %p274
        %p730 = pneg %p298
        %p731 = pneg %p295
        %p732 = pneg %p319
        %p733 = pneg %p316
        %p734 = pneg %p340
        %p735 = pneg %p337
        %p736 = pneg %p361
        %p737 = pneg %p358
        %p738 = pneg %p382
        %p739 = pneg %p379
        %p740 = pneg %p403
        %p741 = pneg %p400
        %p742 = pneg %p424
        %p743 = pneg %p421
        %p744 = pneg %p445
        %p745 = pneg %p442
        %p746 = pneg %p466
        %p747 = pneg %p463
        %p748 = pneg %p487
        %p749 = pneg %p484
        %p750 = pneg %p508
        %p751 = pneg %p505
        %p752 = pneg %p529
        %p753 = pneg %p526
        %p754 = pneg %p550
        %p755 = pneg %p547
        %p756 = pneg %p576
        %p757 = pneg %p573
        %s758 = sand.u32 %s563, 1
        %s759 = scalar_lea.sflag [#allocation6], %s758
        %s760 = sand.u32 %s563, 1
        %s761 = scalar_lea.vmem [#allocation5], %s760
        %p762 = pneg %p602
        %p763 = pneg %p599
        %p764 = scmp.lt.s32.totalorder %s46, 1
        %s765 = scalar_select %p764, %s46, 1
        %s766 = scalar_lea.vmem %s25, %s765
        %p767 = scmp.lt.s32.totalorder %s46, 1
        %s768 = scalar_select %p767, %s46, 1
        %s769 = smul.addr %s768, 4
        %s770 = scalar_lea.vmem %s0, %s769
        %p771 = scmp.lt.s32.totalorder %s46, 1
        %s772 = scalar_select %p771, %s46, 1
        %s773 = scalar_lea.vmem %s25, %s772
        %v774 = vlaneseq
        %v775 = vand.u32 %v774, 127
        %vm776 = vcmp.lt.s32.totalorder %v775, 0
        %v777 = vsub.s32 0, %v775
        %v778 = vsel %vm776, %v777, %v775
        %v779 = vshrl.u32 %v778, 3
        %v780 = vand.u32 %v778, 7
        %v781 = vsub.s32 0, %v780
        %v782 = vsel %vm776, %v781, %v780
        %vm783 = vcmp.ne.s32.totalorder %v782, 0
        %vm784 = vcmp.lt.s32.totalorder %v782, 0
        %vm785 = vmand %vm784, %vm783
        %v786 = vadd.s32 %v782, 8
        %v787 = vsel %vm785, %v786, %v782
        %vm788 = vcmp.ge.s32.totalorder %v787, 1
        %v789 = vsel %vm788, 1, 0
        %v790 = vcvt.s32.f32 %v789
        %vm791 = vcmp.le.s32.totalorder %v787, 6
        %v792 = vsel %vm791, 1, 0
        %v793 = vcvt.s32.f32 %v792
        %v794 = vld [vmem:[%s770] sm:$0xf]
        %v795 = vld [vmem:[%s1] sm:$0xff]
        %v796 = vld [vmem:[%s1 + $0x8] sm:$0xff]
        %v797 = vld [vmem:[%s1 + $0x10] sm:$0xff]
        %v798 = vld [vmem:[%s1 + $0x18] sm:$0xff]
        %v799 = vld [vmem:[%s1 + $0x20] sm:$0xff]
        %v800 = vld [vmem:[%s1 + $0x28] sm:$0xff]
        %v801 = vld [vmem:[%s1 + $0x30] sm:$0xff]
        %v802 = vld [vmem:[%s1 + $0x38] sm:$0xff]
        %v803 = vld [vmem:[%s1 + $0x40] sm:$0xff]
        %805 = vrot.lane.b32.xlu0 %v794, 9
        %v806 = vpop.permute.xlu0 %805
        %vm808 = vcmask 72704
        %v809 = vsel %vm808, 0.0, %v806
        %vm810 = vcmask 596992
        %v811 = vsel %vm810, %v809, 0.0
        %v812 = vmul.f32 %v811, %v790
        %814 = vrot.lane.b32.xlu0 %v811, 127
        %v815 = vpop.permute.xlu0 %814
        %vm816 = vcmask 31744
        %v818 = vsel %vm816, %v796, 0
        %vm820 = vcmask 1043456
        %v821 = vsel %vm820, %v815, 0
        %823 = vmatpush.msra.mxu0 0.0
        %824 = vmatpush.msra.mxu0 0.0
        %825 = vmatpush.msra.mxu0 0.0
        %826 = vmatpush.msra.mxu0 0.0
        %827 = vmatpush.msra.mxu0 0.0
        %828 = vmatpush.msra.mxu0 0.0
        %829 = vmatpush.msra.mxu0 0.0
        %830 = vmatpush.msra.mxu0 0.0
        %831 = vmatpush.msra.mxu0 0.0
        %832 = vmatpush.msra.mxu0 0.0
        %833 = vmatpush.msra.mxu0 0.0
        %834 = vmatpush.msra.mxu0 0.0
        %835 = vmatpush.msra.mxu0 0.0
        %836 = vmatpush.msra.mxu0 0.0
        %837 = vmatpush.msra.mxu0 0.0
        %838 = vmatpush.msra.mxu0 %v821
        %839 = vmatmul.f32.gmra.mxu0 %v818
        %v840 = vpop.f32.mrf.mxu0
        %v841 = vadd.f32 0.0, %v840
        %842 = vdwg.mxu0
        %v844 = vsel %vm816, %v795, 0
        %v847 = vsel %vm820, %v812, 0
        %849 = vmatpush.msra.mxu0 0.0
        %850 = vmatpush.msra.mxu0 0.0
        %851 = vmatpush.msra.mxu0 0.0
        %852 = vmatpush.msra.mxu0 0.0
        %853 = vmatpush.msra.mxu0 0.0
        %854 = vmatpush.msra.mxu0 0.0
        %855 = vmatpush.msra.mxu0 0.0
        %856 = vmatpush.msra.mxu0 0.0
        %857 = vmatpush.msra.mxu0 0.0
        %858 = vmatpush.msra.mxu0 0.0
        %859 = vmatpush.msra.mxu0 0.0
        %860 = vmatpush.msra.mxu0 0.0
        %861 = vmatpush.msra.mxu0 0.0
        %862 = vmatpush.msra.mxu0 0.0
        %863 = vmatpush.msra.mxu0 0.0
        %864 = vmatpush.msra.mxu0 %v847
        %865 = vmatmul.f32.gmra.mxu0 %v844
        %v866 = vpop.f32.mrf.mxu0
        %v867 = vadd.f32 %v841, %v866
        %868 = vdwg.mxu0
        %870 = vrot.lane.b32.xlu0 %v793, 2
        %v871 = vpop.permute.xlu0 %870
        %v873 = vmul.f32 %v811, %v871
        %875 = vrot.lane.b32.xlu0 %v873, 126
        %v876 = vpop.permute.xlu0 %875
        %v878 = vsel %vm816, %v797, 0
        %v880 = vsel %vm820, %v876, 0
        %882 = vmatpush.msra.mxu0 0.0
        %883 = vmatpush.msra.mxu0 0.0
        %884 = vmatpush.msra.mxu0 0.0
        %885 = vmatpush.msra.mxu0 0.0
        %886 = vmatpush.msra.mxu0 0.0
        %887 = vmatpush.msra.mxu0 0.0
        %888 = vmatpush.msra.mxu0 0.0
        %889 = vmatpush.msra.mxu0 0.0
        %890 = vmatpush.msra.mxu0 0.0
        %891 = vmatpush.msra.mxu0 0.0
        %892 = vmatpush.msra.mxu0 0.0
        %893 = vmatpush.msra.mxu0 0.0
        %894 = vmatpush.msra.mxu0 0.0
        %895 = vmatpush.msra.mxu0 0.0
        %896 = vmatpush.msra.mxu0 0.0
        %897 = vmatpush.msra.mxu0 %v880
        %898 = vmatmul.f32.gmra.mxu0 %v878
        %v899 = vpop.f32.mrf.mxu0
        %v900 = vadd.f32 0.0, %v899
        %901 = vdwg.mxu0
        %v902 = vadd.f32 %v867, %v900
        %904 = vrot.lane.b32.xlu0 %v790, 8
        %v905 = vpop.permute.xlu0 %904
        %v907 = vmul.f32 %v811, %v905
        %909 = vrot.lane.b32.xlu0 %v907, 120
        %v910 = vpop.permute.xlu0 %909
        %v912 = vsel %vm816, %v798, 0
        %v914 = vsel %vm820, %v910, 0
        %916 = vmatpush.msra.mxu0 0.0
        %917 = vmatpush.msra.mxu0 0.0
        %918 = vmatpush.msra.mxu0 0.0
        %919 = vmatpush.msra.mxu0 0.0
        %920 = vmatpush.msra.mxu0 0.0
        %921 = vmatpush.msra.mxu0 0.0
        %922 = vmatpush.msra.mxu0 0.0
        %923 = vmatpush.msra.mxu0 0.0
        %924 = vmatpush.msra.mxu0 0.0
        %925 = vmatpush.msra.mxu0 0.0
        %926 = vmatpush.msra.mxu0 0.0
        %927 = vmatpush.msra.mxu0 0.0
        %928 = vmatpush.msra.mxu0 0.0
        %929 = vmatpush.msra.mxu0 0.0
        %930 = vmatpush.msra.mxu0 0.0
        %931 = vmatpush.msra.mxu0 %v914
        %932 = vmatmul.f32.gmra.mxu0 %v912
        %v933 = vpop.f32.mrf.mxu0
        %v934 = vadd.f32 0.0, %v933
        %935 = vdwg.mxu0
        %v936 = vadd.f32 %v902, %v934
        %937 = vrot.lane.b32.xlu0 %v811, 119
        %v938 = vpop.permute.xlu0 %937
        %v940 = vsel %vm816, %v799, 0
        %v942 = vsel %vm820, %v938, 0
        %944 = vmatpush.msra.mxu0 0.0
        %945 = vmatpush.msra.mxu0 0.0
        %946 = vmatpush.msra.mxu0 0.0
        %947 = vmatpush.msra.mxu0 0.0
        %948 = vmatpush.msra.mxu0 0.0
        %949 = vmatpush.msra.mxu0 0.0
        %950 = vmatpush.msra.mxu0 0.0
        %951 = vmatpush.msra.mxu0 0.0
        %952 = vmatpush.msra.mxu0 0.0
        %953 = vmatpush.msra.mxu0 0.0
        %954 = vmatpush.msra.mxu0 0.0
        %955 = vmatpush.msra.mxu0 0.0
        %956 = vmatpush.msra.mxu0 0.0
        %957 = vmatpush.msra.mxu0 0.0
        %958 = vmatpush.msra.mxu0 0.0
        %959 = vmatpush.msra.mxu0 %v942
        %960 = vmatmul.f32.gmra.mxu0 %v940
        %v961 = vpop.f32.mrf.mxu0
        %v962 = vadd.f32 0.0, %v961
        %963 = vdwg.mxu0
        %v964 = vadd.f32 %v936, %v962
        %965 = vrot.lane.b32.xlu0 %v793, 10
        %v966 = vpop.permute.xlu0 %965
        %v968 = vmul.f32 %v811, %v966
        %970 = vrot.lane.b32.xlu0 %v968, 118
        %v971 = vpop.permute.xlu0 %970
        %v973 = vsel %vm816, %v800, 0
        %v975 = vsel %vm820, %v971, 0
        %977 = vmatpush.msra.mxu0 0.0
        %978 = vmatpush.msra.mxu0 0.0
        %979 = vmatpush.msra.mxu0 0.0
        %980 = vmatpush.msra.mxu0 0.0
        %981 = vmatpush.msra.mxu0 0.0
        %982 = vmatpush.msra.mxu0 0.0
        %983 = vmatpush.msra.mxu0 0.0
        %984 = vmatpush.msra.mxu0 0.0
        %985 = vmatpush.msra.mxu0 0.0
        %986 = vmatpush.msra.mxu0 0.0
        %987 = vmatpush.msra.mxu0 0.0
        %988 = vmatpush.msra.mxu0 0.0
        %989 = vmatpush.msra.mxu0 0.0
        %990 = vmatpush.msra.mxu0 0.0
        %991 = vmatpush.msra.mxu0 0.0
        %992 = vmatpush.msra.mxu0 %v975
        %993 = vmatmul.f32.gmra.mxu0 %v973
        %v994 = vpop.f32.mrf.mxu0
        %v995 = vadd.f32 0.0, %v994
        %996 = vdwg.mxu0
        %v997 = vadd.f32 %v964, %v995
        %998 = vrot.lane.b32.xlu0 %v790, 16
        %v999 = vpop.permute.xlu0 %998
        %v1001 = vmul.f32 %v811, %v999
        %1003 = vrot.lane.b32.xlu0 %v1001, 112
        %v1004 = vpop.permute.xlu0 %1003
        %v1006 = vsel %vm816, %v801, 0
        %v1008 = vsel %vm820, %v1004, 0
        %1010 = vmatpush.msra.mxu0 0.0
        %1011 = vmatpush.msra.mxu0 0.0
        %1012 = vmatpush.msra.mxu0 0.0
        %1013 = vmatpush.msra.mxu0 0.0
        %1014 = vmatpush.msra.mxu0 0.0
        %1015 = vmatpush.msra.mxu0 0.0
        %1016 = vmatpush.msra.mxu0 0.0
        %1017 = vmatpush.msra.mxu0 0.0
        %1018 = vmatpush.msra.mxu0 0.0
        %1019 = vmatpush.msra.mxu0 0.0
        %1020 = vmatpush.msra.mxu0 0.0
        %1021 = vmatpush.msra.mxu0 0.0
        %1022 = vmatpush.msra.mxu0 0.0
        %1023 = vmatpush.msra.mxu0 0.0
        %1024 = vmatpush.msra.mxu0 0.0
        %1025 = vmatpush.msra.mxu0 %v1008
        %1026 = vmatmul.f32.gmra.mxu0 %v1006
        %v1027 = vpop.f32.mrf.mxu0
        %v1028 = vadd.f32 0.0, %v1027
        %1029 = vdwg.mxu0
        %v1030 = vadd.f32 %v997, %v1028
        %1031 = vrot.lane.b32.xlu0 %v811, 111
        %v1032 = vpop.permute.xlu0 %1031
        %v1034 = vsel %vm816, %v802, 0
        %v1036 = vsel %vm820, %v1032, 0
        %1038 = vmatpush.msra.mxu0 0.0
        %1039 = vmatpush.msra.mxu0 0.0
        %1040 = vmatpush.msra.mxu0 0.0
        %1041 = vmatpush.msra.mxu0 0.0
        %1042 = vmatpush.msra.mxu0 0.0
        %1043 = vmatpush.msra.mxu0 0.0
        %1044 = vmatpush.msra.mxu0 0.0
        %1045 = vmatpush.msra.mxu0 0.0
        %1046 = vmatpush.msra.mxu0 0.0
        %1047 = vmatpush.msra.mxu0 0.0
        %1048 = vmatpush.msra.mxu0 0.0
        %1049 = vmatpush.msra.mxu0 0.0
        %1050 = vmatpush.msra.mxu0 0.0
        %1051 = vmatpush.msra.mxu0 0.0
        %1052 = vmatpush.msra.mxu0 0.0
        %1053 = vmatpush.msra.mxu0 %v1036
        %1054 = vmatmul.f32.gmra.mxu0 %v1034
        %v1055 = vpop.f32.mrf.mxu0
        %v1056 = vadd.f32 0.0, %v1055
        %1057 = vdwg.mxu0
        %v1058 = vadd.f32 %v1030, %v1056
        %1059 = vrot.lane.b32.xlu0 %v793, 18
        %v1060 = vpop.permute.xlu0 %1059
        %v1062 = vmul.f32 %v811, %v1060
        %1064 = vrot.lane.b32.xlu0 %v1062, 110
        %v1065 = vpop.permute.xlu0 %1064
        %v1067 = vsel %vm816, %v803, 0
        %v1069 = vsel %vm820, %v1065, 0
        %1071 = vmatpush.msra.mxu0 0.0
        %1072 = vmatpush.msra.mxu0 0.0
        %1073 = vmatpush.msra.mxu0 0.0
        %1074 = vmatpush.msra.mxu0 0.0
        %1075 = vmatpush.msra.mxu0 0.0
        %1076 = vmatpush.msra.mxu0 0.0
        %1077 = vmatpush.msra.mxu0 0.0
        %1078 = vmatpush.msra.mxu0 0.0
        %1079 = vmatpush.msra.mxu0 0.0
        %1080 = vmatpush.msra.mxu0 0.0
        %1081 = vmatpush.msra.mxu0 0.0
        %1082 = vmatpush.msra.mxu0 0.0
        %1083 = vmatpush.msra.mxu0 0.0
        %1084 = vmatpush.msra.mxu0 0.0
        %1085 = vmatpush.msra.mxu0 0.0
        %1086 = vmatpush.msra.mxu0 %v1069
        %1087 = vmatmul.f32.gmra.mxu0 %v1067
        %v1088 = vpop.f32.mrf.mxu0
        %v1089 = vadd.f32 0.0, %v1088
        %1090 = vdwg.mxu0
        %v1091 = vadd.f32 %v1058, %v1089
        %v1092 = vld [vmem:[%s2] sm:$0xff]
        %1094 = vset.pattern.permute.xlu0 0
        %1095 = vperm.xlu0 %1094, %v1092
        %v1096 = vpop.permute.xlu0 %1095
        %v1098 = vmul.f32 %v1091, %v1096
        %v1099 = vld [vmem:[%s3] sm:$0xff]
        %1101 = vset.pattern.permute.xlu0 0
        %1102 = vperm.xlu0 %1101, %v1099
        %v1103 = vpop.permute.xlu0 %1102
        %v1105 = vadd.f32 %v1098, %v1103
        %v1106 = vmax.f32 %v1105, 0.0
        %v1107 = vld [vmem:[%s4] sm:$0xff]
        %v1108 = vld [vmem:[%s4 + $0x8] sm:$0xff]
        %v1109 = vld [vmem:[%s4 + $0x10] sm:$0xff]
        %v1110 = vld [vmem:[%s4 + $0x18] sm:$0xff]
        %v1111 = vld [vmem:[%s4 + $0x20] sm:$0xff]
        %v1112 = vld [vmem:[%s4 + $0x28] sm:$0xff]
        %v1113 = vld [vmem:[%s4 + $0x30] sm:$0xff]
        %v1114 = vld [vmem:[%s4 + $0x38] sm:$0xff]
        %v1115 = vld [vmem:[%s4 + $0x40] sm:$0xff]
        %1117 = vrot.lane.b32.xlu0 %v1106, 9
        %v1118 = vpop.permute.xlu0 %1117
        %v1120 = vsel %vm808, 0.0, %v1118
        %v1121 = vsel %vm810, %v1120, 0.0
        %v1122 = vmul.f32 %v1121, %v790
        %1124 = vrot.lane.b32.xlu0 %v1121, 127
        %v1125 = vpop.permute.xlu0 %1124
        %vm1127 = vcmask 64512
        %v1129 = vsel %vm1127, %v1108, 0
        %1131 = vmatpush.msra.mxu0 0.0
        %1132 = vmatpush.msra.mxu0 0.0
        %1133 = vmatpush.msra.mxu0 0.0
        %1134 = vmatpush.msra.mxu0 0.0
        %1135 = vmatpush.msra.mxu0 0.0
        %1136 = vmatpush.msra.mxu0 0.0
        %1137 = vmatpush.msra.mxu0 0.0
        %1138 = vmatpush.msra.mxu0 0.0
        %1139 = vmatpush.msra.mxu0 0.0
        %1140 = vmatpush.msra.mxu0 0.0
        %1141 = vmatpush.msra.mxu0 0.0
        %1142 = vmatpush.msra.mxu0 0.0
        %1143 = vmatpush.msra.mxu0 0.0
        %1144 = vmatpush.msra.mxu0 0.0
        %1145 = vmatpush.msra.mxu0 0.0
        %1146 = vmatpush.msra.mxu0 %v1125
        %1147 = vmatmul.f32.gmra.mxu0 %v1129
        %v1148 = vpop.f32.mrf.mxu0
        %v1149 = vadd.f32 0.0, %v1148
        %1150 = vdwg.mxu0
        %v1152 = vsel %vm1127, %v1107, 0
        %1154 = vmatpush.msra.mxu0 0.0
        %1155 = vmatpush.msra.mxu0 0.0
        %1156 = vmatpush.msra.mxu0 0.0
        %1157 = vmatpush.msra.mxu0 0.0
        %1158 = vmatpush.msra.mxu0 0.0
        %1159 = vmatpush.msra.mxu0 0.0
        %1160 = vmatpush.msra.mxu0 0.0
        %1161 = vmatpush.msra.mxu0 0.0
        %1162 = vmatpush.msra.mxu0 0.0
        %1163 = vmatpush.msra.mxu0 0.0
        %1164 = vmatpush.msra.mxu0 0.0
        %1165 = vmatpush.msra.mxu0 0.0
        %1166 = vmatpush.msra.mxu0 0.0
        %1167 = vmatpush.msra.mxu0 0.0
        %1168 = vmatpush.msra.mxu0 0.0
        %1169 = vmatpush.msra.mxu0 %v1122
        %1170 = vmatmul.f32.gmra.mxu0 %v1152
        %v1171 = vpop.f32.mrf.mxu0
        %v1172 = vadd.f32 %v1149, %v1171
        %1173 = vdwg.mxu0
        %v1174 = vmul.f32 %v1121, %v871
        %1176 = vrot.lane.b32.xlu0 %v1174, 126
        %v1177 = vpop.permute.xlu0 %1176
        %v1180 = vsel %vm1127, %v1109, 0
        %1182 = vmatpush.msra.mxu0 0.0
        %1183 = vmatpush.msra.mxu0 0.0
        %1184 = vmatpush.msra.mxu0 0.0
        %1185 = vmatpush.msra.mxu0 0.0
        %1186 = vmatpush.msra.mxu0 0.0
        %1187 = vmatpush.msra.mxu0 0.0
        %1188 = vmatpush.msra.mxu0 0.0
        %1189 = vmatpush.msra.mxu0 0.0
        %1190 = vmatpush.msra.mxu0 0.0
        %1191 = vmatpush.msra.mxu0 0.0
        %1192 = vmatpush.msra.mxu0 0.0
        %1193 = vmatpush.msra.mxu0 0.0
        %1194 = vmatpush.msra.mxu0 0.0
        %1195 = vmatpush.msra.mxu0 0.0
        %1196 = vmatpush.msra.mxu0 0.0
        %1197 = vmatpush.msra.mxu0 %v1177
        %1198 = vmatmul.f32.gmra.mxu0 %v1180
        %v1199 = vpop.f32.mrf.mxu0
        %v1200 = vadd.f32 0.0, %v1199
        %1201 = vdwg.mxu0
        %v1202 = vadd.f32 %v1172, %v1200
        %v1203 = vmul.f32 %v1121, %v905
        %1205 = vrot.lane.b32.xlu0 %v1203, 120
        %v1206 = vpop.permute.xlu0 %1205
        %v1209 = vsel %vm1127, %v1110, 0
        %1211 = vmatpush.msra.mxu0 0.0
        %1212 = vmatpush.msra.mxu0 0.0
        %1213 = vmatpush.msra.mxu0 0.0
        %1214 = vmatpush.msra.mxu0 0.0
        %1215 = vmatpush.msra.mxu0 0.0
        %1216 = vmatpush.msra.mxu0 0.0
        %1217 = vmatpush.msra.mxu0 0.0
        %1218 = vmatpush.msra.mxu0 0.0
        %1219 = vmatpush.msra.mxu0 0.0
        %1220 = vmatpush.msra.mxu0 0.0
        %1221 = vmatpush.msra.mxu0 0.0
        %1222 = vmatpush.msra.mxu0 0.0
        %1223 = vmatpush.msra.mxu0 0.0
        %1224 = vmatpush.msra.mxu0 0.0
        %1225 = vmatpush.msra.mxu0 0.0
        %1226 = vmatpush.msra.mxu0 %v1206
        %1227 = vmatmul.f32.gmra.mxu0 %v1209
        %v1228 = vpop.f32.mrf.mxu0
        %v1229 = vadd.f32 0.0, %v1228
        %1230 = vdwg.mxu0
        %v1231 = vadd.f32 %v1202, %v1229
        %1232 = vrot.lane.b32.xlu0 %v1121, 119
        %v1233 = vpop.permute.xlu0 %1232
        %v1236 = vsel %vm1127, %v1111, 0
        %1238 = vmatpush.msra.mxu0 0.0
        %1239 = vmatpush.msra.mxu0 0.0
        %1240 = vmatpush.msra.mxu0 0.0
        %1241 = vmatpush.msra.mxu0 0.0
        %1242 = vmatpush.msra.mxu0 0.0
        %1243 = vmatpush.msra.mxu0 0.0
        %1244 = vmatpush.msra.mxu0 0.0
        %1245 = vmatpush.msra.mxu0 0.0
        %1246 = vmatpush.msra.mxu0 0.0
        %1247 = vmatpush.msra.mxu0 0.0
        %1248 = vmatpush.msra.mxu0 0.0
        %1249 = vmatpush.msra.mxu0 0.0
        %1250 = vmatpush.msra.mxu0 0.0
        %1251 = vmatpush.msra.mxu0 0.0
        %1252 = vmatpush.msra.mxu0 0.0
        %1253 = vmatpush.msra.mxu0 %v1233
        %1254 = vmatmul.f32.gmra.mxu0 %v1236
        %v1255 = vpop.f32.mrf.mxu0
        %v1256 = vadd.f32 0.0, %v1255
        %1257 = vdwg.mxu0
        %v1258 = vadd.f32 %v1231, %v1256
        %v1259 = vmul.f32 %v1121, %v966
        %1261 = vrot.lane.b32.xlu0 %v1259, 118
        %v1262 = vpop.permute.xlu0 %1261
        %v1265 = vsel %vm1127, %v1112, 0
        %1267 = vmatpush.msra.mxu0 0.0
        %1268 = vmatpush.msra.mxu0 0.0
        %1269 = vmatpush.msra.mxu0 0.0
        %1270 = vmatpush.msra.mxu0 0.0
        %1271 = vmatpush.msra.mxu0 0.0
        %1272 = vmatpush.msra.mxu0 0.0
        %1273 = vmatpush.msra.mxu0 0.0
        %1274 = vmatpush.msra.mxu0 0.0
        %1275 = vmatpush.msra.mxu0 0.0
        %1276 = vmatpush.msra.mxu0 0.0
        %1277 = vmatpush.msra.mxu0 0.0
        %1278 = vmatpush.msra.mxu0 0.0
        %1279 = vmatpush.msra.mxu0 0.0
        %1280 = vmatpush.msra.mxu0 0.0
        %1281 = vmatpush.msra.mxu0 0.0
        %1282 = vmatpush.msra.mxu0 %v1262
        %1283 = vmatmul.f32.gmra.mxu0 %v1265
        %v1284 = vpop.f32.mrf.mxu0
        %v1285 = vadd.f32 0.0, %v1284
        %1286 = vdwg.mxu0
        %v1287 = vadd.f32 %v1258, %v1285
        %v1288 = vmul.f32 %v1121, %v999
        %1290 = vrot.lane.b32.xlu0 %v1288, 112
        %v1291 = vpop.permute.xlu0 %1290
        %v1294 = vsel %vm1127, %v1113, 0
        %1296 = vmatpush.msra.mxu0 0.0
        %1297 = vmatpush.msra.mxu0 0.0
        %1298 = vmatpush.msra.mxu0 0.0
        %1299 = vmatpush.msra.mxu0 0.0
        %1300 = vmatpush.msra.mxu0 0.0
        %1301 = vmatpush.msra.mxu0 0.0
        %1302 = vmatpush.msra.mxu0 0.0
        %1303 = vmatpush.msra.mxu0 0.0
        %1304 = vmatpush.msra.mxu0 0.0
        %1305 = vmatpush.msra.mxu0 0.0
        %1306 = vmatpush.msra.mxu0 0.0
        %1307 = vmatpush.msra.mxu0 0.0
        %1308 = vmatpush.msra.mxu0 0.0
        %1309 = vmatpush.msra.mxu0 0.0
        %1310 = vmatpush.msra.mxu0 0.0
        %1311 = vmatpush.msra.mxu0 %v1291
        %1312 = vmatmul.f32.gmra.mxu0 %v1294
        %v1313 = vpop.f32.mrf.mxu0
        %v1314 = vadd.f32 0.0, %v1313
        %1315 = vdwg.mxu0
        %v1316 = vadd.f32 %v1287, %v1314
        %1317 = vrot.lane.b32.xlu0 %v1121, 111
        %v1318 = vpop.permute.xlu0 %1317
        %v1321 = vsel %vm1127, %v1114, 0
        %1323 = vmatpush.msra.mxu0 0.0
        %1324 = vmatpush.msra.mxu0 0.0
        %1325 = vmatpush.msra.mxu0 0.0
        %1326 = vmatpush.msra.mxu0 0.0
        %1327 = vmatpush.msra.mxu0 0.0
        %1328 = vmatpush.msra.mxu0 0.0
        %1329 = vmatpush.msra.mxu0 0.0
        %1330 = vmatpush.msra.mxu0 0.0
        %1331 = vmatpush.msra.mxu0 0.0
        %1332 = vmatpush.msra.mxu0 0.0
        %1333 = vmatpush.msra.mxu0 0.0
        %1334 = vmatpush.msra.mxu0 0.0
        %1335 = vmatpush.msra.mxu0 0.0
        %1336 = vmatpush.msra.mxu0 0.0
        %1337 = vmatpush.msra.mxu0 0.0
        %1338 = vmatpush.msra.mxu0 %v1318
        %1339 = vmatmul.f32.gmra.mxu0 %v1321
        %v1340 = vpop.f32.mrf.mxu0
        %v1341 = vadd.f32 0.0, %v1340
        %1342 = vdwg.mxu0
        %v1343 = vadd.f32 %v1316, %v1341
        %v1344 = vmul.f32 %v1121, %v1060
        %1346 = vrot.lane.b32.xlu0 %v1344, 110
        %v1347 = vpop.permute.xlu0 %1346
        %v1350 = vsel %vm1127, %v1115, 0
        %1352 = vmatpush.msra.mxu0 0.0
        %1353 = vmatpush.msra.mxu0 0.0
        %1354 = vmatpush.msra.mxu0 0.0
        %1355 = vmatpush.msra.mxu0 0.0
        %1356 = vmatpush.msra.mxu0 0.0
        %1357 = vmatpush.msra.mxu0 0.0
        %1358 = vmatpush.msra.mxu0 0.0
        %1359 = vmatpush.msra.mxu0 0.0
        %1360 = vmatpush.msra.mxu0 0.0
        %1361 = vmatpush.msra.mxu0 0.0
        %1362 = vmatpush.msra.mxu0 0.0
        %1363 = vmatpush.msra.mxu0 0.0
        %1364 = vmatpush.msra.mxu0 0.0
        %1365 = vmatpush.msra.mxu0 0.0
        %1366 = vmatpush.msra.mxu0 0.0
        %1367 = vmatpush.msra.mxu0 %v1347
        %1368 = vmatmul.f32.gmra.mxu0 %v1350
        %v1369 = vpop.f32.mrf.mxu0
        %v1370 = vadd.f32 0.0, %v1369
        %1371 = vdwg.mxu0
        %v1372 = vadd.f32 %v1343, %v1370
        %v1373 = vld [vmem:[%s5] sm:$0xff]
        %1375 = vset.pattern.permute.xlu0 0
        %1376 = vperm.xlu0 %1375, %v1373
        %v1377 = vpop.permute.xlu0 %1376
        %v1379 = vmul.f32 %v1372, %v1377
        %v1380 = vld [vmem:[%s6] sm:$0xff]
        %1382 = vset.pattern.permute.xlu0 0
        %1383 = vperm.xlu0 %1382, %v1380
        %v1384 = vpop.permute.xlu0 %1383
        %v1386 = vadd.f32 %v1379, %v1384
        %v1387 = vmax.f32 %v1386, 0.0
        %v1388 = vld [vmem:[%s7] sm:$0xff]
        %v1389 = vld [vmem:[%s7 + $0x8] sm:$0xff]
        %v1390 = vld [vmem:[%s7 + $0x10] sm:$0xff]
        %v1391 = vld [vmem:[%s7 + $0x18] sm:$0xff]
        %v1392 = vld [vmem:[%s7 + $0x20] sm:$0xff]
        %v1393 = vld [vmem:[%s7 + $0x28] sm:$0xff]
        %v1394 = vld [vmem:[%s7 + $0x30] sm:$0xff]
        %v1395 = vld [vmem:[%s7 + $0x38] sm:$0xff]
        %v1396 = vld [vmem:[%s7 + $0x40] sm:$0xff]
        %1398 = vrot.lane.b32.xlu0 %v1387, 9
        %v1399 = vpop.permute.xlu0 %1398
        %v1401 = vsel %vm808, 0.0, %v1399
        %v1402 = vsel %vm810, %v1401, 0.0
        %v1403 = vmul.f32 %v1402, %v790
        %1405 = vrot.lane.b32.xlu0 %v1402, 127
        %v1406 = vpop.permute.xlu0 %1405
        %v1409 = vsel %vm1127, %v1389, 0
        %1411 = vmatpush.msra.mxu0 0.0
        %1412 = vmatpush.msra.mxu0 0.0
        %1413 = vmatpush.msra.mxu0 0.0
        %1414 = vmatpush.msra.mxu0 0.0
        %1415 = vmatpush.msra.mxu0 0.0
        %1416 = vmatpush.msra.mxu0 0.0
        %1417 = vmatpush.msra.mxu0 0.0
        %1418 = vmatpush.msra.mxu0 0.0
        %1419 = vmatpush.msra.mxu0 0.0
        %1420 = vmatpush.msra.mxu0 0.0
        %1421 = vmatpush.msra.mxu0 0.0
        %1422 = vmatpush.msra.mxu0 0.0
        %1423 = vmatpush.msra.mxu0 0.0
        %1424 = vmatpush.msra.mxu0 0.0
        %1425 = vmatpush.msra.mxu0 0.0
        %1426 = vmatpush.msra.mxu0 %v1406
        %1427 = vmatmul.f32.gmra.mxu0 %v1409
        %v1428 = vpop.f32.mrf.mxu0
        %v1429 = vadd.f32 0.0, %v1428
        %1430 = vdwg.mxu0
        %v1432 = vsel %vm1127, %v1388, 0
        %1434 = vmatpush.msra.mxu0 0.0
        %1435 = vmatpush.msra.mxu0 0.0
        %1436 = vmatpush.msra.mxu0 0.0
        %1437 = vmatpush.msra.mxu0 0.0
        %1438 = vmatpush.msra.mxu0 0.0
        %1439 = vmatpush.msra.mxu0 0.0
        %1440 = vmatpush.msra.mxu0 0.0
        %1441 = vmatpush.msra.mxu0 0.0
        %1442 = vmatpush.msra.mxu0 0.0
        %1443 = vmatpush.msra.mxu0 0.0
        %1444 = vmatpush.msra.mxu0 0.0
        %1445 = vmatpush.msra.mxu0 0.0
        %1446 = vmatpush.msra.mxu0 0.0
        %1447 = vmatpush.msra.mxu0 0.0
        %1448 = vmatpush.msra.mxu0 0.0
        %1449 = vmatpush.msra.mxu0 %v1403
        %1450 = vmatmul.f32.gmra.mxu0 %v1432
        %v1451 = vpop.f32.mrf.mxu0
        %v1452 = vadd.f32 %v1429, %v1451
        %1453 = vdwg.mxu0
        %v1454 = vmul.f32 %v1402, %v871
        %1456 = vrot.lane.b32.xlu0 %v1454, 126
        %v1457 = vpop.permute.xlu0 %1456
        %v1460 = vsel %vm1127, %v1390, 0
        %1462 = vmatpush.msra.mxu0 0.0
        %1463 = vmatpush.msra.mxu0 0.0
        %1464 = vmatpush.msra.mxu0 0.0
        %1465 = vmatpush.msra.mxu0 0.0
        %1466 = vmatpush.msra.mxu0 0.0
        %1467 = vmatpush.msra.mxu0 0.0
        %1468 = vmatpush.msra.mxu0 0.0
        %1469 = vmatpush.msra.mxu0 0.0
        %1470 = vmatpush.msra.mxu0 0.0
        %1471 = vmatpush.msra.mxu0 0.0
        %1472 = vmatpush.msra.mxu0 0.0
        %1473 = vmatpush.msra.mxu0 0.0
        %1474 = vmatpush.msra.mxu0 0.0
        %1475 = vmatpush.msra.mxu0 0.0
        %1476 = vmatpush.msra.mxu0 0.0
        %1477 = vmatpush.msra.mxu0 %v1457
        %1478 = vmatmul.f32.gmra.mxu0 %v1460
        %v1479 = vpop.f32.mrf.mxu0
        %v1480 = vadd.f32 0.0, %v1479
        %1481 = vdwg.mxu0
        %v1482 = vadd.f32 %v1452, %v1480
        %v1483 = vmul.f32 %v1402, %v905
        %1485 = vrot.lane.b32.xlu0 %v1483, 120
        %v1486 = vpop.permute.xlu0 %1485
        %v1489 = vsel %vm1127, %v1391, 0
        %1491 = vmatpush.msra.mxu0 0.0
        %1492 = vmatpush.msra.mxu0 0.0
        %1493 = vmatpush.msra.mxu0 0.0
        %1494 = vmatpush.msra.mxu0 0.0
        %1495 = vmatpush.msra.mxu0 0.0
        %1496 = vmatpush.msra.mxu0 0.0
        %1497 = vmatpush.msra.mxu0 0.0
        %1498 = vmatpush.msra.mxu0 0.0
        %1499 = vmatpush.msra.mxu0 0.0
        %1500 = vmatpush.msra.mxu0 0.0
        %1501 = vmatpush.msra.mxu0 0.0
        %1502 = vmatpush.msra.mxu0 0.0
        %1503 = vmatpush.msra.mxu0 0.0
        %1504 = vmatpush.msra.mxu0 0.0
        %1505 = vmatpush.msra.mxu0 0.0
        %1506 = vmatpush.msra.mxu0 %v1486
        %1507 = vmatmul.f32.gmra.mxu0 %v1489
        %v1508 = vpop.f32.mrf.mxu0
        %v1509 = vadd.f32 0.0, %v1508
        %1510 = vdwg.mxu0
        %v1511 = vadd.f32 %v1482, %v1509
        %1512 = vrot.lane.b32.xlu0 %v1402, 119
        %v1513 = vpop.permute.xlu0 %1512
        %v1516 = vsel %vm1127, %v1392, 0
        %1518 = vmatpush.msra.mxu0 0.0
        %1519 = vmatpush.msra.mxu0 0.0
        %1520 = vmatpush.msra.mxu0 0.0
        %1521 = vmatpush.msra.mxu0 0.0
        %1522 = vmatpush.msra.mxu0 0.0
        %1523 = vmatpush.msra.mxu0 0.0
        %1524 = vmatpush.msra.mxu0 0.0
        %1525 = vmatpush.msra.mxu0 0.0
        %1526 = vmatpush.msra.mxu0 0.0
        %1527 = vmatpush.msra.mxu0 0.0
        %1528 = vmatpush.msra.mxu0 0.0
        %1529 = vmatpush.msra.mxu0 0.0
        %1530 = vmatpush.msra.mxu0 0.0
        %1531 = vmatpush.msra.mxu0 0.0
        %1532 = vmatpush.msra.mxu0 0.0
        %1533 = vmatpush.msra.mxu0 %v1513
        %1534 = vmatmul.f32.gmra.mxu0 %v1516
        %v1535 = vpop.f32.mrf.mxu0
        %v1536 = vadd.f32 0.0, %v1535
        %1537 = vdwg.mxu0
        %v1538 = vadd.f32 %v1511, %v1536
        %v1539 = vmul.f32 %v1402, %v966
        %1541 = vrot.lane.b32.xlu0 %v1539, 118
        %v1542 = vpop.permute.xlu0 %1541
        %v1545 = vsel %vm1127, %v1393, 0
        %1547 = vmatpush.msra.mxu0 0.0
        %1548 = vmatpush.msra.mxu0 0.0
        %1549 = vmatpush.msra.mxu0 0.0
        %1550 = vmatpush.msra.mxu0 0.0
        %1551 = vmatpush.msra.mxu0 0.0
        %1552 = vmatpush.msra.mxu0 0.0
        %1553 = vmatpush.msra.mxu0 0.0
        %1554 = vmatpush.msra.mxu0 0.0
        %1555 = vmatpush.msra.mxu0 0.0
        %1556 = vmatpush.msra.mxu0 0.0
        %1557 = vmatpush.msra.mxu0 0.0
        %1558 = vmatpush.msra.mxu0 0.0
        %1559 = vmatpush.msra.mxu0 0.0
        %1560 = vmatpush.msra.mxu0 0.0
        %1561 = vmatpush.msra.mxu0 0.0
        %1562 = vmatpush.msra.mxu0 %v1542
        %1563 = vmatmul.f32.gmra.mxu0 %v1545
        %v1564 = vpop.f32.mrf.mxu0
        %v1565 = vadd.f32 0.0, %v1564
        %1566 = vdwg.mxu0
        %v1567 = vadd.f32 %v1538, %v1565
        %v1568 = vmul.f32 %v1402, %v999
        %1570 = vrot.lane.b32.xlu0 %v1568, 112
        %v1571 = vpop.permute.xlu0 %1570
        %v1574 = vsel %vm1127, %v1394, 0
        %1576 = vmatpush.msra.mxu0 0.0
        %1577 = vmatpush.msra.mxu0 0.0
        %1578 = vmatpush.msra.mxu0 0.0
        %1579 = vmatpush.msra.mxu0 0.0
        %1580 = vmatpush.msra.mxu0 0.0
        %1581 = vmatpush.msra.mxu0 0.0
        %1582 = vmatpush.msra.mxu0 0.0
        %1583 = vmatpush.msra.mxu0 0.0
        %1584 = vmatpush.msra.mxu0 0.0
        %1585 = vmatpush.msra.mxu0 0.0
        %1586 = vmatpush.msra.mxu0 0.0
        %1587 = vmatpush.msra.mxu0 0.0
        %1588 = vmatpush.msra.mxu0 0.0
        %1589 = vmatpush.msra.mxu0 0.0
        %1590 = vmatpush.msra.mxu0 0.0
        %1591 = vmatpush.msra.mxu0 %v1571
        %1592 = vmatmul.f32.gmra.mxu0 %v1574
        %v1593 = vpop.f32.mrf.mxu0
        %v1594 = vadd.f32 0.0, %v1593
        %1595 = vdwg.mxu0
        %v1596 = vadd.f32 %v1567, %v1594
        %1597 = vrot.lane.b32.xlu0 %v1402, 111
        %v1598 = vpop.permute.xlu0 %1597
        %v1601 = vsel %vm1127, %v1395, 0
        %1603 = vmatpush.msra.mxu0 0.0
        %1604 = vmatpush.msra.mxu0 0.0
        %1605 = vmatpush.msra.mxu0 0.0
        %1606 = vmatpush.msra.mxu0 0.0
        %1607 = vmatpush.msra.mxu0 0.0
        %1608 = vmatpush.msra.mxu0 0.0
        %1609 = vmatpush.msra.mxu0 0.0
        %1610 = vmatpush.msra.mxu0 0.0
        %1611 = vmatpush.msra.mxu0 0.0
        %1612 = vmatpush.msra.mxu0 0.0
        %1613 = vmatpush.msra.mxu0 0.0
        %1614 = vmatpush.msra.mxu0 0.0
        %1615 = vmatpush.msra.mxu0 0.0
        %1616 = vmatpush.msra.mxu0 0.0
        %1617 = vmatpush.msra.mxu0 0.0
        %1618 = vmatpush.msra.mxu0 %v1598
        %1619 = vmatmul.f32.gmra.mxu0 %v1601
        %v1620 = vpop.f32.mrf.mxu0
        %v1621 = vadd.f32 0.0, %v1620
        %1622 = vdwg.mxu0
        %v1623 = vadd.f32 %v1596, %v1621
        %v1624 = vmul.f32 %v1402, %v1060
        %1626 = vrot.lane.b32.xlu0 %v1624, 110
        %v1627 = vpop.permute.xlu0 %1626
        %v1630 = vsel %vm1127, %v1396, 0
        %1632 = vmatpush.msra.mxu0 0.0
        %1633 = vmatpush.msra.mxu0 0.0
        %1634 = vmatpush.msra.mxu0 0.0
        %1635 = vmatpush.msra.mxu0 0.0
        %1636 = vmatpush.msra.mxu0 0.0
        %1637 = vmatpush.msra.mxu0 0.0
        %1638 = vmatpush.msra.mxu0 0.0
        %1639 = vmatpush.msra.mxu0 0.0
        %1640 = vmatpush.msra.mxu0 0.0
        %1641 = vmatpush.msra.mxu0 0.0
        %1642 = vmatpush.msra.mxu0 0.0
        %1643 = vmatpush.msra.mxu0 0.0
        %1644 = vmatpush.msra.mxu0 0.0
        %1645 = vmatpush.msra.mxu0 0.0
        %1646 = vmatpush.msra.mxu0 0.0
        %1647 = vmatpush.msra.mxu0 %v1627
        %1648 = vmatmul.f32.gmra.mxu0 %v1630
        %v1649 = vpop.f32.mrf.mxu0
        %v1650 = vadd.f32 0.0, %v1649
        %1651 = vdwg.mxu0
        %v1652 = vadd.f32 %v1623, %v1650
        %v1653 = vld [vmem:[%s8] sm:$0xff]
        %1655 = vset.pattern.permute.xlu0 0
        %1656 = vperm.xlu0 %1655, %v1653
        %v1657 = vpop.permute.xlu0 %1656
        %v1659 = vmul.f32 %v1652, %v1657
        %v1660 = vld [vmem:[%s9] sm:$0xff]
        %1662 = vset.pattern.permute.xlu0 0
        %1663 = vperm.xlu0 %1662, %v1660
        %v1664 = vpop.permute.xlu0 %1663
        %v1666 = vadd.f32 %v1659, %v1664
        %v1667 = vld [vmem:[%s10] sm:$0xff]
        %v1668 = vld [vmem:[%s11] sm:$0xff]
        %1670 = vset.pattern.permute.xlu0 0
        %1671 = vperm.xlu0 %1670, %v1668
        %v1672 = vpop.permute.xlu0 %1671
        %v1675 = vsel %vm1127, %v1667, 0
        %1677 = vmatpush.msra.mxu0 0.0
        %1678 = vmatpush.msra.mxu0 0.0
        %1679 = vmatpush.msra.mxu0 0.0
        %1680 = vmatpush.msra.mxu0 0.0
        %1681 = vmatpush.msra.mxu0 0.0
        %1682 = vmatpush.msra.mxu0 0.0
        %1683 = vmatpush.msra.mxu0 0.0
        %1684 = vmatpush.msra.mxu0 0.0
        %1685 = vmatpush.msra.mxu0 0.0
        %1686 = vmatpush.msra.mxu0 0.0
        %1687 = vmatpush.msra.mxu0 0.0
        %1688 = vmatpush.msra.mxu0 0.0
        %1689 = vmatpush.msra.mxu0 0.0
        %1690 = vmatpush.msra.mxu0 0.0
        %1691 = vmatpush.msra.mxu0 0.0
        %1692 = vmatpush.msra.mxu0 %v1666
        %1693 = vmatmul.f32.gmra.mxu0 %v1675
        %v1694 = vpop.f32.mrf.mxu0
        %v1695 = vadd.f32 %v1672, %v1694
        %1696 = vdwg.mxu0
        %v1697 = vadd.f32 %v1106, %v1695
        %v1698 = vmax.f32 %v1697, 0.0
        %s1699 = scalar_lea.vmem %s4, 72
        %v1700 = vld [vmem:[%s1699] sm:$0xff]
        %v1701 = vld [vmem:[%s1699 + $0x8] sm:$0xff]
        %v1702 = vld [vmem:[%s1699 + $0x10] sm:$0xff]
        %v1703 = vld [vmem:[%s1699 + $0x18] sm:$0xff]
        %v1704 = vld [vmem:[%s1699 + $0x20] sm:$0xff]
        %v1705 = vld [vmem:[%s1699 + $0x28] sm:$0xff]
        %v1706 = vld [vmem:[%s1699 + $0x30] sm:$0xff]
        %v1707 = vld [vmem:[%s1699 + $0x38] sm:$0xff]
        %v1708 = vld [vmem:[%s1699 + $0x40] sm:$0xff]
        %1710 = vrot.lane.b32.xlu0 %v1698, 9
        %v1711 = vpop.permute.xlu0 %1710
        %v1713 = vsel %vm808, 0.0, %v1711
        %v1714 = vsel %vm810, %v1713, 0.0
        %v1715 = vmul.f32 %v1714, %v790
        %1717 = vrot.lane.b32.xlu0 %v1714, 127
        %v1718 = vpop.permute.xlu0 %1717
        %v1721 = vsel %vm1127, %v1701, 0
        %1723 = vmatpush.msra.mxu0 0.0
        %1724 = vmatpush.msra.mxu0 0.0
        %1725 = vmatpush.msra.mxu0 0.0
        %1726 = vmatpush.msra.mxu0 0.0
        %1727 = vmatpush.msra.mxu0 0.0
        %1728 = vmatpush.msra.mxu0 0.0
        %1729 = vmatpush.msra.mxu0 0.0
        %1730 = vmatpush.msra.mxu0 0.0
        %1731 = vmatpush.msra.mxu0 0.0
        %1732 = vmatpush.msra.mxu0 0.0
        %1733 = vmatpush.msra.mxu0 0.0
        %1734 = vmatpush.msra.mxu0 0.0
        %1735 = vmatpush.msra.mxu0 0.0
        %1736 = vmatpush.msra.mxu0 0.0
        %1737 = vmatpush.msra.mxu0 0.0
        %1738 = vmatpush.msra.mxu0 %v1718
        %1739 = vmatmul.f32.gmra.mxu0 %v1721
        %v1740 = vpop.f32.mrf.mxu0
        %v1741 = vadd.f32 0.0, %v1740
        %1742 = vdwg.mxu0
        %v1744 = vsel %vm1127, %v1700, 0
        %1746 = vmatpush.msra.mxu0 0.0
        %1747 = vmatpush.msra.mxu0 0.0
        %1748 = vmatpush.msra.mxu0 0.0
        %1749 = vmatpush.msra.mxu0 0.0
        %1750 = vmatpush.msra.mxu0 0.0
        %1751 = vmatpush.msra.mxu0 0.0
        %1752 = vmatpush.msra.mxu0 0.0
        %1753 = vmatpush.msra.mxu0 0.0
        %1754 = vmatpush.msra.mxu0 0.0
        %1755 = vmatpush.msra.mxu0 0.0
        %1756 = vmatpush.msra.mxu0 0.0
        %1757 = vmatpush.msra.mxu0 0.0
        %1758 = vmatpush.msra.mxu0 0.0
        %1759 = vmatpush.msra.mxu0 0.0
        %1760 = vmatpush.msra.mxu0 0.0
        %1761 = vmatpush.msra.mxu0 %v1715
        %1762 = vmatmul.f32.gmra.mxu0 %v1744
        %v1763 = vpop.f32.mrf.mxu0
        %v1764 = vadd.f32 %v1741, %v1763
        %1765 = vdwg.mxu0
        %v1766 = vmul.f32 %v1714, %v871
        %1768 = vrot.lane.b32.xlu0 %v1766, 126
        %v1769 = vpop.permute.xlu0 %1768
        %v1772 = vsel %vm1127, %v1702, 0
        %1774 = vmatpush.msra.mxu0 0.0
        %1775 = vmatpush.msra.mxu0 0.0
        %1776 = vmatpush.msra.mxu0 0.0
        %1777 = vmatpush.msra.mxu0 0.0
        %1778 = vmatpush.msra.mxu0 0.0
        %1779 = vmatpush.msra.mxu0 0.0
        %1780 = vmatpush.msra.mxu0 0.0
        %1781 = vmatpush.msra.mxu0 0.0
        %1782 = vmatpush.msra.mxu0 0.0
        %1783 = vmatpush.msra.mxu0 0.0
        %1784 = vmatpush.msra.mxu0 0.0
        %1785 = vmatpush.msra.mxu0 0.0
        %1786 = vmatpush.msra.mxu0 0.0
        %1787 = vmatpush.msra.mxu0 0.0
        %1788 = vmatpush.msra.mxu0 0.0
        %1789 = vmatpush.msra.mxu0 %v1769
        %1790 = vmatmul.f32.gmra.mxu0 %v1772
        %v1791 = vpop.f32.mrf.mxu0
        %v1792 = vadd.f32 0.0, %v1791
        %1793 = vdwg.mxu0
        %v1794 = vadd.f32 %v1764, %v1792
        %v1795 = vmul.f32 %v1714, %v905
        %1797 = vrot.lane.b32.xlu0 %v1795, 120
        %v1798 = vpop.permute.xlu0 %1797
        %v1801 = vsel %vm1127, %v1703, 0
        %1803 = vmatpush.msra.mxu0 0.0
        %1804 = vmatpush.msra.mxu0 0.0
        %1805 = vmatpush.msra.mxu0 0.0
        %1806 = vmatpush.msra.mxu0 0.0
        %1807 = vmatpush.msra.mxu0 0.0
        %1808 = vmatpush.msra.mxu0 0.0
        %1809 = vmatpush.msra.mxu0 0.0
        %1810 = vmatpush.msra.mxu0 0.0
        %1811 = vmatpush.msra.mxu0 0.0
        %1812 = vmatpush.msra.mxu0 0.0
        %1813 = vmatpush.msra.mxu0 0.0
        %1814 = vmatpush.msra.mxu0 0.0
        %1815 = vmatpush.msra.mxu0 0.0
        %1816 = vmatpush.msra.mxu0 0.0
        %1817 = vmatpush.msra.mxu0 0.0
        %1818 = vmatpush.msra.mxu0 %v1798
        %1819 = vmatmul.f32.gmra.mxu0 %v1801
        %v1820 = vpop.f32.mrf.mxu0
        %v1821 = vadd.f32 0.0, %v1820
        %1822 = vdwg.mxu0
        %v1823 = vadd.f32 %v1794, %v1821
        %1824 = vrot.lane.b32.xlu0 %v1714, 119
        %v1825 = vpop.permute.xlu0 %1824
        %v1828 = vsel %vm1127, %v1704, 0
        %1830 = vmatpush.msra.mxu0 0.0
        %1831 = vmatpush.msra.mxu0 0.0
        %1832 = vmatpush.msra.mxu0 0.0
        %1833 = vmatpush.msra.mxu0 0.0
        %1834 = vmatpush.msra.mxu0 0.0
        %1835 = vmatpush.msra.mxu0 0.0
        %1836 = vmatpush.msra.mxu0 0.0
        %1837 = vmatpush.msra.mxu0 0.0
        %1838 = vmatpush.msra.mxu0 0.0
        %1839 = vmatpush.msra.mxu0 0.0
        %1840 = vmatpush.msra.mxu0 0.0
        %1841 = vmatpush.msra.mxu0 0.0
        %1842 = vmatpush.msra.mxu0 0.0
        %1843 = vmatpush.msra.mxu0 0.0
        %1844 = vmatpush.msra.mxu0 0.0
        %1845 = vmatpush.msra.mxu0 %v1825
        %1846 = vmatmul.f32.gmra.mxu0 %v1828
        %v1847 = vpop.f32.mrf.mxu0
        %v1848 = vadd.f32 0.0, %v1847
        %1849 = vdwg.mxu0
        %v1850 = vadd.f32 %v1823, %v1848
        %v1851 = vmul.f32 %v1714, %v966
        %1853 = vrot.lane.b32.xlu0 %v1851, 118
        %v1854 = vpop.permute.xlu0 %1853
        %v1857 = vsel %vm1127, %v1705, 0
        %1859 = vmatpush.msra.mxu0 0.0
        %1860 = vmatpush.msra.mxu0 0.0
        %1861 = vmatpush.msra.mxu0 0.0
        %1862 = vmatpush.msra.mxu0 0.0
        %1863 = vmatpush.msra.mxu0 0.0
        %1864 = vmatpush.msra.mxu0 0.0
        %1865 = vmatpush.msra.mxu0 0.0
        %1866 = vmatpush.msra.mxu0 0.0
        %1867 = vmatpush.msra.mxu0 0.0
        %1868 = vmatpush.msra.mxu0 0.0
        %1869 = vmatpush.msra.mxu0 0.0
        %1870 = vmatpush.msra.mxu0 0.0
        %1871 = vmatpush.msra.mxu0 0.0
        %1872 = vmatpush.msra.mxu0 0.0
        %1873 = vmatpush.msra.mxu0 0.0
        %1874 = vmatpush.msra.mxu0 %v1854
        %1875 = vmatmul.f32.gmra.mxu0 %v1857
        %v1876 = vpop.f32.mrf.mxu0
        %v1877 = vadd.f32 0.0, %v1876
        %1878 = vdwg.mxu0
        %v1879 = vadd.f32 %v1850, %v1877
        %v1880 = vmul.f32 %v1714, %v999
        %1882 = vrot.lane.b32.xlu0 %v1880, 112
        %v1883 = vpop.permute.xlu0 %1882
        %v1886 = vsel %vm1127, %v1706, 0
        %1888 = vmatpush.msra.mxu0 0.0
        %1889 = vmatpush.msra.mxu0 0.0
        %1890 = vmatpush.msra.mxu0 0.0
        %1891 = vmatpush.msra.mxu0 0.0
        %1892 = vmatpush.msra.mxu0 0.0
        %1893 = vmatpush.msra.mxu0 0.0
        %1894 = vmatpush.msra.mxu0 0.0
        %1895 = vmatpush.msra.mxu0 0.0
        %1896 = vmatpush.msra.mxu0 0.0
        %1897 = vmatpush.msra.mxu0 0.0
        %1898 = vmatpush.msra.mxu0 0.0
        %1899 = vmatpush.msra.mxu0 0.0
        %1900 = vmatpush.msra.mxu0 0.0
        %1901 = vmatpush.msra.mxu0 0.0
        %1902 = vmatpush.msra.mxu0 0.0
        %1903 = vmatpush.msra.mxu0 %v1883
        %1904 = vmatmul.f32.gmra.mxu0 %v1886
        %v1905 = vpop.f32.mrf.mxu0
        %v1906 = vadd.f32 0.0, %v1905
        %1907 = vdwg.mxu0
        %v1908 = vadd.f32 %v1879, %v1906
        %1909 = vrot.lane.b32.xlu0 %v1714, 111
        %v1910 = vpop.permute.xlu0 %1909
        %v1913 = vsel %vm1127, %v1707, 0
        %1915 = vmatpush.msra.mxu0 0.0
        %1916 = vmatpush.msra.mxu0 0.0
        %1917 = vmatpush.msra.mxu0 0.0
        %1918 = vmatpush.msra.mxu0 0.0
        %1919 = vmatpush.msra.mxu0 0.0
        %1920 = vmatpush.msra.mxu0 0.0
        %1921 = vmatpush.msra.mxu0 0.0
        %1922 = vmatpush.msra.mxu0 0.0
        %1923 = vmatpush.msra.mxu0 0.0
        %1924 = vmatpush.msra.mxu0 0.0
        %1925 = vmatpush.msra.mxu0 0.0
        %1926 = vmatpush.msra.mxu0 0.0
        %1927 = vmatpush.msra.mxu0 0.0
        %1928 = vmatpush.msra.mxu0 0.0
        %1929 = vmatpush.msra.mxu0 0.0
        %1930 = vmatpush.msra.mxu0 %v1910
        %1931 = vmatmul.f32.gmra.mxu0 %v1913
        %v1932 = vpop.f32.mrf.mxu0
        %v1933 = vadd.f32 0.0, %v1932
        %1934 = vdwg.mxu0
        %v1935 = vadd.f32 %v1908, %v1933
        %v1936 = vmul.f32 %v1714, %v1060
        %1938 = vrot.lane.b32.xlu0 %v1936, 110
        %v1939 = vpop.permute.xlu0 %1938
        %v1942 = vsel %vm1127, %v1708, 0
        %1944 = vmatpush.msra.mxu0 0.0
        %1945 = vmatpush.msra.mxu0 0.0
        %1946 = vmatpush.msra.mxu0 0.0
        %1947 = vmatpush.msra.mxu0 0.0
        %1948 = vmatpush.msra.mxu0 0.0
        %1949 = vmatpush.msra.mxu0 0.0
        %1950 = vmatpush.msra.mxu0 0.0
        %1951 = vmatpush.msra.mxu0 0.0
        %1952 = vmatpush.msra.mxu0 0.0
        %1953 = vmatpush.msra.mxu0 0.0
        %1954 = vmatpush.msra.mxu0 0.0
        %1955 = vmatpush.msra.mxu0 0.0
        %1956 = vmatpush.msra.mxu0 0.0
        %1957 = vmatpush.msra.mxu0 0.0
        %1958 = vmatpush.msra.mxu0 0.0
        %1959 = vmatpush.msra.mxu0 %v1939
        %1960 = vmatmul.f32.gmra.mxu0 %v1942
        %v1961 = vpop.f32.mrf.mxu0
        %v1962 = vadd.f32 0.0, %v1961
        %1963 = vdwg.mxu0
        %v1964 = vadd.f32 %v1935, %v1962
        %s1965 = scalar_lea.vmem %s5, 8
        %v1966 = vld [vmem:[%s1965] sm:$0xff]
        %1968 = vset.pattern.permute.xlu0 0
        %1969 = vperm.xlu0 %1968, %v1966
        %v1970 = vpop.permute.xlu0 %1969
        %v1972 = vmul.f32 %v1964, %v1970
        %s1973 = scalar_lea.vmem %s6, 8
        %v1974 = vld [vmem:[%s1973] sm:$0xff]
        %1976 = vset.pattern.permute.xlu0 0
        %1977 = vperm.xlu0 %1976, %v1974
        %v1978 = vpop.permute.xlu0 %1977
        %v1980 = vadd.f32 %v1972, %v1978
        %v1981 = vmax.f32 %v1980, 0.0
        %s1982 = scalar_lea.vmem %s7, 72
        %v1983 = vld [vmem:[%s1982] sm:$0xff]
        %v1984 = vld [vmem:[%s1982 + $0x8] sm:$0xff]
        %v1985 = vld [vmem:[%s1982 + $0x10] sm:$0xff]
        %v1986 = vld [vmem:[%s1982 + $0x18] sm:$0xff]
        %v1987 = vld [vmem:[%s1982 + $0x20] sm:$0xff]
        %v1988 = vld [vmem:[%s1982 + $0x28] sm:$0xff]
        %v1989 = vld [vmem:[%s1982 + $0x30] sm:$0xff]
        %v1990 = vld [vmem:[%s1982 + $0x38] sm:$0xff]
        %v1991 = vld [vmem:[%s1982 + $0x40] sm:$0xff]
        %1993 = vrot.lane.b32.xlu0 %v1981, 9
        %v1994 = vpop.permute.xlu0 %1993
        %v1996 = vsel %vm808, 0.0, %v1994
        %v1997 = vsel %vm810, %v1996, 0.0
        %v1998 = vmul.f32 %v1997, %v790
        %2000 = vrot.lane.b32.xlu0 %v1997, 127
        %v2001 = vpop.permute.xlu0 %2000
        %v2004 = vsel %vm1127, %v1984, 0
        %2006 = vmatpush.msra.mxu0 0.0
        %2007 = vmatpush.msra.mxu0 0.0
        %2008 = vmatpush.msra.mxu0 0.0
        %2009 = vmatpush.msra.mxu0 0.0
        %2010 = vmatpush.msra.mxu0 0.0
        %2011 = vmatpush.msra.mxu0 0.0
        %2012 = vmatpush.msra.mxu0 0.0
        %2013 = vmatpush.msra.mxu0 0.0
        %2014 = vmatpush.msra.mxu0 0.0
        %2015 = vmatpush.msra.mxu0 0.0
        %2016 = vmatpush.msra.mxu0 0.0
        %2017 = vmatpush.msra.mxu0 0.0
        %2018 = vmatpush.msra.mxu0 0.0
        %2019 = vmatpush.msra.mxu0 0.0
        %2020 = vmatpush.msra.mxu0 0.0
        %2021 = vmatpush.msra.mxu0 %v2001
        %2022 = vmatmul.f32.gmra.mxu0 %v2004
        %v2023 = vpop.f32.mrf.mxu0
        %v2024 = vadd.f32 0.0, %v2023
        %2025 = vdwg.mxu0
        %v2027 = vsel %vm1127, %v1983, 0
        %2029 = vmatpush.msra.mxu0 0.0
        %2030 = vmatpush.msra.mxu0 0.0
        %2031 = vmatpush.msra.mxu0 0.0
        %2032 = vmatpush.msra.mxu0 0.0
        %2033 = vmatpush.msra.mxu0 0.0
        %2034 = vmatpush.msra.mxu0 0.0
        %2035 = vmatpush.msra.mxu0 0.0
        %2036 = vmatpush.msra.mxu0 0.0
        %2037 = vmatpush.msra.mxu0 0.0
        %2038 = vmatpush.msra.mxu0 0.0
        %2039 = vmatpush.msra.mxu0 0.0
        %2040 = vmatpush.msra.mxu0 0.0
        %2041 = vmatpush.msra.mxu0 0.0
        %2042 = vmatpush.msra.mxu0 0.0
        %2043 = vmatpush.msra.mxu0 0.0
        %2044 = vmatpush.msra.mxu0 %v1998
        %2045 = vmatmul.f32.gmra.mxu0 %v2027
        %v2046 = vpop.f32.mrf.mxu0
        %v2047 = vadd.f32 %v2024, %v2046
        %2048 = vdwg.mxu0
        %v2049 = vmul.f32 %v1997, %v871
        %2051 = vrot.lane.b32.xlu0 %v2049, 126
        %v2052 = vpop.permute.xlu0 %2051
        %v2055 = vsel %vm1127, %v1985, 0
        %2057 = vmatpush.msra.mxu0 0.0
        %2058 = vmatpush.msra.mxu0 0.0
        %2059 = vmatpush.msra.mxu0 0.0
        %2060 = vmatpush.msra.mxu0 0.0
        %2061 = vmatpush.msra.mxu0 0.0
        %2062 = vmatpush.msra.mxu0 0.0
        %2063 = vmatpush.msra.mxu0 0.0
        %2064 = vmatpush.msra.mxu0 0.0
        %2065 = vmatpush.msra.mxu0 0.0
        %2066 = vmatpush.msra.mxu0 0.0
        %2067 = vmatpush.msra.mxu0 0.0
        %2068 = vmatpush.msra.mxu0 0.0
        %2069 = vmatpush.msra.mxu0 0.0
        %2070 = vmatpush.msra.mxu0 0.0
        %2071 = vmatpush.msra.mxu0 0.0
        %2072 = vmatpush.msra.mxu0 %v2052
        %2073 = vmatmul.f32.gmra.mxu0 %v2055
        %v2074 = vpop.f32.mrf.mxu0
        %v2075 = vadd.f32 0.0, %v2074
        %2076 = vdwg.mxu0
        %v2077 = vadd.f32 %v2047, %v2075
        %v2078 = vmul.f32 %v1997, %v905
        %2080 = vrot.lane.b32.xlu0 %v2078, 120
        %v2081 = vpop.permute.xlu0 %2080
        %v2084 = vsel %vm1127, %v1986, 0
        %2086 = vmatpush.msra.mxu0 0.0
        %2087 = vmatpush.msra.mxu0 0.0
        %2088 = vmatpush.msra.mxu0 0.0
        %2089 = vmatpush.msra.mxu0 0.0
        %2090 = vmatpush.msra.mxu0 0.0
        %2091 = vmatpush.msra.mxu0 0.0
        %2092 = vmatpush.msra.mxu0 0.0
        %2093 = vmatpush.msra.mxu0 0.0
        %2094 = vmatpush.msra.mxu0 0.0
        %2095 = vmatpush.msra.mxu0 0.0
        %2096 = vmatpush.msra.mxu0 0.0
        %2097 = vmatpush.msra.mxu0 0.0
        %2098 = vmatpush.msra.mxu0 0.0
        %2099 = vmatpush.msra.mxu0 0.0
        %2100 = vmatpush.msra.mxu0 0.0
        %2101 = vmatpush.msra.mxu0 %v2081
        %2102 = vmatmul.f32.gmra.mxu0 %v2084
        %v2103 = vpop.f32.mrf.mxu0
        %v2104 = vadd.f32 0.0, %v2103
        %2105 = vdwg.mxu0
        %v2106 = vadd.f32 %v2077, %v2104
        %2107 = vrot.lane.b32.xlu0 %v1997, 119
        %v2108 = vpop.permute.xlu0 %2107
        %v2111 = vsel %vm1127, %v1987, 0
        %2113 = vmatpush.msra.mxu0 0.0
        %2114 = vmatpush.msra.mxu0 0.0
        %2115 = vmatpush.msra.mxu0 0.0
        %2116 = vmatpush.msra.mxu0 0.0
        %2117 = vmatpush.msra.mxu0 0.0
        %2118 = vmatpush.msra.mxu0 0.0
        %2119 = vmatpush.msra.mxu0 0.0
        %2120 = vmatpush.msra.mxu0 0.0
        %2121 = vmatpush.msra.mxu0 0.0
        %2122 = vmatpush.msra.mxu0 0.0
        %2123 = vmatpush.msra.mxu0 0.0
        %2124 = vmatpush.msra.mxu0 0.0
        %2125 = vmatpush.msra.mxu0 0.0
        %2126 = vmatpush.msra.mxu0 0.0
        %2127 = vmatpush.msra.mxu0 0.0
        %2128 = vmatpush.msra.mxu0 %v2108
        %2129 = vmatmul.f32.gmra.mxu0 %v2111
        %v2130 = vpop.f32.mrf.mxu0
        %v2131 = vadd.f32 0.0, %v2130
        %2132 = vdwg.mxu0
        %v2133 = vadd.f32 %v2106, %v2131
        %v2134 = vmul.f32 %v1997, %v966
        %2136 = vrot.lane.b32.xlu0 %v2134, 118
        %v2137 = vpop.permute.xlu0 %2136
        %v2140 = vsel %vm1127, %v1988, 0
        %2142 = vmatpush.msra.mxu0 0.0
        %2143 = vmatpush.msra.mxu0 0.0
        %2144 = vmatpush.msra.mxu0 0.0
        %2145 = vmatpush.msra.mxu0 0.0
        %2146 = vmatpush.msra.mxu0 0.0
        %2147 = vmatpush.msra.mxu0 0.0
        %2148 = vmatpush.msra.mxu0 0.0
        %2149 = vmatpush.msra.mxu0 0.0
        %2150 = vmatpush.msra.mxu0 0.0
        %2151 = vmatpush.msra.mxu0 0.0
        %2152 = vmatpush.msra.mxu0 0.0
        %2153 = vmatpush.msra.mxu0 0.0
        %2154 = vmatpush.msra.mxu0 0.0
        %2155 = vmatpush.msra.mxu0 0.0
        %2156 = vmatpush.msra.mxu0 0.0
        %2157 = vmatpush.msra.mxu0 %v2137
        %2158 = vmatmul.f32.gmra.mxu0 %v2140
        %v2159 = vpop.f32.mrf.mxu0
        %v2160 = vadd.f32 0.0, %v2159
        %2161 = vdwg.mxu0
        %v2162 = vadd.f32 %v2133, %v2160
        %v2163 = vmul.f32 %v1997, %v999
        %2165 = vrot.lane.b32.xlu0 %v2163, 112
        %v2166 = vpop.permute.xlu0 %2165
        %v2169 = vsel %vm1127, %v1989, 0
        %2171 = vmatpush.msra.mxu0 0.0
        %2172 = vmatpush.msra.mxu0 0.0
        %2173 = vmatpush.msra.mxu0 0.0
        %2174 = vmatpush.msra.mxu0 0.0
        %2175 = vmatpush.msra.mxu0 0.0
        %2176 = vmatpush.msra.mxu0 0.0
        %2177 = vmatpush.msra.mxu0 0.0
        %2178 = vmatpush.msra.mxu0 0.0
        %2179 = vmatpush.msra.mxu0 0.0
        %2180 = vmatpush.msra.mxu0 0.0
        %2181 = vmatpush.msra.mxu0 0.0
        %2182 = vmatpush.msra.mxu0 0.0
        %2183 = vmatpush.msra.mxu0 0.0
        %2184 = vmatpush.msra.mxu0 0.0
        %2185 = vmatpush.msra.mxu0 0.0
        %2186 = vmatpush.msra.mxu0 %v2166
        %2187 = vmatmul.f32.gmra.mxu0 %v2169
        %v2188 = vpop.f32.mrf.mxu0
        %v2189 = vadd.f32 0.0, %v2188
        %2190 = vdwg.mxu0
        %v2191 = vadd.f32 %v2162, %v2189
        %2192 = vrot.lane.b32.xlu0 %v1997, 111
        %v2193 = vpop.permute.xlu0 %2192
        %v2196 = vsel %vm1127, %v1990, 0
        %2198 = vmatpush.msra.mxu0 0.0
        %2199 = vmatpush.msra.mxu0 0.0
        %2200 = vmatpush.msra.mxu0 0.0
        %2201 = vmatpush.msra.mxu0 0.0
        %2202 = vmatpush.msra.mxu0 0.0
        %2203 = vmatpush.msra.mxu0 0.0
        %2204 = vmatpush.msra.mxu0 0.0
        %2205 = vmatpush.msra.mxu0 0.0
        %2206 = vmatpush.msra.mxu0 0.0
        %2207 = vmatpush.msra.mxu0 0.0
        %2208 = vmatpush.msra.mxu0 0.0
        %2209 = vmatpush.msra.mxu0 0.0
        %2210 = vmatpush.msra.mxu0 0.0
        %2211 = vmatpush.msra.mxu0 0.0
        %2212 = vmatpush.msra.mxu0 0.0
        %2213 = vmatpush.msra.mxu0 %v2193
        %2214 = vmatmul.f32.gmra.mxu0 %v2196
        %v2215 = vpop.f32.mrf.mxu0
        %v2216 = vadd.f32 0.0, %v2215
        %2217 = vdwg.mxu0
        %v2218 = vadd.f32 %v2191, %v2216
        %v2219 = vmul.f32 %v1997, %v1060
        %2221 = vrot.lane.b32.xlu0 %v2219, 110
        %v2222 = vpop.permute.xlu0 %2221
        %v2225 = vsel %vm1127, %v1991, 0
        %2227 = vmatpush.msra.mxu0 0.0
        %2228 = vmatpush.msra.mxu0 0.0
        %2229 = vmatpush.msra.mxu0 0.0
        %2230 = vmatpush.msra.mxu0 0.0
        %2231 = vmatpush.msra.mxu0 0.0
        %2232 = vmatpush.msra.mxu0 0.0
        %2233 = vmatpush.msra.mxu0 0.0
        %2234 = vmatpush.msra.mxu0 0.0
        %2235 = vmatpush.msra.mxu0 0.0
        %2236 = vmatpush.msra.mxu0 0.0
        %2237 = vmatpush.msra.mxu0 0.0
        %2238 = vmatpush.msra.mxu0 0.0
        %2239 = vmatpush.msra.mxu0 0.0
        %2240 = vmatpush.msra.mxu0 0.0
        %2241 = vmatpush.msra.mxu0 0.0
        %2242 = vmatpush.msra.mxu0 %v2222
        %2243 = vmatmul.f32.gmra.mxu0 %v2225
        %v2244 = vpop.f32.mrf.mxu0
        %v2245 = vadd.f32 0.0, %v2244
        %2246 = vdwg.mxu0
        %v2247 = vadd.f32 %v2218, %v2245
        %s2248 = scalar_lea.vmem %s8, 8
        %v2249 = vld [vmem:[%s2248] sm:$0xff]
        %2251 = vset.pattern.permute.xlu0 0
        %2252 = vperm.xlu0 %2251, %v2249
        %v2253 = vpop.permute.xlu0 %2252
        %v2255 = vmul.f32 %v2247, %v2253
        %s2256 = scalar_lea.vmem %s9, 8
        %v2257 = vld [vmem:[%s2256] sm:$0xff]
        %2259 = vset.pattern.permute.xlu0 0
        %2260 = vperm.xlu0 %2259, %v2257
        %v2261 = vpop.permute.xlu0 %2260
        %v2263 = vadd.f32 %v2255, %v2261
        %s2264 = scalar_lea.vmem %s10, 8
        %v2265 = vld [vmem:[%s2264] sm:$0xff]
        %s2266 = scalar_lea.vmem %s11, 8
        %v2267 = vld [vmem:[%s2266] sm:$0xff]
        %2269 = vset.pattern.permute.xlu0 0
        %2270 = vperm.xlu0 %2269, %v2267
        %v2271 = vpop.permute.xlu0 %2270
        %v2274 = vsel %vm1127, %v2265, 0
        %2276 = vmatpush.msra.mxu0 0.0
        %2277 = vmatpush.msra.mxu0 0.0
        %2278 = vmatpush.msra.mxu0 0.0
        %2279 = vmatpush.msra.mxu0 0.0
        %2280 = vmatpush.msra.mxu0 0.0
        %2281 = vmatpush.msra.mxu0 0.0
        %2282 = vmatpush.msra.mxu0 0.0
        %2283 = vmatpush.msra.mxu0 0.0
        %2284 = vmatpush.msra.mxu0 0.0
        %2285 = vmatpush.msra.mxu0 0.0
        %2286 = vmatpush.msra.mxu0 0.0
        %2287 = vmatpush.msra.mxu0 0.0
        %2288 = vmatpush.msra.mxu0 0.0
        %2289 = vmatpush.msra.mxu0 0.0
        %2290 = vmatpush.msra.mxu0 0.0
        %2291 = vmatpush.msra.mxu0 %v2263
        %2292 = vmatmul.f32.gmra.mxu0 %v2274
        %v2293 = vpop.f32.mrf.mxu0
        %v2294 = vadd.f32 %v2271, %v2293
        %2295 = vdwg.mxu0
        %v2296 = vadd.f32 %v1698, %v2294
        %v2297 = vmax.f32 %v2296, 0.0
        %v2298 = vld [vmem:[%s12] sm:$0x3]
        %v2300 = vsel %vm1127, %v2298, 0
        %2302 = vmatpush.msra.mxu0 0.0
        %2303 = vmatpush.msra.mxu0 0.0
        %2304 = vmatpush.msra.mxu0 0.0
        %2305 = vmatpush.msra.mxu0 0.0
        %2306 = vmatpush.msra.mxu0 0.0
        %2307 = vmatpush.msra.mxu0 0.0
        %2308 = vmatpush.msra.mxu0 0.0
        %2309 = vmatpush.msra.mxu0 0.0
        %2310 = vmatpush.msra.mxu0 0.0
        %2311 = vmatpush.msra.mxu0 0.0
        %2312 = vmatpush.msra.mxu0 0.0
        %2313 = vmatpush.msra.mxu0 0.0
        %2314 = vmatpush.msra.mxu0 0.0
        %2315 = vmatpush.msra.mxu0 0.0
        %2316 = vmatpush.msra.mxu0 0.0
        %2317 = vmatpush.msra.mxu0 %v2297
        %2318 = vmatmul.f32.gmra.mxu0 %v2300
        %v2319 = vpop.f32.mrf.mxu0
        %v2320 = vadd.f32 0.0, %v2319
        %2321 = vdwg.mxu0
        %v2322 = vld [vmem:[%s13] sm:$0x3]
        %2324 = vset.pattern.permute.xlu0 0
        %2325 = vperm.xlu0 %2324, %v2322
        %v2326 = vpop.permute.xlu0 %2325
        %v2328 = vmul.f32 %v2320, %v2326
        %v2329 = vld [vmem:[%s14] sm:$0x3]
        %2331 = vset.pattern.permute.xlu0 0
        %2332 = vperm.xlu0 %2331, %v2329
        %v2333 = vpop.permute.xlu0 %2332
        %v2335 = vadd.f32 %v2328, %v2333
        %v2336 = vmax.f32 %v2335, 0.0
        %v2337 = vld [vmem:[%s16] sm:$0x1]
        %v2338 = vld [vmem:[%s15] sm:$0xff]
        %v2339 = vld [vmem:[%s15 + $0x8] sm:$0xff]
        %v2340 = vld [vmem:[%s15 + $0x10] sm:$0xff]
        %v2341 = vld [vmem:[%s15 + $0x18] sm:$0xff]
        %v2342 = vld [vmem:[%s15 + $0x20] sm:$0xff]
        %v2343 = vld [vmem:[%s15 + $0x28] sm:$0xff]
        %v2344 = vld [vmem:[%s15 + $0x30] sm:$0xff]
        %v2345 = vld [vmem:[%s15 + $0x38] sm:$0xff]
        %vm2346 = vcmask 523264
        %v2348 = vsel %vm2346, %v2336, 0
        %2350 = vmatpush.msra.mxu0 0.0
        %2351 = vmatpush.msra.mxu0 0.0
        %2352 = vmatpush.msra.mxu0 0.0
        %2353 = vmatpush.msra.mxu0 0.0
        %2354 = vmatpush.msra.mxu0 0.0
        %2355 = vmatpush.msra.mxu0 0.0
        %2356 = vmatpush.msra.mxu0 0.0
        %2357 = vmatpush.msra.mxu0 0.0
        %2358 = vmatpush.msra.mxu0 %v2345
        %2359 = vmatpush.msra.mxu0 %v2344
        %2360 = vmatpush.msra.mxu0 %v2343
        %2361 = vmatpush.msra.mxu0 %v2342
        %2362 = vmatpush.msra.mxu0 %v2341
        %2363 = vmatpush.msra.mxu0 %v2340
        %2364 = vmatpush.msra.mxu0 %v2339
        %2365 = vmatpush.msra.mxu0 %v2338
        %2366 = vmatmul.f32.gmra.mxu0 %v2348
        %v2367 = vpop.f32.mrf.mxu0
        %v2368 = vadd.f32 0.0, %v2367
        %2369 = vdwg.mxu0
        %v2370 = vadd.f32 %v2337, %v2368
        %s2371 = scalar_lea.vmem %s15, 64
        %v2372 = vld [vmem:[%s2371] sm:$0xff]
        %v2373 = vld [vmem:[%s2371 + $0x8] sm:$0xff]
        %v2374 = vld [vmem:[%s2371 + $0x10] sm:$0xff]
        %v2375 = vld [vmem:[%s2371 + $0x18] sm:$0xff]
        %v2376 = vld [vmem:[%s2371 + $0x20] sm:$0xff]
        %v2377 = vld [vmem:[%s2371 + $0x28] sm:$0xff]
        %v2378 = vld [vmem:[%s2371 + $0x30] sm:$0xff]
        %v2379 = vld [vmem:[%s2371 + $0x38] sm:$0xff]
        %v2380 = vrot.slane %v2336, 1
        %v2381 = vsel %vm2346, %v2380, 0
        %2383 = vmatpush.msra.mxu0 0.0
        %2384 = vmatpush.msra.mxu0 0.0
        %2385 = vmatpush.msra.mxu0 0.0
        %2386 = vmatpush.msra.mxu0 0.0
        %2387 = vmatpush.msra.mxu0 0.0
        %2388 = vmatpush.msra.mxu0 0.0
        %2389 = vmatpush.msra.mxu0 0.0
        %2390 = vmatpush.msra.mxu0 0.0
        %2391 = vmatpush.msra.mxu0 %v2379
        %2392 = vmatpush.msra.mxu0 %v2378
        %2393 = vmatpush.msra.mxu0 %v2377
        %2394 = vmatpush.msra.mxu0 %v2376
        %2395 = vmatpush.msra.mxu0 %v2375
        %2396 = vmatpush.msra.mxu0 %v2374
        %2397 = vmatpush.msra.mxu0 %v2373
        %2398 = vmatpush.msra.mxu0 %v2372
        %2399 = vmatmul.f32.gmra.mxu0 %v2381
        %v2400 = vpop.f32.mrf.mxu0
        %v2401 = vadd.f32 0.0, %v2400
        %2402 = vdwg.mxu0
        %v2403 = vadd.f32 %v2370, %v2401
        %2404 = vst [vmem:[%s761] sm:$0x1] %v2403
        %v2405 = vld [vmem:[%s17] sm:$0x1]
        %v2407 = vsel %vm1127, %v2405, 0
        %2409 = vmatpush.msra.mxu0 0.0
        %2410 = vmatpush.msra.mxu0 0.0
        %2411 = vmatpush.msra.mxu0 0.0
        %2412 = vmatpush.msra.mxu0 0.0
        %2413 = vmatpush.msra.mxu0 0.0
        %2414 = vmatpush.msra.mxu0 0.0
        %2415 = vmatpush.msra.mxu0 0.0
        %2416 = vmatpush.msra.mxu0 0.0
        %2417 = vmatpush.msra.mxu0 0.0
        %2418 = vmatpush.msra.mxu0 0.0
        %2419 = vmatpush.msra.mxu0 0.0
        %2420 = vmatpush.msra.mxu0 0.0
        %2421 = vmatpush.msra.mxu0 0.0
        %2422 = vmatpush.msra.mxu0 0.0
        %2423 = vmatpush.msra.mxu0 0.0
        %2424 = vmatpush.msra.mxu0 %v2297
        %2425 = vmatmul.f32.gmra.mxu0 %v2407
        %v2426 = vpop.f32.mrf.mxu0
        %v2427 = vadd.f32 0.0, %v2426
        %2428 = vdwg.mxu0
        %v2429 = vld [vmem:[#allocation2] sm:$0x1]
        %2431 = vset.pattern.permute.xlu0 0
        %2432 = vperm.xlu0 %2431, %v2429
        %v2433 = vpop.permute.xlu0 %2432
        %v2435 = vperm.slane %v2433, 0
        %v2436 = vmul.f32 %v2427, %v2435
        %v2437 = vld [vmem:[#allocation3] sm:$0x1]
        %2439 = vset.pattern.permute.xlu0 0
        %2440 = vperm.xlu0 %2439, %v2437
        %v2441 = vpop.permute.xlu0 %2440
        %v2443 = vperm.slane %v2441, 0
        %v2444 = vadd.f32 %v2436, %v2443
        %v2445 = vmax.f32 %v2444, 0.0
        %v2446 = vld [vmem:[%s20] sm:$0xff]
        %v2447 = vld [vmem:[%s20 + $0x8] sm:$0xff]
        %v2448 = vld [vmem:[%s20 + $0x10] sm:$0xff]
        %v2449 = vld [vmem:[%s20 + $0x18] sm:$0xff]
        %v2450 = vld [vmem:[%s20 + $0x20] sm:$0xff]
        %v2451 = vld [vmem:[%s20 + $0x28] sm:$0xff]
        %v2452 = vld [vmem:[%s20 + $0x30] sm:$0xff]
        %v2453 = vld [vmem:[%s20 + $0x38] sm:$0xff]
        %v2454 = vld [vmem:[%s21] sm:$0x1]
        %v2456 = vsel %vm2346, %v2445, 0
        %2458 = vmatpush.msra.mxu0 0.0
        %2459 = vmatpush.msra.mxu0 0.0
        %2460 = vmatpush.msra.mxu0 0.0
        %2461 = vmatpush.msra.mxu0 0.0
        %2462 = vmatpush.msra.mxu0 0.0
        %2463 = vmatpush.msra.mxu0 0.0
        %2464 = vmatpush.msra.mxu0 0.0
        %2465 = vmatpush.msra.mxu0 0.0
        %2466 = vmatpush.msra.mxu0 %v2453
        %2467 = vmatpush.msra.mxu0 %v2452
        %2468 = vmatpush.msra.mxu0 %v2451
        %2469 = vmatpush.msra.mxu0 %v2450
        %2470 = vmatpush.msra.mxu0 %v2449
        %2471 = vmatpush.msra.mxu0 %v2448
        %2472 = vmatpush.msra.mxu0 %v2447
        %2473 = vmatpush.msra.mxu0 %v2446
        %2474 = vmatmul.f32.gmra.mxu0 %v2456
        %v2475 = vpop.f32.mrf.mxu0
        %v2476 = vadd.f32 %v2454, %v2475
        %2477 = vdwg.mxu0
        %v2478 = vld [vmem:[%s22] sm:$0xff]
        %v2479 = vld [vmem:[%s22 + $0x8] sm:$0xff]
        %v2480 = vld [vmem:[#allocation4] sm:$0x1]
        %vm2481 = vcmask 130048
        %v2483 = vsel %vm2481, %v2476, 0
        %2485 = vmatpush.msra.mxu0 0.0
        %2486 = vmatpush.msra.mxu0 0.0
        %2487 = vmatpush.msra.mxu0 0.0
        %2488 = vmatpush.msra.mxu0 0.0
        %2489 = vmatpush.msra.mxu0 0.0
        %2490 = vmatpush.msra.mxu0 0.0
        %2491 = vmatpush.msra.mxu0 0.0
        %2492 = vmatpush.msra.mxu0 0.0
        %2493 = vmatpush.msra.mxu0 0.0
        %2494 = vmatpush.msra.mxu0 0.0
        %2495 = vmatpush.msra.mxu0 0.0
        %2496 = vmatpush.msra.mxu0 0.0
        %2497 = vmatpush.msra.mxu0 0.0
        %2498 = vmatpush.msra.mxu0 0.0
        %2499 = vmatpush.msra.mxu0 %v2479
        %2500 = vmatpush.msra.mxu0 %v2478
        %2501 = vmatmul.f32.gmra.mxu0 %v2483
        %v2502 = vpop.f32.mrf.mxu0
        %v2503 = vadd.f32 %v2480, %v2502
        %2504 = vdwg.mxu0
        %v2505 = vtanh.pop %v2503
        %vm2506 = vcmask 0
        %2507 = vst.msk [vmem:[%s773] sm:$0x1] %vm2506, %v2505
        %s2508 = sand.u32 %s563, 1
        %s2509 = scalar_lea.sflag [#allocation6], %s2508
        %s2510 = sand.u32 %s563, 1
        %s2511 = scalar_lea.vmem [#allocation5], %s2510
        %p2512 = scmp.lt.s32.totalorder %s46, 1
        %s2513 = scalar_select %p2512, %s46, 1
        %s2514 = scalar_lea.vmem %s25, %s2513
        // Predicated region
        $region117: #{stm_forward.1} parent=115 // pred_check
          %p2515 = pneg %p573
        $region118: #{stm_forward.1} parent=115 // pred_check_branch
          %2517 = sbr.rel (%p2515) target = $region120
        $region119: #{stm_forward.1} parent=115 // pred_region
          %2519 = vsyncadd %s2509, 0
          %s2520 = scalar_lea.hbm %s24, %s46
          %s2522 = sshll.u32 %s2511, 4
          %s2523 = int_to_ptr.vmem [resolvable:$true] %s2522
          %s2524 = sshll.u32 %s2520, 4
          %s2525 = int_to_ptr.hbm [resolvable:$true] %s2524
          %2527 = dma.vmem_to_hbm [thread:$0]  %s2523, 16, %s2525, %s2509
        $region120: #{stm_forward.1} parent=115 // pred_fallthru
          _
        // Predicated region
        $region121: #{stm_forward.1} parent=115 // pred_check
          %p2528 = pneg %p599
        $region122: #{stm_forward.1} parent=115 // pred_check_branch
          %2530 = sbr.rel (%p2528) target = $region124
        $region123: #{stm_forward.1} parent=115 // pred_region
          _
        $region124: #{stm_forward.1} parent=115 // pred_fallthru
          _
      $region116: #{stm_forward.1} parent=5 // pred_fallthru
        _
      %p2531 = scmp.le.s32.totalorder 2, %s41
      // Predicated region
      $region125: #{stm_forward.1} parent=5 // pred_check
        %p2532 = pneg %p2531
      $region126: #{stm_forward.1} parent=5 // pred_check_branch
        %2534 = sbr.rel (%p2532) target = $region128
      $region127: #{stm_forward.1} parent=5 // pred_region
        %s2535 = ssub.s32 %s41, 2
        // Predicated region
        $region129: #{stm_forward.1} parent=127 // pred_check
          %p2536 = pneg %p579
        $region130: #{stm_forward.1} parent=127 // pred_check_branch
          %2538 = sbr.rel (%p2536) target = $region132
        $region131: #{stm_forward.1} parent=127 // pred_region
          %s2539 = sand.u32 %s564, 1
          %s2540 = scalar_lea.sflag [#allocation6], %s2539
          %s2541 = sand.u32 %s564, 1
          %s2542 = scalar_lea.vmem [#allocation5], %s2541
          %2544 = dma.done %s2540, 16
        $region132: #{stm_forward.1} parent=127 // pred_fallthru
          _
        // Predicated region
        $region133: #{stm_forward.1} parent=127 // pred_check
          %p2545 = pneg %p605
        $region134: #{stm_forward.1} parent=127 // pred_check_branch
          %2547 = sbr.rel (%p2545) target = $region136
        $region135: #{stm_forward.1} parent=127 // pred_region
          %p2548 = scmp.lt.s32.totalorder %s47, 1
          %s2549 = scalar_select %p2548, %s47, 1
          %s2550 = scalar_lea.vmem %s25, %s2549
        $region136: #{stm_forward.1} parent=127 // pred_fallthru
          _
      $region128: #{stm_forward.1} parent=5 // pred_fallthru
        _
    $region6: #{stm_forward.1} parent=1 // loop_footer
      %s45 = sadd.s32 1, %s41
    $region7: #{stm_forward.1} parent=1 // loop_footer_branch
      %40 = sbr.rel target = $region3
    $region8: #{stm_forward.1} parent=1 // loop_exit
      _
    %2551 = vsyncpa [#allocation6], 1
    %s2552 = scalar_lea.sflag [#allocation6], 1
    %2553 = vsyncpa %s2552, 1

</llo_original>
